<compile_context>
chip_gen: v7x
topology: tpu7x:2x2x1
jax: 0.10.0
libtpu: 0.0.40
codegen_flags: <defaults>
</compile_context>

<pallas_src>
import functools  # noqa: F401  (kept for easy re-parameterization)

import jax
import jax.numpy as jnp
from jax import lax
from jax.experimental import pallas as pl
from jax.experimental.pallas import tpu as pltpu


def _lstm_fc_kernel(xi_ref, xf_ref, xg_ref, xo_ref,
                    whh_i_ref, whh_f_ref, whh_g_ref, whh_o_ref,
                    wfc_ref, bfc_ref, out_ref):
    """Single-invocation LSTM recurrence over time + fused FC head.

    xi/xf/xg/xo: (S, B, H) per-gate input projections (x_t @ W_ih_gate^T + b_gate).
    whh_*:       (H, H)    per-gate recurrent weights (already transposed).
    wfc/bfc:     (H, O) / (1, O) fully-connected head.
    out:         (B, O).
    """
    S = xi_ref.shape[0]
    B = xi_ref.shape[1]
    H = xi_ref.shape[2]

    # Hoist the loop-invariant recurrent weights out of the time loop.
    whh_i = whh_i_ref[...]
    whh_f = whh_f_ref[...]
    whh_g = whh_g_ref[...]
    whh_o = whh_o_ref[...]

    def step(t, carry):
        h, c = carry
        # Each per-gate dot yields (B, H) directly -> no sub-lane gate slicing
        # inside the serial chain; activations stay f32 on the VPU/EUP.
        i_g = jax.nn.sigmoid(
            xi_ref[t] + jnp.dot(h, whh_i, preferred_element_type=jnp.float32))
        f_g = jax.nn.sigmoid(
            xf_ref[t] + jnp.dot(h, whh_f, preferred_element_type=jnp.float32))
        g_g = jnp.tanh(
            xg_ref[t] + jnp.dot(h, whh_g, preferred_element_type=jnp.float32))
        o_g = jax.nn.sigmoid(
            xo_ref[t] + jnp.dot(h, whh_o, preferred_element_type=jnp.float32))
        c_new = f_g * c + i_g * g_g
        h_new = o_g * jnp.tanh(c_new)
        return h_new, c_new

    # PyTorch default: zero-initialized (h0, c0).
    h0 = jnp.zeros((B, H), jnp.float32)
    c0 = jnp.zeros((B, H), jnp.float32)
    h_final, _ = lax.fori_loop(0, S, step, (h0, c0), unroll=True)

    # FC head on hidden[-1]; written exactly once (not in the hot loop).
    out_ref[...] = (jnp.dot(h_final, wfc_ref[...],
                            preferred_element_type=jnp.float32)
                    + bfc_ref[...]).astype(out_ref.dtype)


def sentiment_forward(text, params):
    """text: (seq_len, batch) int32.  Returns (batch, output_dim) float32."""
    emb_table = params["embedding"]          # (vocab, E)
    w_ih_t = params["w_ih_t"]                # (E, 4H)
    w_hh_t = params["w_hh_t"]                # (H, 4H)
    b_gates = params["b_gates"]              # (1, 4H)
    w_fc_t = params["w_fc_t"]                # (H, O)
    b_fc = params["b_fc"]                    # (1, O)

    S, B = text.shape
    E = emb_table.shape[1]
    H = w_hh_t.shape[0]
    O = w_fc_t.shape[1]

    # ---- JAX glue (XLA fuses gather + one big lane-dense matmul) ----
    # TODO(synk): fuse the embedding gather into the kernel via scalar-prefetch
    #             + pl.Element row gather for large vocab / long sequences.
    embedded = jnp.take(emb_table, text.reshape(-1), axis=0)       # (S*B, E)
    x_proj = embedded @ w_ih_t + b_gates                           # (S*B, 4H), one matmul
    x_proj = x_proj.reshape(S, B, 4 * H)
    xi = x_proj[..., 0 * H:1 * H]                                  # (S, B, H) per gate
    xf = x_proj[..., 1 * H:2 * H]
    xg = x_proj[..., 2 * H:3 * H]
    xo = x_proj[..., 3 * H:4 * H]

    # Per-gate recurrent weights so each in-loop dot yields (B, H) directly.
    # PyTorch gate order in W_hh rows: input, forget, cell (g), output.
    whh_i = w_hh_t[:, 0 * H:1 * H]
    whh_f = w_hh_t[:, 1 * H:2 * H]
    whh_g = w_hh_t[:, 2 * H:3 * H]
    whh_o = w_hh_t[:, 3 * H:4 * H]

    full3 = lambda shape: pl.BlockSpec(shape, lambda i: (0, 0, 0))
    full2 = lambda shape: pl.BlockSpec(shape, lambda i: (0, 0))

    return pl.pallas_call(
        _lstm_fc_kernel,
        out_shape=jax.ShapeDtypeStruct((B, O), jnp.float32),
        grid_spec=pltpu.PrefetchScalarGridSpec(
            num_scalar_prefetch=0,
            grid=(1,),                       # single launch: time loop fused in-kernel
            in_specs=[
                full3((S, B, H)), full3((S, B, H)),
                full3((S, B, H)), full3((S, B, H)),
                full2((H, H)), full2((H, H)), full2((H, H)), full2((H, H)),
                full2((H, O)), full2((1, O)),
            ],
            out_specs=pl.BlockSpec((B, O), lambda i: (0, 0)),
        ),
        compiler_params=pltpu.CompilerParams(
            dimension_semantics=("arbitrary",)),
    )(xi, xf, xg, xo, whh_i, whh_f, whh_g, whh_o, w_fc_t, b_fc)


def _reference_forward(text, params):
    """Pure-JAX reference replicating torch semantics (for correctness check)."""
    emb = jnp.take(params["embedding"], text, axis=0)   # (S, B, E)
    H = params["w_hh_t"].shape[0]
    B = text.shape[1]

    def step(carry, x_t):
        h, c = carry
        gates = x_t @ params["w_ih_t"] + h @ params["w_hh_t"] + params["b_gates"]
        i = jax.nn.sigmoid(gates[:, 0 * H:1 * H])
        f = jax.nn.sigmoid(gates[:, 1 * H:2 * H])
        g = jnp.tanh(gates[:, 2 * H:3 * H])
        o = jax.nn.sigmoid(gates[:, 3 * H:4 * H])
        c = f * c + i * g
        h = o * jnp.tanh(c)
        return (h, c), None

    h0 = jnp.zeros((B, H), jnp.float32)
    (h, _), _ = jax.lax.scan(step, (h0, h0), emb)
    return h @ params["w_fc_t"] + params["b_fc"]


def init_params(key, vocab_size, embedding_dim, hidden_dim, output_dim):
    ks = jax.random.split(key, 8)
    k_lstm = 1.0 / jnp.sqrt(hidden_dim)
    k_fc = 1.0 / jnp.sqrt(hidden_dim)
    # nn.Embedding: N(0,1); nn.LSTM / nn.Linear: U(-1/sqrt(H), 1/sqrt(H))
    emb = jax.random.normal(ks[0], (vocab_size, embedding_dim), jnp.float32)
    w_ih = jax.random.uniform(ks[1], (4 * hidden_dim, embedding_dim), jnp.float32, -k_lstm, k_lstm)
    w_hh = jax.random.uniform(ks[2], (4 * hidden_dim, hidden_dim), jnp.float32, -k_lstm, k_lstm)
    b_ih = jax.random.uniform(ks[3], (4 * hidden_dim,), jnp.float32, -k_lstm, k_lstm)
    b_hh = jax.random.uniform(ks[4], (4 * hidden_dim,), jnp.float32, -k_lstm, k_lstm)
    w_fc = jax.random.uniform(ks[5], (output_dim, hidden_dim), jnp.float32, -k_fc, k_fc)
    b_fc = jax.random.uniform(ks[6], (output_dim,), jnp.float32, -k_fc, k_fc)
    return {
        "embedding": emb,
        "w_ih_t": w_ih.T,                       # (E, 4H)
        "w_hh_t": w_hh.T,                       # (H, 4H)
        "b_gates": (b_ih + b_hh)[None, :],      # (1, 4H)
        "w_fc_t": w_fc.T,                       # (H, O)
        "b_fc": b_fc[None, :],                  # (1, O)
    }


if __name__ == "__main__":
    vocab_size, embedding_dim, hidden_dim, output_dim = 50, 16, 32, 2
    seq_len, batch = 8, 2

    key = jax.random.PRNGKey(0)
    k_param, k_text = jax.random.split(key)
    params = init_params(k_param, vocab_size, embedding_dim, hidden_dim, output_dim)
    text = jax.random.randint(k_text, (seq_len, batch), 0, vocab_size, dtype=jnp.int32)

    out = sentiment_forward(text, params)
    out = jax.block_until_ready(out)

    ref = jax.block_until_ready(_reference_forward(text, params))
    assert out.shape == (batch, output_dim)
    assert jnp.allclose(out, ref, atol=1e-4, rtol=1e-4), (out, ref)

    print("KERNEL_OK")
</pallas_src>

<mosaic_0001>
module attributes {stable_mosaic.version = 11 : i64} {
  func.func @_lstm_fc_kernel(%arg0: i32, %arg1: memref<8x2x32xf32, #tpu.memory_space<vmem>>, %arg2: memref<8x2x32xf32, #tpu.memory_space<vmem>>, %arg3: memref<8x2x32xf32, #tpu.memory_space<vmem>>, %arg4: memref<8x2x32xf32, #tpu.memory_space<vmem>>, %arg5: memref<32x32xf32, #tpu.memory_space<vmem>>, %arg6: memref<32x32xf32, #tpu.memory_space<vmem>>, %arg7: memref<32x32xf32, #tpu.memory_space<vmem>>, %arg8: memref<32x32xf32, #tpu.memory_space<vmem>>, %arg9: memref<32x2xf32, #tpu.memory_space<vmem>>, %arg10: memref<1x2xf32, #tpu.memory_space<vmem>>, %arg11: memref<2x2xf32, #tpu.memory_space<vmem>>) attributes {dimension_semantics = [#tpu.dimension_semantics<arbitrary>], iteration_bounds = array<i64: 1>, scalar_prefetch = 0 : i64, scratch_operands = 0 : i64, tpu.core_type = #tpu.core_type<tc>, window_params = [{pipeline_mode = #tpu.pipeline_mode<synchronous>, transform_indices = @transform_0, window_bounds = array<i64: 8, 2, 32>}, {pipeline_mode = #tpu.pipeline_mode<synchronous>, transform_indices = @transform_1, window_bounds = array<i64: 8, 2, 32>}, {pipeline_mode = #tpu.pipeline_mode<synchronous>, transform_indices = @transform_2, window_bounds = array<i64: 8, 2, 32>}, {pipeline_mode = #tpu.pipeline_mode<synchronous>, transform_indices = @transform_3, window_bounds = array<i64: 8, 2, 32>}, {pipeline_mode = #tpu.pipeline_mode<synchronous>, transform_indices = @transform_4, window_bounds = array<i64: 32, 32>}, {pipeline_mode = #tpu.pipeline_mode<synchronous>, transform_indices = @transform_5, window_bounds = array<i64: 32, 32>}, {pipeline_mode = #tpu.pipeline_mode<synchronous>, transform_indices = @transform_6, window_bounds = array<i64: 32, 32>}, {pipeline_mode = #tpu.pipeline_mode<synchronous>, transform_indices = @transform_7, window_bounds = array<i64: 32, 32>}, {pipeline_mode = #tpu.pipeline_mode<synchronous>, transform_indices = @transform_8, window_bounds = array<i64: 32, 2>}, {pipeline_mode = #tpu.pipeline_mode<synchronous>, transform_indices = @transform_9, window_bounds = array<i64: 1, 2>}, {pipeline_mode = #tpu.pipeline_mode<synchronous>, transform_indices = @transform_10, window_bounds = array<i64: 2, 2>}]} {
    %c0 = arith.constant 0 : index
    %c0_0 = arith.constant 0 : index
    %0 = vector.load %arg5[%c0, %c0_0] : memref<32x32xf32, #tpu.memory_space<vmem>>, vector<32x32xf32>
    %c0_1 = arith.constant 0 : index
    %c0_2 = arith.constant 0 : index
    %1 = vector.load %arg6[%c0_1, %c0_2] : memref<32x32xf32, #tpu.memory_space<vmem>>, vector<32x32xf32>
    %c0_3 = arith.constant 0 : index
    %c0_4 = arith.constant 0 : index
    %2 = vector.load %arg7[%c0_3, %c0_4] : memref<32x32xf32, #tpu.memory_space<vmem>>, vector<32x32xf32>
    %c0_5 = arith.constant 0 : index
    %c0_6 = arith.constant 0 : index
    %3 = vector.load %arg8[%c0_5, %c0_6] : memref<32x32xf32, #tpu.memory_space<vmem>>, vector<32x32xf32>
    %cst = arith.constant 0.000000e+00 : f32
    %4 = vector.broadcast %cst : f32 to vector<2x32xf32>
    %cst_7 = arith.constant 0.000000e+00 : f32
    %5 = vector.broadcast %cst_7 : f32 to vector<2x32xf32>
    %c0_i32 = arith.constant 0 : i32
    %6 = arith.index_cast %c0_i32 : i32 to index
    %c0_8 = arith.constant 0 : index
    %c0_9 = arith.constant 0 : index
    %7 = vector.load %arg1[%6, %c0_8, %c0_9] : memref<8x2x32xf32, #tpu.memory_space<vmem>>, vector<1x2x32xf32>
    %8 = vector.shape_cast %7 : vector<1x2x32xf32> to vector<2x32xf32>
    %cst_10 = arith.constant dense<0.000000e+00> : vector<2x32xf32>
    %9 = tpu.matmul %4, %0, %cst_10 {dimension_numbers = #tpu.dot_dimension_numbers<[1], [0], [0], [1], [0, 0, 1, 1], [], []>} : vector<2x32xf32>, vector<32x32xf32>, vector<2x32xf32> -> vector<2x32xf32>
    %10 = arith.addf %8, %9 : vector<2x32xf32>
    %11 = arith.negf %10 : vector<2x32xf32>
    %12 = math.exp %11 : vector<2x32xf32>
    %cst_11 = arith.constant 1.000000e+00 : f32
    %13 = vector.broadcast %cst_11 : f32 to vector<2x32xf32>
    %14 = arith.addf %13, %12 : vector<2x32xf32>
    %15 = arith.divf %13, %14 : vector<2x32xf32>
    %16 = arith.index_cast %c0_i32 : i32 to index
    %c0_12 = arith.constant 0 : index
    %c0_13 = arith.constant 0 : index
    %17 = vector.load %arg2[%16, %c0_12, %c0_13] : memref<8x2x32xf32, #tpu.memory_space<vmem>>, vector<1x2x32xf32>
    %18 = vector.shape_cast %17 : vector<1x2x32xf32> to vector<2x32xf32>
    %cst_14 = arith.constant dense<0.000000e+00> : vector<2x32xf32>
    %19 = tpu.matmul %4, %1, %cst_14 {dimension_numbers = #tpu.dot_dimension_numbers<[1], [0], [0], [1], [0, 0, 1, 1], [], []>} : vector<2x32xf32>, vector<32x32xf32>, vector<2x32xf32> -> vector<2x32xf32>
    %20 = arith.addf %18, %19 : vector<2x32xf32>
    %21 = arith.negf %20 : vector<2x32xf32>
    %22 = math.exp %21 : vector<2x32xf32>
    %cst_15 = arith.constant 1.000000e+00 : f32
    %23 = vector.broadcast %cst_15 : f32 to vector<2x32xf32>
    %24 = arith.addf %23, %22 : vector<2x32xf32>
    %25 = arith.divf %23, %24 : vector<2x32xf32>
    %26 = arith.index_cast %c0_i32 : i32 to index
    %c0_16 = arith.constant 0 : index
    %c0_17 = arith.constant 0 : index
    %27 = vector.load %arg3[%26, %c0_16, %c0_17] : memref<8x2x32xf32, #tpu.memory_space<vmem>>, vector<1x2x32xf32>
    %28 = vector.shape_cast %27 : vector<1x2x32xf32> to vector<2x32xf32>
    %cst_18 = arith.constant dense<0.000000e+00> : vector<2x32xf32>
    %29 = tpu.matmul %4, %2, %cst_18 {dimension_numbers = #tpu.dot_dimension_numbers<[1], [0], [0], [1], [0, 0, 1, 1], [], []>} : vector<2x32xf32>, vector<32x32xf32>, vector<2x32xf32> -> vector<2x32xf32>
    %30 = arith.addf %28, %29 : vector<2x32xf32>
    %31 = math.tanh %30 : vector<2x32xf32>
    %32 = arith.index_cast %c0_i32 : i32 to index
    %c0_19 = arith.constant 0 : index
    %c0_20 = arith.constant 0 : index
    %33 = vector.load %arg4[%32, %c0_19, %c0_20] : memref<8x2x32xf32, #tpu.memory_space<vmem>>, vector<1x2x32xf32>
    %34 = vector.shape_cast %33 : vector<1x2x32xf32> to vector<2x32xf32>
    %cst_21 = arith.constant dense<0.000000e+00> : vector<2x32xf32>
    %35 = tpu.matmul %4, %3, %cst_21 {dimension_numbers = #tpu.dot_dimension_numbers<[1], [0], [0], [1], [0, 0, 1, 1], [], []>} : vector<2x32xf32>, vector<32x32xf32>, vector<2x32xf32> -> vector<2x32xf32>
    %36 = arith.addf %34, %35 : vector<2x32xf32>
    %37 = arith.negf %36 : vector<2x32xf32>
    %38 = math.exp %37 : vector<2x32xf32>
    %cst_22 = arith.constant 1.000000e+00 : f32
    %39 = vector.broadcast %cst_22 : f32 to vector<2x32xf32>
    %40 = arith.addf %39, %38 : vector<2x32xf32>
    %41 = arith.divf %39, %40 : vector<2x32xf32>
    %42 = arith.mulf %25, %5 : vector<2x32xf32>
    %43 = arith.mulf %15, %31 : vector<2x32xf32>
    %44 = arith.addf %42, %43 : vector<2x32xf32>
    %45 = math.tanh %44 : vector<2x32xf32>
    %46 = arith.mulf %41, %45 : vector<2x32xf32>
    %c1_i32 = arith.constant 1 : i32
    %47 = arith.index_cast %c1_i32 : i32 to index
    %c0_23 = arith.constant 0 : index
    %c0_24 = arith.constant 0 : index
    %48 = vector.load %arg1[%47, %c0_23, %c0_24] : memref<8x2x32xf32, #tpu.memory_space<vmem>>, vector<1x2x32xf32>
    %49 = vector.shape_cast %48 : vector<1x2x32xf32> to vector<2x32xf32>
    %cst_25 = arith.constant dense<0.000000e+00> : vector<2x32xf32>
    %50 = tpu.matmul %46, %0, %cst_25 {dimension_numbers = #tpu.dot_dimension_numbers<[1], [0], [0], [1], [0, 0, 1, 1], [], []>} : vector<2x32xf32>, vector<32x32xf32>, vector<2x32xf32> -> vector<2x32xf32>
    %51 = arith.addf %49, %50 : vector<2x32xf32>
    %52 = arith.negf %51 : vector<2x32xf32>
    %53 = math.exp %52 : vector<2x32xf32>
    %cst_26 = arith.constant 1.000000e+00 : f32
    %54 = vector.broadcast %cst_26 : f32 to vector<2x32xf32>
    %55 = arith.addf %54, %53 : vector<2x32xf32>
    %56 = arith.divf %54, %55 : vector<2x32xf32>
    %57 = arith.index_cast %c1_i32 : i32 to index
    %c0_27 = arith.constant 0 : index
    %c0_28 = arith.constant 0 : index
    %58 = vector.load %arg2[%57, %c0_27, %c0_28] : memref<8x2x32xf32, #tpu.memory_space<vmem>>, vector<1x2x32xf32>
    %59 = vector.shape_cast %58 : vector<1x2x32xf32> to vector<2x32xf32>
    %cst_29 = arith.constant dense<0.000000e+00> : vector<2x32xf32>
    %60 = tpu.matmul %46, %1, %cst_29 {dimension_numbers = #tpu.dot_dimension_numbers<[1], [0], [0], [1], [0, 0, 1, 1], [], []>} : vector<2x32xf32>, vector<32x32xf32>, vector<2x32xf32> -> vector<2x32xf32>
    %61 = arith.addf %59, %60 : vector<2x32xf32>
    %62 = arith.negf %61 : vector<2x32xf32>
    %63 = math.exp %62 : vector<2x32xf32>
    %cst_30 = arith.constant 1.000000e+00 : f32
    %64 = vector.broadcast %cst_30 : f32 to vector<2x32xf32>
    %65 = arith.addf %64, %63 : vector<2x32xf32>
    %66 = arith.divf %64, %65 : vector<2x32xf32>
    %67 = arith.index_cast %c1_i32 : i32 to index
    %c0_31 = arith.constant 0 : index
    %c0_32 = arith.constant 0 : index
    %68 = vector.load %arg3[%67, %c0_31, %c0_32] : memref<8x2x32xf32, #tpu.memory_space<vmem>>, vector<1x2x32xf32>
    %69 = vector.shape_cast %68 : vector<1x2x32xf32> to vector<2x32xf32>
    %cst_33 = arith.constant dense<0.000000e+00> : vector<2x32xf32>
    %70 = tpu.matmul %46, %2, %cst_33 {dimension_numbers = #tpu.dot_dimension_numbers<[1], [0], [0], [1], [0, 0, 1, 1], [], []>} : vector<2x32xf32>, vector<32x32xf32>, vector<2x32xf32> -> vector<2x32xf32>
    %71 = arith.addf %69, %70 : vector<2x32xf32>
    %72 = math.tanh %71 : vector<2x32xf32>
    %73 = arith.index_cast %c1_i32 : i32 to index
    %c0_34 = arith.constant 0 : index
    %c0_35 = arith.constant 0 : index
    %74 = vector.load %arg4[%73, %c0_34, %c0_35] : memref<8x2x32xf32, #tpu.memory_space<vmem>>, vector<1x2x32xf32>
    %75 = vector.shape_cast %74 : vector<1x2x32xf32> to vector<2x32xf32>
    %cst_36 = arith.constant dense<0.000000e+00> : vector<2x32xf32>
    %76 = tpu.matmul %46, %3, %cst_36 {dimension_numbers = #tpu.dot_dimension_numbers<[1], [0], [0], [1], [0, 0, 1, 1], [], []>} : vector<2x32xf32>, vector<32x32xf32>, vector<2x32xf32> -> vector<2x32xf32>
    %77 = arith.addf %75, %76 : vector<2x32xf32>
    %78 = arith.negf %77 : vector<2x32xf32>
    %79 = math.exp %78 : vector<2x32xf32>
    %cst_37 = arith.constant 1.000000e+00 : f32
    %80 = vector.broadcast %cst_37 : f32 to vector<2x32xf32>
    %81 = arith.addf %80, %79 : vector<2x32xf32>
    %82 = arith.divf %80, %81 : vector<2x32xf32>
    %83 = arith.mulf %66, %44 : vector<2x32xf32>
    %84 = arith.mulf %56, %72 : vector<2x32xf32>
    %85 = arith.addf %83, %84 : vector<2x32xf32>
    %86 = math.tanh %85 : vector<2x32xf32>
    %87 = arith.mulf %82, %86 : vector<2x32xf32>
    %c2_i32 = arith.constant 2 : i32
    %88 = arith.index_cast %c2_i32 : i32 to index
    %c0_38 = arith.constant 0 : index
    %c0_39 = arith.constant 0 : index
    %89 = vector.load %arg1[%88, %c0_38, %c0_39] : memref<8x2x32xf32, #tpu.memory_space<vmem>>, vector<1x2x32xf32>
    %90 = vector.shape_cast %89 : vector<1x2x32xf32> to vector<2x32xf32>
    %cst_40 = arith.constant dense<0.000000e+00> : vector<2x32xf32>
    %91 = tpu.matmul %87, %0, %cst_40 {dimension_numbers = #tpu.dot_dimension_numbers<[1], [0], [0], [1], [0, 0, 1, 1], [], []>} : vector<2x32xf32>, vector<32x32xf32>, vector<2x32xf32> -> vector<2x32xf32>
    %92 = arith.addf %90, %91 : vector<2x32xf32>
    %93 = arith.negf %92 : vector<2x32xf32>
    %94 = math.exp %93 : vector<2x32xf32>
    %cst_41 = arith.constant 1.000000e+00 : f32
    %95 = vector.broadcast %cst_41 : f32 to vector<2x32xf32>
    %96 = arith.addf %95, %94 : vector<2x32xf32>
    %97 = arith.divf %95, %96 : vector<2x32xf32>
    %98 = arith.index_cast %c2_i32 : i32 to index
    %c0_42 = arith.constant 0 : index
    %c0_43 = arith.constant 0 : index
    %99 = vector.load %arg2[%98, %c0_42, %c0_43] : memref<8x2x32xf32, #tpu.memory_space<vmem>>, vector<1x2x32xf32>
    %100 = vector.shape_cast %99 : vector<1x2x32xf32> to vector<2x32xf32>
    %cst_44 = arith.constant dense<0.000000e+00> : vector<2x32xf32>
    %101 = tpu.matmul %87, %1, %cst_44 {dimension_numbers = #tpu.dot_dimension_numbers<[1], [0], [0], [1], [0, 0, 1, 1], [], []>} : vector<2x32xf32>, vector<32x32xf32>, vector<2x32xf32> -> vector<2x32xf32>
    %102 = arith.addf %100, %101 : vector<2x32xf32>
    %103 = arith.negf %102 : vector<2x32xf32>
    %104 = math.exp %103 : vector<2x32xf32>
    %cst_45 = arith.constant 1.000000e+00 : f32
    %105 = vector.broadcast %cst_45 : f32 to vector<2x32xf32>
    %106 = arith.addf %105, %104 : vector<2x32xf32>
    %107 = arith.divf %105, %106 : vector<2x32xf32>
    %108 = arith.index_cast %c2_i32 : i32 to index
    %c0_46 = arith.constant 0 : index
    %c0_47 = arith.constant 0 : index
    %109 = vector.load %arg3[%108, %c0_46, %c0_47] : memref<8x2x32xf32, #tpu.memory_space<vmem>>, vector<1x2x32xf32>
    %110 = vector.shape_cast %109 : vector<1x2x32xf32> to vector<2x32xf32>
    %cst_48 = arith.constant dense<0.000000e+00> : vector<2x32xf32>
    %111 = tpu.matmul %87, %2, %cst_48 {dimension_numbers = #tpu.dot_dimension_numbers<[1], [0], [0], [1], [0, 0, 1, 1], [], []>} : vector<2x32xf32>, vector<32x32xf32>, vector<2x32xf32> -> vector<2x32xf32>
    %112 = arith.addf %110, %111 : vector<2x32xf32>
    %113 = math.tanh %112 : vector<2x32xf32>
    %114 = arith.index_cast %c2_i32 : i32 to index
    %c0_49 = arith.constant 0 : index
    %c0_50 = arith.constant 0 : index
    %115 = vector.load %arg4[%114, %c0_49, %c0_50] : memref<8x2x32xf32, #tpu.memory_space<vmem>>, vector<1x2x32xf32>
    %116 = vector.shape_cast %115 : vector<1x2x32xf32> to vector<2x32xf32>
    %cst_51 = arith.constant dense<0.000000e+00> : vector<2x32xf32>
    %117 = tpu.matmul %87, %3, %cst_51 {dimension_numbers = #tpu.dot_dimension_numbers<[1], [0], [0], [1], [0, 0, 1, 1], [], []>} : vector<2x32xf32>, vector<32x32xf32>, vector<2x32xf32> -> vector<2x32xf32>
    %118 = arith.addf %116, %117 : vector<2x32xf32>
    %119 = arith.negf %118 : vector<2x32xf32>
    %120 = math.exp %119 : vector<2x32xf32>
    %cst_52 = arith.constant 1.000000e+00 : f32
    %121 = vector.broadcast %cst_52 : f32 to vector<2x32xf32>
    %122 = arith.addf %121, %120 : vector<2x32xf32>
    %123 = arith.divf %121, %122 : vector<2x32xf32>
    %124 = arith.mulf %107, %85 : vector<2x32xf32>
    %125 = arith.mulf %97, %113 : vector<2x32xf32>
    %126 = arith.addf %124, %125 : vector<2x32xf32>
    %127 = math.tanh %126 : vector<2x32xf32>
    %128 = arith.mulf %123, %127 : vector<2x32xf32>
    %c3_i32 = arith.constant 3 : i32
    %129 = arith.index_cast %c3_i32 : i32 to index
    %c0_53 = arith.constant 0 : index
    %c0_54 = arith.constant 0 : index
    %130 = vector.load %arg1[%129, %c0_53, %c0_54] : memref<8x2x32xf32, #tpu.memory_space<vmem>>, vector<1x2x32xf32>
    %131 = vector.shape_cast %130 : vector<1x2x32xf32> to vector<2x32xf32>
    %cst_55 = arith.constant dense<0.000000e+00> : vector<2x32xf32>
    %132 = tpu.matmul %128, %0, %cst_55 {dimension_numbers = #tpu.dot_dimension_numbers<[1], [0], [0], [1], [0, 0, 1, 1], [], []>} : vector<2x32xf32>, vector<32x32xf32>, vector<2x32xf32> -> vector<2x32xf32>
    %133 = arith.addf %131, %132 : vector<2x32xf32>
    %134 = arith.negf %133 : vector<2x32xf32>
    %135 = math.exp %134 : vector<2x32xf32>
    %cst_56 = arith.constant 1.000000e+00 : f32
    %136 = vector.broadcast %cst_56 : f32 to vector<2x32xf32>
    %137 = arith.addf %136, %135 : vector<2x32xf32>
    %138 = arith.divf %136, %137 : vector<2x32xf32>
    %139 = arith.index_cast %c3_i32 : i32 to index
    %c0_57 = arith.constant 0 : index
    %c0_58 = arith.constant 0 : index
    %140 = vector.load %arg2[%139, %c0_57, %c0_58] : memref<8x2x32xf32, #tpu.memory_space<vmem>>, vector<1x2x32xf32>
    %141 = vector.shape_cast %140 : vector<1x2x32xf32> to vector<2x32xf32>
    %cst_59 = arith.constant dense<0.000000e+00> : vector<2x32xf32>
    %142 = tpu.matmul %128, %1, %cst_59 {dimension_numbers = #tpu.dot_dimension_numbers<[1], [0], [0], [1], [0, 0, 1, 1], [], []>} : vector<2x32xf32>, vector<32x32xf32>, vector<2x32xf32> -> vector<2x32xf32>
    %143 = arith.addf %141, %142 : vector<2x32xf32>
    %144 = arith.negf %143 : vector<2x32xf32>
    %145 = math.exp %144 : vector<2x32xf32>
    %cst_60 = arith.constant 1.000000e+00 : f32
    %146 = vector.broadcast %cst_60 : f32 to vector<2x32xf32>
    %147 = arith.addf %146, %145 : vector<2x32xf32>
    %148 = arith.divf %146, %147 : vector<2x32xf32>
    %149 = arith.index_cast %c3_i32 : i32 to index
    %c0_61 = arith.constant 0 : index
    %c0_62 = arith.constant 0 : index
    %150 = vector.load %arg3[%149, %c0_61, %c0_62] : memref<8x2x32xf32, #tpu.memory_space<vmem>>, vector<1x2x32xf32>
    %151 = vector.shape_cast %150 : vector<1x2x32xf32> to vector<2x32xf32>
    %cst_63 = arith.constant dense<0.000000e+00> : vector<2x32xf32>
    %152 = tpu.matmul %128, %2, %cst_63 {dimension_numbers = #tpu.dot_dimension_numbers<[1], [0], [0], [1], [0, 0, 1, 1], [], []>} : vector<2x32xf32>, vector<32x32xf32>, vector<2x32xf32> -> vector<2x32xf32>
    %153 = arith.addf %151, %152 : vector<2x32xf32>
    %154 = math.tanh %153 : vector<2x32xf32>
    %155 = arith.index_cast %c3_i32 : i32 to index
    %c0_64 = arith.constant 0 : index
    %c0_65 = arith.constant 0 : index
    %156 = vector.load %arg4[%155, %c0_64, %c0_65] : memref<8x2x32xf32, #tpu.memory_space<vmem>>, vector<1x2x32xf32>
    %157 = vector.shape_cast %156 : vector<1x2x32xf32> to vector<2x32xf32>
    %cst_66 = arith.constant dense<0.000000e+00> : vector<2x32xf32>
    %158 = tpu.matmul %128, %3, %cst_66 {dimension_numbers = #tpu.dot_dimension_numbers<[1], [0], [0], [1], [0, 0, 1, 1], [], []>} : vector<2x32xf32>, vector<32x32xf32>, vector<2x32xf32> -> vector<2x32xf32>
    %159 = arith.addf %157, %158 : vector<2x32xf32>
    %160 = arith.negf %159 : vector<2x32xf32>
    %161 = math.exp %160 : vector<2x32xf32>
    %cst_67 = arith.constant 1.000000e+00 : f32
    %162 = vector.broadcast %cst_67 : f32 to vector<2x32xf32>
    %163 = arith.addf %162, %161 : vector<2x32xf32>
    %164 = arith.divf %162, %163 : vector<2x32xf32>
    %165 = arith.mulf %148, %126 : vector<2x32xf32>
    %166 = arith.mulf %138, %154 : vector<2x32xf32>
    %167 = arith.addf %165, %166 : vector<2x32xf32>
    %168 = math.tanh %167 : vector<2x32xf32>
    %169 = arith.mulf %164, %168 : vector<2x32xf32>
    %c4_i32 = arith.constant 4 : i32
    %170 = arith.index_cast %c4_i32 : i32 to index
    %c0_68 = arith.constant 0 : index
    %c0_69 = arith.constant 0 : index
    %171 = vector.load %arg1[%170, %c0_68, %c0_69] : memref<8x2x32xf32, #tpu.memory_space<vmem>>, vector<1x2x32xf32>
    %172 = vector.shape_cast %171 : vector<1x2x32xf32> to vector<2x32xf32>
    %cst_70 = arith.constant dense<0.000000e+00> : vector<2x32xf32>
    %173 = tpu.matmul %169, %0, %cst_70 {dimension_numbers = #tpu.dot_dimension_numbers<[1], [0], [0], [1], [0, 0, 1, 1], [], []>} : vector<2x32xf32>, vector<32x32xf32>, vector<2x32xf32> -> vector<2x32xf32>
    %174 = arith.addf %172, %173 : vector<2x32xf32>
    %175 = arith.negf %174 : vector<2x32xf32>
    %176 = math.exp %175 : vector<2x32xf32>
    %cst_71 = arith.constant 1.000000e+00 : f32
    %177 = vector.broadcast %cst_71 : f32 to vector<2x32xf32>
    %178 = arith.addf %177, %176 : vector<2x32xf32>
    %179 = arith.divf %177, %178 : vector<2x32xf32>
    %180 = arith.index_cast %c4_i32 : i32 to index
    %c0_72 = arith.constant 0 : index
    %c0_73 = arith.constant 0 : index
    %181 = vector.load %arg2[%180, %c0_72, %c0_73] : memref<8x2x32xf32, #tpu.memory_space<vmem>>, vector<1x2x32xf32>
    %182 = vector.shape_cast %181 : vector<1x2x32xf32> to vector<2x32xf32>
    %cst_74 = arith.constant dense<0.000000e+00> : vector<2x32xf32>
    %183 = tpu.matmul %169, %1, %cst_74 {dimension_numbers = #tpu.dot_dimension_numbers<[1], [0], [0], [1], [0, 0, 1, 1], [], []>} : vector<2x32xf32>, vector<32x32xf32>, vector<2x32xf32> -> vector<2x32xf32>
    %184 = arith.addf %182, %183 : vector<2x32xf32>
    %185 = arith.negf %184 : vector<2x32xf32>
    %186 = math.exp %185 : vector<2x32xf32>
    %cst_75 = arith.constant 1.000000e+00 : f32
    %187 = vector.broadcast %cst_75 : f32 to vector<2x32xf32>
    %188 = arith.addf %187, %186 : vector<2x32xf32>
    %189 = arith.divf %187, %188 : vector<2x32xf32>
    %190 = arith.index_cast %c4_i32 : i32 to index
    %c0_76 = arith.constant 0 : index
    %c0_77 = arith.constant 0 : index
    %191 = vector.load %arg3[%190, %c0_76, %c0_77] : memref<8x2x32xf32, #tpu.memory_space<vmem>>, vector<1x2x32xf32>
    %192 = vector.shape_cast %191 : vector<1x2x32xf32> to vector<2x32xf32>
    %cst_78 = arith.constant dense<0.000000e+00> : vector<2x32xf32>
    %193 = tpu.matmul %169, %2, %cst_78 {dimension_numbers = #tpu.dot_dimension_numbers<[1], [0], [0], [1], [0, 0, 1, 1], [], []>} : vector<2x32xf32>, vector<32x32xf32>, vector<2x32xf32> -> vector<2x32xf32>
    %194 = arith.addf %192, %193 : vector<2x32xf32>
    %195 = math.tanh %194 : vector<2x32xf32>
    %196 = arith.index_cast %c4_i32 : i32 to index
    %c0_79 = arith.constant 0 : index
    %c0_80 = arith.constant 0 : index
    %197 = vector.load %arg4[%196, %c0_79, %c0_80] : memref<8x2x32xf32, #tpu.memory_space<vmem>>, vector<1x2x32xf32>
    %198 = vector.shape_cast %197 : vector<1x2x32xf32> to vector<2x32xf32>
    %cst_81 = arith.constant dense<0.000000e+00> : vector<2x32xf32>
    %199 = tpu.matmul %169, %3, %cst_81 {dimension_numbers = #tpu.dot_dimension_numbers<[1], [0], [0], [1], [0, 0, 1, 1], [], []>} : vector<2x32xf32>, vector<32x32xf32>, vector<2x32xf32> -> vector<2x32xf32>
    %200 = arith.addf %198, %199 : vector<2x32xf32>
    %201 = arith.negf %200 : vector<2x32xf32>
    %202 = math.exp %201 : vector<2x32xf32>
    %cst_82 = arith.constant 1.000000e+00 : f32
    %203 = vector.broadcast %cst_82 : f32 to vector<2x32xf32>
    %204 = arith.addf %203, %202 : vector<2x32xf32>
    %205 = arith.divf %203, %204 : vector<2x32xf32>
    %206 = arith.mulf %189, %167 : vector<2x32xf32>
    %207 = arith.mulf %179, %195 : vector<2x32xf32>
    %208 = arith.addf %206, %207 : vector<2x32xf32>
    %209 = math.tanh %208 : vector<2x32xf32>
    %210 = arith.mulf %205, %209 : vector<2x32xf32>
    %c5_i32 = arith.constant 5 : i32
    %211 = arith.index_cast %c5_i32 : i32 to index
    %c0_83 = arith.constant 0 : index
    %c0_84 = arith.constant 0 : index
    %212 = vector.load %arg1[%211, %c0_83, %c0_84] : memref<8x2x32xf32, #tpu.memory_space<vmem>>, vector<1x2x32xf32>
    %213 = vector.shape_cast %212 : vector<1x2x32xf32> to vector<2x32xf32>
    %cst_85 = arith.constant dense<0.000000e+00> : vector<2x32xf32>
    %214 = tpu.matmul %210, %0, %cst_85 {dimension_numbers = #tpu.dot_dimension_numbers<[1], [0], [0], [1], [0, 0, 1, 1], [], []>} : vector<2x32xf32>, vector<32x32xf32>, vector<2x32xf32> -> vector<2x32xf32>
    %215 = arith.addf %213, %214 : vector<2x32xf32>
    %216 = arith.negf %215 : vector<2x32xf32>
    %217 = math.exp %216 : vector<2x32xf32>
    %cst_86 = arith.constant 1.000000e+00 : f32
    %218 = vector.broadcast %cst_86 : f32 to vector<2x32xf32>
    %219 = arith.addf %218, %217 : vector<2x32xf32>
    %220 = arith.divf %218, %219 : vector<2x32xf32>
    %221 = arith.index_cast %c5_i32 : i32 to index
    %c0_87 = arith.constant 0 : index
    %c0_88 = arith.constant 0 : index
    %222 = vector.load %arg2[%221, %c0_87, %c0_88] : memref<8x2x32xf32, #tpu.memory_space<vmem>>, vector<1x2x32xf32>
    %223 = vector.shape_cast %222 : vector<1x2x32xf32> to vector<2x32xf32>
    %cst_89 = arith.constant dense<0.000000e+00> : vector<2x32xf32>
    %224 = tpu.matmul %210, %1, %cst_89 {dimension_numbers = #tpu.dot_dimension_numbers<[1], [0], [0], [1], [0, 0, 1, 1], [], []>} : vector<2x32xf32>, vector<32x32xf32>, vector<2x32xf32> -> vector<2x32xf32>
    %225 = arith.addf %223, %224 : vector<2x32xf32>
    %226 = arith.negf %225 : vector<2x32xf32>
    %227 = math.exp %226 : vector<2x32xf32>
    %cst_90 = arith.constant 1.000000e+00 : f32
    %228 = vector.broadcast %cst_90 : f32 to vector<2x32xf32>
    %229 = arith.addf %228, %227 : vector<2x32xf32>
    %230 = arith.divf %228, %229 : vector<2x32xf32>
    %231 = arith.index_cast %c5_i32 : i32 to index
    %c0_91 = arith.constant 0 : index
    %c0_92 = arith.constant 0 : index
    %232 = vector.load %arg3[%231, %c0_91, %c0_92] : memref<8x2x32xf32, #tpu.memory_space<vmem>>, vector<1x2x32xf32>
    %233 = vector.shape_cast %232 : vector<1x2x32xf32> to vector<2x32xf32>
    %cst_93 = arith.constant dense<0.000000e+00> : vector<2x32xf32>
    %234 = tpu.matmul %210, %2, %cst_93 {dimension_numbers = #tpu.dot_dimension_numbers<[1], [0], [0], [1], [0, 0, 1, 1], [], []>} : vector<2x32xf32>, vector<32x32xf32>, vector<2x32xf32> -> vector<2x32xf32>
    %235 = arith.addf %233, %234 : vector<2x32xf32>
    %236 = math.tanh %235 : vector<2x32xf32>
    %237 = arith.index_cast %c5_i32 : i32 to index
    %c0_94 = arith.constant 0 : index
    %c0_95 = arith.constant 0 : index
    %238 = vector.load %arg4[%237, %c0_94, %c0_95] : memref<8x2x32xf32, #tpu.memory_space<vmem>>, vector<1x2x32xf32>
    %239 = vector.shape_cast %238 : vector<1x2x32xf32> to vector<2x32xf32>
    %cst_96 = arith.constant dense<0.000000e+00> : vector<2x32xf32>
    %240 = tpu.matmul %210, %3, %cst_96 {dimension_numbers = #tpu.dot_dimension_numbers<[1], [0], [0], [1], [0, 0, 1, 1], [], []>} : vector<2x32xf32>, vector<32x32xf32>, vector<2x32xf32> -> vector<2x32xf32>
    %241 = arith.addf %239, %240 : vector<2x32xf32>
    %242 = arith.negf %241 : vector<2x32xf32>
    %243 = math.exp %242 : vector<2x32xf32>
    %cst_97 = arith.constant 1.000000e+00 : f32
    %244 = vector.broadcast %cst_97 : f32 to vector<2x32xf32>
    %245 = arith.addf %244, %243 : vector<2x32xf32>
    %246 = arith.divf %244, %245 : vector<2x32xf32>
    %247 = arith.mulf %230, %208 : vector<2x32xf32>
    %248 = arith.mulf %220, %236 : vector<2x32xf32>
    %249 = arith.addf %247, %248 : vector<2x32xf32>
    %250 = math.tanh %249 : vector<2x32xf32>
    %251 = arith.mulf %246, %250 : vector<2x32xf32>
    %c6_i32 = arith.constant 6 : i32
    %252 = arith.index_cast %c6_i32 : i32 to index
    %c0_98 = arith.constant 0 : index
    %c0_99 = arith.constant 0 : index
    %253 = vector.load %arg1[%252, %c0_98, %c0_99] : memref<8x2x32xf32, #tpu.memory_space<vmem>>, vector<1x2x32xf32>
    %254 = vector.shape_cast %253 : vector<1x2x32xf32> to vector<2x32xf32>
    %cst_100 = arith.constant dense<0.000000e+00> : vector<2x32xf32>
    %255 = tpu.matmul %251, %0, %cst_100 {dimension_numbers = #tpu.dot_dimension_numbers<[1], [0], [0], [1], [0, 0, 1, 1], [], []>} : vector<2x32xf32>, vector<32x32xf32>, vector<2x32xf32> -> vector<2x32xf32>
    %256 = arith.addf %254, %255 : vector<2x32xf32>
    %257 = arith.negf %256 : vector<2x32xf32>
    %258 = math.exp %257 : vector<2x32xf32>
    %cst_101 = arith.constant 1.000000e+00 : f32
    %259 = vector.broadcast %cst_101 : f32 to vector<2x32xf32>
    %260 = arith.addf %259, %258 : vector<2x32xf32>
    %261 = arith.divf %259, %260 : vector<2x32xf32>
    %262 = arith.index_cast %c6_i32 : i32 to index
    %c0_102 = arith.constant 0 : index
    %c0_103 = arith.constant 0 : index
    %263 = vector.load %arg2[%262, %c0_102, %c0_103] : memref<8x2x32xf32, #tpu.memory_space<vmem>>, vector<1x2x32xf32>
    %264 = vector.shape_cast %263 : vector<1x2x32xf32> to vector<2x32xf32>
    %cst_104 = arith.constant dense<0.000000e+00> : vector<2x32xf32>
    %265 = tpu.matmul %251, %1, %cst_104 {dimension_numbers = #tpu.dot_dimension_numbers<[1], [0], [0], [1], [0, 0, 1, 1], [], []>} : vector<2x32xf32>, vector<32x32xf32>, vector<2x32xf32> -> vector<2x32xf32>
    %266 = arith.addf %264, %265 : vector<2x32xf32>
    %267 = arith.negf %266 : vector<2x32xf32>
    %268 = math.exp %267 : vector<2x32xf32>
    %cst_105 = arith.constant 1.000000e+00 : f32
    %269 = vector.broadcast %cst_105 : f32 to vector<2x32xf32>
    %270 = arith.addf %269, %268 : vector<2x32xf32>
    %271 = arith.divf %269, %270 : vector<2x32xf32>
    %272 = arith.index_cast %c6_i32 : i32 to index
    %c0_106 = arith.constant 0 : index
    %c0_107 = arith.constant 0 : index
    %273 = vector.load %arg3[%272, %c0_106, %c0_107] : memref<8x2x32xf32, #tpu.memory_space<vmem>>, vector<1x2x32xf32>
    %274 = vector.shape_cast %273 : vector<1x2x32xf32> to vector<2x32xf32>
    %cst_108 = arith.constant dense<0.000000e+00> : vector<2x32xf32>
    %275 = tpu.matmul %251, %2, %cst_108 {dimension_numbers = #tpu.dot_dimension_numbers<[1], [0], [0], [1], [0, 0, 1, 1], [], []>} : vector<2x32xf32>, vector<32x32xf32>, vector<2x32xf32> -> vector<2x32xf32>
    %276 = arith.addf %274, %275 : vector<2x32xf32>
    %277 = math.tanh %276 : vector<2x32xf32>
    %278 = arith.index_cast %c6_i32 : i32 to index
    %c0_109 = arith.constant 0 : index
    %c0_110 = arith.constant 0 : index
    %279 = vector.load %arg4[%278, %c0_109, %c0_110] : memref<8x2x32xf32, #tpu.memory_space<vmem>>, vector<1x2x32xf32>
    %280 = vector.shape_cast %279 : vector<1x2x32xf32> to vector<2x32xf32>
    %cst_111 = arith.constant dense<0.000000e+00> : vector<2x32xf32>
    %281 = tpu.matmul %251, %3, %cst_111 {dimension_numbers = #tpu.dot_dimension_numbers<[1], [0], [0], [1], [0, 0, 1, 1], [], []>} : vector<2x32xf32>, vector<32x32xf32>, vector<2x32xf32> -> vector<2x32xf32>
    %282 = arith.addf %280, %281 : vector<2x32xf32>
    %283 = arith.negf %282 : vector<2x32xf32>
    %284 = math.exp %283 : vector<2x32xf32>
    %cst_112 = arith.constant 1.000000e+00 : f32
    %285 = vector.broadcast %cst_112 : f32 to vector<2x32xf32>
    %286 = arith.addf %285, %284 : vector<2x32xf32>
    %287 = arith.divf %285, %286 : vector<2x32xf32>
    %288 = arith.mulf %271, %249 : vector<2x32xf32>
    %289 = arith.mulf %261, %277 : vector<2x32xf32>
    %290 = arith.addf %288, %289 : vector<2x32xf32>
    %291 = math.tanh %290 : vector<2x32xf32>
    %292 = arith.mulf %287, %291 : vector<2x32xf32>
    %c7_i32 = arith.constant 7 : i32
    %293 = arith.index_cast %c7_i32 : i32 to index
    %c0_113 = arith.constant 0 : index
    %c0_114 = arith.constant 0 : index
    %294 = vector.load %arg1[%293, %c0_113, %c0_114] : memref<8x2x32xf32, #tpu.memory_space<vmem>>, vector<1x2x32xf32>
    %295 = vector.shape_cast %294 : vector<1x2x32xf32> to vector<2x32xf32>
    %cst_115 = arith.constant dense<0.000000e+00> : vector<2x32xf32>
    %296 = tpu.matmul %292, %0, %cst_115 {dimension_numbers = #tpu.dot_dimension_numbers<[1], [0], [0], [1], [0, 0, 1, 1], [], []>} : vector<2x32xf32>, vector<32x32xf32>, vector<2x32xf32> -> vector<2x32xf32>
    %297 = arith.addf %295, %296 : vector<2x32xf32>
    %298 = arith.negf %297 : vector<2x32xf32>
    %299 = math.exp %298 : vector<2x32xf32>
    %cst_116 = arith.constant 1.000000e+00 : f32
    %300 = vector.broadcast %cst_116 : f32 to vector<2x32xf32>
    %301 = arith.addf %300, %299 : vector<2x32xf32>
    %302 = arith.divf %300, %301 : vector<2x32xf32>
    %303 = arith.index_cast %c7_i32 : i32 to index
    %c0_117 = arith.constant 0 : index
    %c0_118 = arith.constant 0 : index
    %304 = vector.load %arg2[%303, %c0_117, %c0_118] : memref<8x2x32xf32, #tpu.memory_space<vmem>>, vector<1x2x32xf32>
    %305 = vector.shape_cast %304 : vector<1x2x32xf32> to vector<2x32xf32>
    %cst_119 = arith.constant dense<0.000000e+00> : vector<2x32xf32>
    %306 = tpu.matmul %292, %1, %cst_119 {dimension_numbers = #tpu.dot_dimension_numbers<[1], [0], [0], [1], [0, 0, 1, 1], [], []>} : vector<2x32xf32>, vector<32x32xf32>, vector<2x32xf32> -> vector<2x32xf32>
    %307 = arith.addf %305, %306 : vector<2x32xf32>
    %308 = arith.negf %307 : vector<2x32xf32>
    %309 = math.exp %308 : vector<2x32xf32>
    %cst_120 = arith.constant 1.000000e+00 : f32
    %310 = vector.broadcast %cst_120 : f32 to vector<2x32xf32>
    %311 = arith.addf %310, %309 : vector<2x32xf32>
    %312 = arith.divf %310, %311 : vector<2x32xf32>
    %313 = arith.index_cast %c7_i32 : i32 to index
    %c0_121 = arith.constant 0 : index
    %c0_122 = arith.constant 0 : index
    %314 = vector.load %arg3[%313, %c0_121, %c0_122] : memref<8x2x32xf32, #tpu.memory_space<vmem>>, vector<1x2x32xf32>
    %315 = vector.shape_cast %314 : vector<1x2x32xf32> to vector<2x32xf32>
    %cst_123 = arith.constant dense<0.000000e+00> : vector<2x32xf32>
    %316 = tpu.matmul %292, %2, %cst_123 {dimension_numbers = #tpu.dot_dimension_numbers<[1], [0], [0], [1], [0, 0, 1, 1], [], []>} : vector<2x32xf32>, vector<32x32xf32>, vector<2x32xf32> -> vector<2x32xf32>
    %317 = arith.addf %315, %316 : vector<2x32xf32>
    %318 = math.tanh %317 : vector<2x32xf32>
    %319 = arith.index_cast %c7_i32 : i32 to index
    %c0_124 = arith.constant 0 : index
    %c0_125 = arith.constant 0 : index
    %320 = vector.load %arg4[%319, %c0_124, %c0_125] : memref<8x2x32xf32, #tpu.memory_space<vmem>>, vector<1x2x32xf32>
    %321 = vector.shape_cast %320 : vector<1x2x32xf32> to vector<2x32xf32>
    %cst_126 = arith.constant dense<0.000000e+00> : vector<2x32xf32>
    %322 = tpu.matmul %292, %3, %cst_126 {dimension_numbers = #tpu.dot_dimension_numbers<[1], [0], [0], [1], [0, 0, 1, 1], [], []>} : vector<2x32xf32>, vector<32x32xf32>, vector<2x32xf32> -> vector<2x32xf32>
    %323 = arith.addf %321, %322 : vector<2x32xf32>
    %324 = arith.negf %323 : vector<2x32xf32>
    %325 = math.exp %324 : vector<2x32xf32>
    %cst_127 = arith.constant 1.000000e+00 : f32
    %326 = vector.broadcast %cst_127 : f32 to vector<2x32xf32>
    %327 = arith.addf %326, %325 : vector<2x32xf32>
    %328 = arith.divf %326, %327 : vector<2x32xf32>
    %329 = arith.mulf %312, %290 : vector<2x32xf32>
    %330 = arith.mulf %302, %318 : vector<2x32xf32>
    %331 = arith.addf %329, %330 : vector<2x32xf32>
    %332 = math.tanh %331 : vector<2x32xf32>
    %333 = arith.mulf %328, %332 : vector<2x32xf32>
    %c8_i32 = arith.constant 8 : i32
    %c0_128 = arith.constant 0 : index
    %c0_129 = arith.constant 0 : index
    %334 = vector.load %arg9[%c0_128, %c0_129] : memref<32x2xf32, #tpu.memory_space<vmem>>, vector<32x2xf32>
    %cst_130 = arith.constant dense<0.000000e+00> : vector<2x2xf32>
    %335 = tpu.matmul %333, %334, %cst_130 {dimension_numbers = #tpu.dot_dimension_numbers<[1], [0], [0], [1], [0, 0, 1, 1], [], []>} : vector<2x32xf32>, vector<32x2xf32>, vector<2x2xf32> -> vector<2x2xf32>
    %c0_131 = arith.constant 0 : index
    %c0_132 = arith.constant 0 : index
    %336 = vector.load %arg10[%c0_131, %c0_132] : memref<1x2xf32, #tpu.memory_space<vmem>>, vector<1x2xf32>
    %337 = vector.broadcast %336 : vector<1x2xf32> to vector<2x2xf32>
    %338 = arith.addf %335, %337 : vector<2x2xf32>
    %c0_133 = arith.constant 0 : index
    %c0_134 = arith.constant 0 : index
    %339 = vector.load %arg11[%c0_133, %c0_134] : memref<2x2xf32, #tpu.memory_space<vmem>>, vector<2x2xf32>
    tpu.vector_store %arg11[%c0_133, %c0_134], %338 {strides = array<i32>} : memref<2x2xf32, #tpu.memory_space<vmem>>, vector<2x2xf32>,
    return
  }
  func.func @transform_0(%arg0: i32) -> (i32, i32, i32) {
    %c0_i32 = arith.constant 0 : i32
    %c0_i32_0 = arith.constant 0 : i32
    %c0_i32_1 = arith.constant 0 : i32
    %c0_i32_2 = arith.constant 0 : i32
    return %c0_i32, %c0_i32_0, %c0_i32_1 : i32, i32, i32
  }
  func.func @transform_1(%arg0: i32) -> (i32, i32, i32) {
    %c0_i32 = arith.constant 0 : i32
    %c0_i32_0 = arith.constant 0 : i32
    %c0_i32_1 = arith.constant 0 : i32
    %c0_i32_2 = arith.constant 0 : i32
    return %c0_i32, %c0_i32_0, %c0_i32_1 : i32, i32, i32
  }
  func.func @transform_2(%arg0: i32) -> (i32, i32, i32) {
    %c0_i32 = arith.constant 0 : i32
    %c0_i32_0 = arith.constant 0 : i32
    %c0_i32_1 = arith.constant 0 : i32
    %c0_i32_2 = arith.constant 0 : i32
    return %c0_i32, %c0_i32_0, %c0_i32_1 : i32, i32, i32
  }
  func.func @transform_3(%arg0: i32) -> (i32, i32, i32) {
    %c0_i32 = arith.constant 0 : i32
    %c0_i32_0 = arith.constant 0 : i32
    %c0_i32_1 = arith.constant 0 : i32
    %c0_i32_2 = arith.constant 0 : i32
    return %c0_i32, %c0_i32_0, %c0_i32_1 : i32, i32, i32
  }
  func.func @transform_4(%arg0: i32) -> (i32, i32) {
    %c0_i32 = arith.constant 0 : i32
    %c0_i32_0 = arith.constant 0 : i32
    %c0_i32_1 = arith.constant 0 : i32
    return %c0_i32, %c0_i32_0 : i32, i32
  }
  func.func @transform_5(%arg0: i32) -> (i32, i32) {
    %c0_i32 = arith.constant 0 : i32
    %c0_i32_0 = arith.constant 0 : i32
    %c0_i32_1 = arith.constant 0 : i32
    return %c0_i32, %c0_i32_0 : i32, i32
  }
  func.func @transform_6(%arg0: i32) -> (i32, i32) {
    %c0_i32 = arith.constant 0 : i32
    %c0_i32_0 = arith.constant 0 : i32
    %c0_i32_1 = arith.constant 0 : i32
    return %c0_i32, %c0_i32_0 : i32, i32
  }
  func.func @transform_7(%arg0: i32) -> (i32, i32) {
    %c0_i32 = arith.constant 0 : i32
    %c0_i32_0 = arith.constant 0 : i32
    %c0_i32_1 = arith.constant 0 : i32
    return %c0_i32, %c0_i32_0 : i32, i32
  }
  func.func @transform_8(%arg0: i32) -> (i32, i32) {
    %c0_i32 = arith.constant 0 : i32
    %c0_i32_0 = arith.constant 0 : i32
    %c0_i32_1 = arith.constant 0 : i32
    return %c0_i32, %c0_i32_0 : i32, i32
  }
  func.func @transform_9(%arg0: i32) -> (i32, i32) {
    %c0_i32 = arith.constant 0 : i32
    %c0_i32_0 = arith.constant 0 : i32
    %c0_i32_1 = arith.constant 0 : i32
    return %c0_i32, %c0_i32_0 : i32, i32
  }
  func.func @transform_10(%arg0: i32) -> (i32, i32) {
    %c0_i32 = arith.constant 0 : i32
    %c0_i32_0 = arith.constant 0 : i32
    %c0_i32_1 = arith.constant 0 : i32
    return %c0_i32, %c0_i32_0 : i32, i32
  }
}

</mosaic_0001>

<llo_original>
// kernel: tpu_custom_call.1
$region0: #{tpu_custom_call.1}
  #allocation0 [shape = 'u32[]', space=smem, size = 0x4, offset = 0x4, fixed_abs, tag = 'smem constant byte address 0x4 - core index']
  #allocation1 [shape = 'u32[144,128]{1,0:T(1,128)}', space=vmem, size = 0x12000, scoped, tag = 'internal scratch']
  %s0 = inlined_call_operand.vmem [shape: f32[8,2,32], index: 0, kind: input, shape index: {}]
  %s1 = inlined_call_operand.hbm [shape: f32[8,2,32], index: 1, kind: input, shape index: {}]
  %s2 = inlined_call_operand.hbm [shape: f32[8,2,32], index: 2, kind: input, shape index: {}]
  %s3 = inlined_call_operand.hbm [shape: f32[8,2,32], index: 3, kind: input, shape index: {}]
  %s4 = inlined_call_operand.vmem [shape: f32[32,32], index: 4, kind: input, shape index: {}]
  %s5 = inlined_call_operand.hbm [shape: f32[32,32], index: 5, kind: input, shape index: {}]
  %s6 = inlined_call_operand.hbm [shape: f32[32,32], index: 6, kind: input, shape index: {}]
  %s7 = inlined_call_operand.hbm [shape: f32[32,32], index: 7, kind: input, shape index: {}]
  %s8 = inlined_call_operand.vmem [shape: f32[32,2], index: 8, kind: input, shape index: {}]
  %s9 = inlined_call_operand.vmem [shape: f32[1,2], index: 9, kind: input, shape index: {}]
  %s10 = inlined_call_operand.hbm [shape: f32[2,2], index: 10, kind: output, shape index: {}]
  %s11 = sld [smem:[#allocation0]]
  $region74: #{tpu_custom_call.1} parent=0
    _
  %s13 = ssub.s32 1, %s11
  %s14 = scalar_select 0, %s13, %s11
  $region1: #{tpu_custom_call.1} parent=0
    #allocation2 [shape = 'u8[8192]{0}', space=vmem, size = 0x2000, scoped, tag = 'input window, operand 1, single buffered']
    #allocation3 [shape = 's32[1]{0}', space=sflag, size = 0x4, scoped, tag = 'scoped memory for tpu_custom_call.1']
    #allocation4 [shape = 's32[1]{0}', space=sflag, size = 0x4, scoped, tag = 'scoped memory for tpu_custom_call.1']
    #allocation5 [shape = 'u8[8192]{0}', space=vmem, size = 0x2000, scoped, tag = 'input window, operand 2, single buffered']
    #allocation6 [shape = 's32[1]{0}', space=sflag, size = 0x4, scoped, tag = 'scoped memory for tpu_custom_call.1']
    #allocation7 [shape = 'u8[8192]{0}', space=vmem, size = 0x2000, scoped, tag = 'input window, operand 3, single buffered']
    #allocation8 [shape = 'u8[16384]{0}', space=vmem, size = 0x4000, scoped, tag = 'input window, operand 5, single buffered']
    #allocation9 [shape = 's32[1]{0}', space=sflag, size = 0x4, scoped, tag = 'scoped memory for tpu_custom_call.1']
    #allocation10 [shape = 'u8[16384]{0}', space=vmem, size = 0x4000, scoped, tag = 'input window, operand 6, single buffered']
    #allocation11 [shape = 'u8[16384]{0}', space=vmem, size = 0x4000, scoped, tag = 'input window, operand 7, single buffered']
    #allocation12 [shape = 's32[1]{0}', space=sflag, size = 0x4, scoped, tag = 'scoped memory for tpu_custom_call.1']
    #allocation13 [shape = 'u8[1024]{0}', space=vmem, size = 0x400, scoped, tag = 'output window, operand 0, single buffered']
    %15 = vsyncpa [#allocation3], 0
    %16 = vsyncpa [#allocation6], 0
    %17 = vsyncpa [#allocation9], 0
    %18 = vsyncpa [#allocation12], 0
    %19 = vsyncpa [#allocation4], 0
    // Predicated region
    $region2: #{tpu_custom_call.1} parent=1 // pred_check
      _
    $region3: #{tpu_custom_call.1} parent=1 // pred_check_branch
      %21 = sbr.rel (0) target = $region5
    $region4: #{tpu_custom_call.1} parent=1 // pred_region
      _
    $region5: #{tpu_custom_call.1} parent=1 // pred_fallthru
      _
    // Predicated region
    $region6: #{tpu_custom_call.1} parent=1 // pred_check
      _
    $region7: #{tpu_custom_call.1} parent=1 // pred_check_branch
      %23 = sbr.rel (0) target = $region9
    $region8: #{tpu_custom_call.1} parent=1 // pred_region
      %s25 = ssub.s32 256, 256
      %26 = vsyncadd [#allocation3], %s25
      %s27 = sshll.u32 [#allocation2], 4
      %s28 = int_to_ptr.vmem [resolvable:$true] %s27
      %33 = dma.hbm_to_vmem [thread:$0]  %s1, 256, %s28, [#allocation3], 32, 32, 2
    $region9: #{tpu_custom_call.1} parent=1 // pred_fallthru
      _
    // Predicated region
    $region10: #{tpu_custom_call.1} parent=1 // pred_check
      _
    $region11: #{tpu_custom_call.1} parent=1 // pred_check_branch
      %35 = sbr.rel (0) target = $region13
    $region12: #{tpu_custom_call.1} parent=1 // pred_region
      %s37 = ssub.s32 256, 256
      %38 = vsyncadd [#allocation6], %s37
      %s39 = sshll.u32 [#allocation5], 4
      %s40 = int_to_ptr.vmem [resolvable:$true] %s39
      %45 = dma.hbm_to_vmem [thread:$0]  %s2, 256, %s40, [#allocation6], 32, 32, 2
    $region13: #{tpu_custom_call.1} parent=1 // pred_fallthru
      _
    // Predicated region
    $region14: #{tpu_custom_call.1} parent=1 // pred_check
      _
    $region15: #{tpu_custom_call.1} parent=1 // pred_check_branch
      %47 = sbr.rel (0) target = $region17
    $region16: #{tpu_custom_call.1} parent=1 // pred_region
      %s49 = ssub.s32 256, 256
      %50 = vsyncadd [#allocation6], %s49
      %s51 = sshll.u32 [#allocation7], 4
      %s52 = int_to_ptr.vmem [resolvable:$true] %s51
      %57 = dma.hbm_to_vmem [thread:$0]  %s3, 256, %s52, [#allocation6], 32, 32, 2
    $region17: #{tpu_custom_call.1} parent=1 // pred_fallthru
      _
    // Predicated region
    $region18: #{tpu_custom_call.1} parent=1 // pred_check
      _
    $region19: #{tpu_custom_call.1} parent=1 // pred_check_branch
      %59 = sbr.rel (0) target = $region21
    $region20: #{tpu_custom_call.1} parent=1 // pred_region
      _
    $region21: #{tpu_custom_call.1} parent=1 // pred_fallthru
      _
    // Predicated region
    $region22: #{tpu_custom_call.1} parent=1 // pred_check
      _
    $region23: #{tpu_custom_call.1} parent=1 // pred_check_branch
      %61 = sbr.rel (0) target = $region25
    $region24: #{tpu_custom_call.1} parent=1 // pred_region
      %s63 = ssub.s32 512, 512
      %64 = vsyncadd [#allocation9], %s63
      %s65 = sshll.u32 [#allocation8], 4
      %s66 = int_to_ptr.vmem [resolvable:$true] %s65
      %71 = dma.hbm_to_vmem [thread:$0]  %s5, 512, %s66, [#allocation9], 128, 128, 8
    $region25: #{tpu_custom_call.1} parent=1 // pred_fallthru
      _
    // Predicated region
    $region26: #{tpu_custom_call.1} parent=1 // pred_check
      _
    $region27: #{tpu_custom_call.1} parent=1 // pred_check_branch
      %73 = sbr.rel (0) target = $region29
    $region28: #{tpu_custom_call.1} parent=1 // pred_region
      %s75 = ssub.s32 512, 512
      %76 = vsyncadd [#allocation9], %s75
      %s77 = sshll.u32 [#allocation10], 4
      %s78 = int_to_ptr.vmem [resolvable:$true] %s77
      %83 = dma.hbm_to_vmem [thread:$0]  %s6, 512, %s78, [#allocation9], 128, 128, 8
    $region29: #{tpu_custom_call.1} parent=1 // pred_fallthru
      _
    // Predicated region
    $region30: #{tpu_custom_call.1} parent=1 // pred_check
      _
    $region31: #{tpu_custom_call.1} parent=1 // pred_check_branch
      %85 = sbr.rel (0) target = $region33
    $region32: #{tpu_custom_call.1} parent=1 // pred_region
      %s87 = ssub.s32 512, 512
      %88 = vsyncadd [#allocation12], %s87
      %s89 = sshll.u32 [#allocation11], 4
      %s90 = int_to_ptr.vmem [resolvable:$true] %s89
      %95 = dma.hbm_to_vmem [thread:$0]  %s7, 512, %s90, [#allocation12], 128, 128, 8
    $region33: #{tpu_custom_call.1} parent=1 // pred_fallthru
      _
    // Predicated region
    $region34: #{tpu_custom_call.1} parent=1 // pred_check
      _
    $region35: #{tpu_custom_call.1} parent=1 // pred_check_branch
      %97 = sbr.rel (0) target = $region37
    $region36: #{tpu_custom_call.1} parent=1 // pred_region
      _
    $region37: #{tpu_custom_call.1} parent=1 // pred_fallthru
      _
    // Predicated region
    $region38: #{tpu_custom_call.1} parent=1 // pred_check
      _
    $region39: #{tpu_custom_call.1} parent=1 // pred_check_branch
      %99 = sbr.rel (0) target = $region41
    $region40: #{tpu_custom_call.1} parent=1 // pred_region
      _
    $region41: #{tpu_custom_call.1} parent=1 // pred_fallthru
      _
    // Predicated region
    $region42: #{tpu_custom_call.1} parent=1 // pred_check
      _
    $region43: #{tpu_custom_call.1} parent=1 // pred_check_branch
      %101 = sbr.rel (0) target = $region45
    $region44: #{tpu_custom_call.1} parent=1 // pred_region
      %102 = dma.done [#allocation3], 256
    $region45: #{tpu_custom_call.1} parent=1 // pred_fallthru
      _
    // Predicated region
    $region46: #{tpu_custom_call.1} parent=1 // pred_check
      _
    $region47: #{tpu_custom_call.1} parent=1 // pred_check_branch
      %104 = sbr.rel (0) target = $region49
    $region48: #{tpu_custom_call.1} parent=1 // pred_region
      %105 = dma.done [#allocation6], 256
    $region49: #{tpu_custom_call.1} parent=1 // pred_fallthru
      _
    // Predicated region
    $region50: #{tpu_custom_call.1} parent=1 // pred_check
      _
    $region51: #{tpu_custom_call.1} parent=1 // pred_check_branch
      %107 = sbr.rel (0) target = $region53
    $region52: #{tpu_custom_call.1} parent=1 // pred_region
      %108 = dma.done [#allocation6], 256
    $region53: #{tpu_custom_call.1} parent=1 // pred_fallthru
      _
    // Predicated region
    $region54: #{tpu_custom_call.1} parent=1 // pred_check
      _
    $region55: #{tpu_custom_call.1} parent=1 // pred_check_branch
      %110 = sbr.rel (0) target = $region57
    $region56: #{tpu_custom_call.1} parent=1 // pred_region
      %111 = dma.done [#allocation9], 512
    $region57: #{tpu_custom_call.1} parent=1 // pred_fallthru
      _
    // Predicated region
    $region58: #{tpu_custom_call.1} parent=1 // pred_check
      _
    $region59: #{tpu_custom_call.1} parent=1 // pred_check_branch
      %113 = sbr.rel (0) target = $region61
    $region60: #{tpu_custom_call.1} parent=1 // pred_region
      %114 = dma.done [#allocation9], 512
    $region61: #{tpu_custom_call.1} parent=1 // pred_fallthru
      _
    // Predicated region
    $region62: #{tpu_custom_call.1} parent=1 // pred_check
      _
    $region63: #{tpu_custom_call.1} parent=1 // pred_check_branch
      %116 = sbr.rel (0) target = $region65
    $region64: #{tpu_custom_call.1} parent=1 // pred_region
      %117 = dma.done [#allocation12], 512
    $region65: #{tpu_custom_call.1} parent=1 // pred_fallthru
      _
    %v118 = vld [vmem:[%s4] sm:$0xff]
    %v119 = vld [vmem:[%s4 + $0x8] sm:$0xff]
    %v120 = vld [vmem:[%s4 + $0x10] sm:$0xff]
    %v121 = vld [vmem:[%s4 + $0x18] sm:$0xff]
    %v122 = vld [vmem:[#allocation8] sm:$0xff]
    %v123 = vld [vmem:[#allocation8 + $0x8] sm:$0xff]
    %v124 = vld [vmem:[#allocation8 + $0x10] sm:$0xff]
    %v125 = vld [vmem:[#allocation8 + $0x18] sm:$0xff]
    %v126 = vld [vmem:[#allocation10] sm:$0xff]
    %v127 = vld [vmem:[#allocation10 + $0x8] sm:$0xff]
    %v128 = vld [vmem:[#allocation10 + $0x10] sm:$0xff]
    %v129 = vld [vmem:[#allocation10 + $0x18] sm:$0xff]
    %v130 = vld [vmem:[#allocation11] sm:$0xff]
    %v131 = vld [vmem:[#allocation11 + $0x8] sm:$0xff]
    %v132 = vld [vmem:[#allocation11 + $0x10] sm:$0xff]
    %v133 = vld [vmem:[#allocation11 + $0x18] sm:$0xff]
    %v134 = vld [vmem:[%s0] sm:$0x3]
    %vm135 = vcmask 261120
    %v137 = vsel %vm135, 0.0, 0
    %139 = vmatprep.subr.mxu0 0.0
    %140 = vmatpush1.msra.mxu0 %v118
    %141 = vmatprep.subr.mxu0 0.0
    %142 = vmatpush1.msra.mxu0 %v119
    %143 = vmatprep.subr.mxu0 0.0
    %144 = vmatpush1.msra.mxu0 %v120
    %145 = vmatprep.subr.mxu0 0.0
    %146 = vmatpush1.msra.mxu0 %v121
    %147 = vmatprep.subr.mxu0 0.0
    %148 = vmatpush1.msra.mxu0 0.0
    %149 = vmatprep.subr.mxu0 0.0
    %150 = vmatpush1.msra.mxu0 0.0
    %151 = vmatprep.subr.mxu0 0.0
    %152 = vmatpush1.msra.mxu0 0.0
    %153 = vmatprep.subr.mxu0 0.0
    %154 = vmatpush1.msra.mxu0 0.0
    %155 = vmatprep.subr.mxu0 0.0
    %156 = vmatpush1.msra.mxu0 0.0
    %157 = vmatprep.subr.mxu0 0.0
    %158 = vmatpush1.msra.mxu0 0.0
    %159 = vmatprep.subr.mxu0 0.0
    %160 = vmatpush1.msra.mxu0 0.0
    %161 = vmatprep.subr.mxu0 0.0
    %162 = vmatpush1.msra.mxu0 0.0
    %163 = vmatprep.subr.mxu0 0.0
    %164 = vmatpush1.msra.mxu0 0.0
    %165 = vmatprep.subr.mxu0 0.0
    %166 = vmatpush1.msra.mxu0 0.0
    %167 = vmatprep.subr.mxu0 0.0
    %168 = vmatpush1.msra.mxu0 0.0
    %169 = vmatprep.subr.mxu0 0.0
    %170 = vmatpush1.msra.mxu0 0.0
    %171 = vmatprep.subr.mxu0 0.0
    %172 = vmatpush1.msra.mxu0 0.0
    %173 = vmatprep.subr.mxu0 0.0
    %174 = vmatpush1.msra.mxu0 0.0
    %175 = vmatprep.subr.mxu0 0.0
    %176 = vmatpush1.msra.mxu0 0.0
    %177 = vmatprep.subr.mxu0 0.0
    %178 = vmatpush1.msra.mxu0 0.0
    %179 = vmatprep.subr.mxu0 0.0
    %180 = vmatpush1.msra.mxu0 0.0
    %181 = vmatprep.subr.mxu0 0.0
    %182 = vmatpush1.msra.mxu0 0.0
    %183 = vmatprep.subr.mxu0 0.0
    %184 = vmatpush1.msra.mxu0 0.0
    %185 = vmatprep.subr.mxu0 0.0
    %186 = vmatpush1.msra.mxu0 0.0
    %187 = vmatprep.subr.mxu0 0.0
    %188 = vmatpush1.msra.mxu0 0.0
    %189 = vmatprep.subr.mxu0 0.0
    %190 = vmatpush1.msra.mxu0 0.0
    %191 = vmatprep.subr.mxu0 0.0
    %192 = vmatpush1.msra.mxu0 0.0
    %193 = vmatprep.subr.mxu0 0.0
    %194 = vmatpush1.msra.mxu0 0.0
    %195 = vmatprep.subr.mxu0 0.0
    %196 = vmatpush1.msra.mxu0 0.0
    %197 = vmatprep.subr.mxu0 0.0
    %198 = vmatpush1.msra.mxu0 0.0
    %199 = vmatprep.subr.mxu0 0.0
    %200 = vmatpush1.msra.mxu0 0.0
    %201 = vmatprep.subr.mxu0 0.0
    %202 = vmatpush1.msra.mxu0 0.0
    %203 = vmatprep.mubr.f32.mxu0 0.0
    %204 = vmatmul.mubr.f32.gmra.mrb[0].mxu0 %v137
    %v205 = vpop.f32.mrb[0].mxu0
    %v206 = vadd.f32 0.0, %v205
    %v207 = vpop.f32.mrb[0].mxu0
    %208 = vdwg.mxu0
    %v209 = vadd.f32 %v134, %v206
    %v210 = vxor.u32 %v209, 2147483648
    %v211 = vmul.f32 %v210, 1.442695
    %v212 = vpow.pop %v211
    %v213 = vadd.f32 %v212, 1.0
    %v214 = vrcp.pop %v213
    %v215 = vmul.f32 1.0, %v214
    %v216 = vld [vmem:[#allocation2] sm:$0x3]
    %217 = vmatprep.subr.mxu0 0.0
    %218 = vmatpush1.msra.mxu0 %v122
    %219 = vmatprep.subr.mxu0 0.0
    %220 = vmatpush1.msra.mxu0 %v123
    %221 = vmatprep.subr.mxu0 0.0
    %222 = vmatpush1.msra.mxu0 %v124
    %223 = vmatprep.subr.mxu0 0.0
    %224 = vmatpush1.msra.mxu0 %v125
    %225 = vmatprep.subr.mxu0 0.0
    %226 = vmatpush1.msra.mxu0 0.0
    %227 = vmatprep.subr.mxu0 0.0
    %228 = vmatpush1.msra.mxu0 0.0
    %229 = vmatprep.subr.mxu0 0.0
    %230 = vmatpush1.msra.mxu0 0.0
    %231 = vmatprep.subr.mxu0 0.0
    %232 = vmatpush1.msra.mxu0 0.0
    %233 = vmatprep.subr.mxu0 0.0
    %234 = vmatpush1.msra.mxu0 0.0
    %235 = vmatprep.subr.mxu0 0.0
    %236 = vmatpush1.msra.mxu0 0.0
    %237 = vmatprep.subr.mxu0 0.0
    %238 = vmatpush1.msra.mxu0 0.0
    %239 = vmatprep.subr.mxu0 0.0
    %240 = vmatpush1.msra.mxu0 0.0
    %241 = vmatprep.subr.mxu0 0.0
    %242 = vmatpush1.msra.mxu0 0.0
    %243 = vmatprep.subr.mxu0 0.0
    %244 = vmatpush1.msra.mxu0 0.0
    %245 = vmatprep.subr.mxu0 0.0
    %246 = vmatpush1.msra.mxu0 0.0
    %247 = vmatprep.subr.mxu0 0.0
    %248 = vmatpush1.msra.mxu0 0.0
    %249 = vmatprep.subr.mxu0 0.0
    %250 = vmatpush1.msra.mxu0 0.0
    %251 = vmatprep.subr.mxu0 0.0
    %252 = vmatpush1.msra.mxu0 0.0
    %253 = vmatprep.subr.mxu0 0.0
    %254 = vmatpush1.msra.mxu0 0.0
    %255 = vmatprep.subr.mxu0 0.0
    %256 = vmatpush1.msra.mxu0 0.0
    %257 = vmatprep.subr.mxu0 0.0
    %258 = vmatpush1.msra.mxu0 0.0
    %259 = vmatprep.subr.mxu0 0.0
    %260 = vmatpush1.msra.mxu0 0.0
    %261 = vmatprep.subr.mxu0 0.0
    %262 = vmatpush1.msra.mxu0 0.0
    %263 = vmatprep.subr.mxu0 0.0
    %264 = vmatpush1.msra.mxu0 0.0
    %265 = vmatprep.subr.mxu0 0.0
    %266 = vmatpush1.msra.mxu0 0.0
    %267 = vmatprep.subr.mxu0 0.0
    %268 = vmatpush1.msra.mxu0 0.0
    %269 = vmatprep.subr.mxu0 0.0
    %270 = vmatpush1.msra.mxu0 0.0
    %271 = vmatprep.subr.mxu0 0.0
    %272 = vmatpush1.msra.mxu0 0.0
    %273 = vmatprep.subr.mxu0 0.0
    %274 = vmatpush1.msra.mxu0 0.0
    %275 = vmatprep.subr.mxu0 0.0
    %276 = vmatpush1.msra.mxu0 0.0
    %277 = vmatprep.subr.mxu0 0.0
    %278 = vmatpush1.msra.mxu0 0.0
    %279 = vmatprep.subr.mxu0 0.0
    %280 = vmatpush1.msra.mxu0 0.0
    %281 = vmatprep.mubr.f32.mxu0 0.0
    %282 = vmatmul.mubr.f32.gmra.mrb[0].mxu0 %v137
    %v283 = vpop.f32.mrb[0].mxu0
    %v284 = vadd.f32 0.0, %v283
    %v285 = vpop.f32.mrb[0].mxu0
    %286 = vdwg.mxu0
    %v287 = vadd.f32 %v216, %v284
    %v288 = vxor.u32 %v287, 2147483648
    %v289 = vmul.f32 %v288, 1.442695
    %v290 = vpow.pop %v289
    %v291 = vadd.f32 %v290, 1.0
    %v292 = vrcp.pop %v291
    %v293 = vmul.f32 1.0, %v292
    %v294 = vld [vmem:[#allocation5] sm:$0x3]
    %295 = vmatprep.subr.mxu0 0.0
    %296 = vmatpush1.msra.mxu0 %v126
    %297 = vmatprep.subr.mxu0 0.0
    %298 = vmatpush1.msra.mxu0 %v127
    %299 = vmatprep.subr.mxu0 0.0
    %300 = vmatpush1.msra.mxu0 %v128
    %301 = vmatprep.subr.mxu0 0.0
    %302 = vmatpush1.msra.mxu0 %v129
    %303 = vmatprep.subr.mxu0 0.0
    %304 = vmatpush1.msra.mxu0 0.0
    %305 = vmatprep.subr.mxu0 0.0
    %306 = vmatpush1.msra.mxu0 0.0
    %307 = vmatprep.subr.mxu0 0.0
    %308 = vmatpush1.msra.mxu0 0.0
    %309 = vmatprep.subr.mxu0 0.0
    %310 = vmatpush1.msra.mxu0 0.0
    %311 = vmatprep.subr.mxu0 0.0
    %312 = vmatpush1.msra.mxu0 0.0
    %313 = vmatprep.subr.mxu0 0.0
    %314 = vmatpush1.msra.mxu0 0.0
    %315 = vmatprep.subr.mxu0 0.0
    %316 = vmatpush1.msra.mxu0 0.0
    %317 = vmatprep.subr.mxu0 0.0
    %318 = vmatpush1.msra.mxu0 0.0
    %319 = vmatprep.subr.mxu0 0.0
    %320 = vmatpush1.msra.mxu0 0.0
    %321 = vmatprep.subr.mxu0 0.0
    %322 = vmatpush1.msra.mxu0 0.0
    %323 = vmatprep.subr.mxu0 0.0
    %324 = vmatpush1.msra.mxu0 0.0
    %325 = vmatprep.subr.mxu0 0.0
    %326 = vmatpush1.msra.mxu0 0.0
    %327 = vmatprep.subr.mxu0 0.0
    %328 = vmatpush1.msra.mxu0 0.0
    %329 = vmatprep.subr.mxu0 0.0
    %330 = vmatpush1.msra.mxu0 0.0
    %331 = vmatprep.subr.mxu0 0.0
    %332 = vmatpush1.msra.mxu0 0.0
    %333 = vmatprep.subr.mxu0 0.0
    %334 = vmatpush1.msra.mxu0 0.0
    %335 = vmatprep.subr.mxu0 0.0
    %336 = vmatpush1.msra.mxu0 0.0
    %337 = vmatprep.subr.mxu0 0.0
    %338 = vmatpush1.msra.mxu0 0.0
    %339 = vmatprep.subr.mxu0 0.0
    %340 = vmatpush1.msra.mxu0 0.0
    %341 = vmatprep.subr.mxu0 0.0
    %342 = vmatpush1.msra.mxu0 0.0
    %343 = vmatprep.subr.mxu0 0.0
    %344 = vmatpush1.msra.mxu0 0.0
    %345 = vmatprep.subr.mxu0 0.0
    %346 = vmatpush1.msra.mxu0 0.0
    %347 = vmatprep.subr.mxu0 0.0
    %348 = vmatpush1.msra.mxu0 0.0
    %349 = vmatprep.subr.mxu0 0.0
    %350 = vmatpush1.msra.mxu0 0.0
    %351 = vmatprep.subr.mxu0 0.0
    %352 = vmatpush1.msra.mxu0 0.0
    %353 = vmatprep.subr.mxu0 0.0
    %354 = vmatpush1.msra.mxu0 0.0
    %355 = vmatprep.subr.mxu0 0.0
    %356 = vmatpush1.msra.mxu0 0.0
    %357 = vmatprep.subr.mxu0 0.0
    %358 = vmatpush1.msra.mxu0 0.0
    %359 = vmatprep.mubr.f32.mxu0 0.0
    %360 = vmatmul.mubr.f32.gmra.mrb[0].mxu0 %v137
    %v361 = vpop.f32.mrb[0].mxu0
    %v362 = vadd.f32 0.0, %v361
    %v363 = vpop.f32.mrb[0].mxu0
    %364 = vdwg.mxu0
    %v365 = vadd.f32 %v294, %v362
    %v366 = vtanh.pop %v365
    %v367 = vld [vmem:[#allocation7] sm:$0x3]
    %368 = vmatprep.subr.mxu0 0.0
    %369 = vmatpush1.msra.mxu0 %v130
    %370 = vmatprep.subr.mxu0 0.0
    %371 = vmatpush1.msra.mxu0 %v131
    %372 = vmatprep.subr.mxu0 0.0
    %373 = vmatpush1.msra.mxu0 %v132
    %374 = vmatprep.subr.mxu0 0.0
    %375 = vmatpush1.msra.mxu0 %v133
    %376 = vmatprep.subr.mxu0 0.0
    %377 = vmatpush1.msra.mxu0 0.0
    %378 = vmatprep.subr.mxu0 0.0
    %379 = vmatpush1.msra.mxu0 0.0
    %380 = vmatprep.subr.mxu0 0.0
    %381 = vmatpush1.msra.mxu0 0.0
    %382 = vmatprep.subr.mxu0 0.0
    %383 = vmatpush1.msra.mxu0 0.0
    %384 = vmatprep.subr.mxu0 0.0
    %385 = vmatpush1.msra.mxu0 0.0
    %386 = vmatprep.subr.mxu0 0.0
    %387 = vmatpush1.msra.mxu0 0.0
    %388 = vmatprep.subr.mxu0 0.0
    %389 = vmatpush1.msra.mxu0 0.0
    %390 = vmatprep.subr.mxu0 0.0
    %391 = vmatpush1.msra.mxu0 0.0
    %392 = vmatprep.subr.mxu0 0.0
    %393 = vmatpush1.msra.mxu0 0.0
    %394 = vmatprep.subr.mxu0 0.0
    %395 = vmatpush1.msra.mxu0 0.0
    %396 = vmatprep.subr.mxu0 0.0
    %397 = vmatpush1.msra.mxu0 0.0
    %398 = vmatprep.subr.mxu0 0.0
    %399 = vmatpush1.msra.mxu0 0.0
    %400 = vmatprep.subr.mxu0 0.0
    %401 = vmatpush1.msra.mxu0 0.0
    %402 = vmatprep.subr.mxu0 0.0
    %403 = vmatpush1.msra.mxu0 0.0
    %404 = vmatprep.subr.mxu0 0.0
    %405 = vmatpush1.msra.mxu0 0.0
    %406 = vmatprep.subr.mxu0 0.0
    %407 = vmatpush1.msra.mxu0 0.0
    %408 = vmatprep.subr.mxu0 0.0
    %409 = vmatpush1.msra.mxu0 0.0
    %410 = vmatprep.subr.mxu0 0.0
    %411 = vmatpush1.msra.mxu0 0.0
    %412 = vmatprep.subr.mxu0 0.0
    %413 = vmatpush1.msra.mxu0 0.0
    %414 = vmatprep.subr.mxu0 0.0
    %415 = vmatpush1.msra.mxu0 0.0
    %416 = vmatprep.subr.mxu0 0.0
    %417 = vmatpush1.msra.mxu0 0.0
    %418 = vmatprep.subr.mxu0 0.0
    %419 = vmatpush1.msra.mxu0 0.0
    %420 = vmatprep.subr.mxu0 0.0
    %421 = vmatpush1.msra.mxu0 0.0
    %422 = vmatprep.subr.mxu0 0.0
    %423 = vmatpush1.msra.mxu0 0.0
    %424 = vmatprep.subr.mxu0 0.0
    %425 = vmatpush1.msra.mxu0 0.0
    %426 = vmatprep.subr.mxu0 0.0
    %427 = vmatpush1.msra.mxu0 0.0
    %428 = vmatprep.subr.mxu0 0.0
    %429 = vmatpush1.msra.mxu0 0.0
    %430 = vmatprep.subr.mxu0 0.0
    %431 = vmatpush1.msra.mxu0 0.0
    %432 = vmatprep.mubr.f32.mxu0 0.0
    %433 = vmatmul.mubr.f32.gmra.mrb[0].mxu0 %v137
    %v434 = vpop.f32.mrb[0].mxu0
    %v435 = vadd.f32 0.0, %v434
    %v436 = vpop.f32.mrb[0].mxu0
    %437 = vdwg.mxu0
    %v438 = vadd.f32 %v367, %v435
    %v439 = vxor.u32 %v438, 2147483648
    %v440 = vmul.f32 %v439, 1.442695
    %v441 = vpow.pop %v440
    %v442 = vadd.f32 %v441, 1.0
    %v443 = vrcp.pop %v442
    %v444 = vmul.f32 1.0, %v443
    %v445 = vmul.f32 %v293, 0.0
    %v446 = vmul.f32 %v215, %v366
    %v447 = vadd.f32 %v445, %v446
    %v448 = vtanh.pop %v447
    %v449 = vmul.f32 %v444, %v448
    %s450 = scalar_lea.vmem %s0, 2
    %v451 = vld [vmem:[%s450] sm:$0x3]
    %v453 = vsel %vm135, %v449, 0
    %455 = vmatprep.subr.mxu0 0.0
    %456 = vmatpush1.msra.mxu0 %v118
    %457 = vmatprep.subr.mxu0 0.0
    %458 = vmatpush1.msra.mxu0 %v119
    %459 = vmatprep.subr.mxu0 0.0
    %460 = vmatpush1.msra.mxu0 %v120
    %461 = vmatprep.subr.mxu0 0.0
    %462 = vmatpush1.msra.mxu0 %v121
    %463 = vmatprep.subr.mxu0 0.0
    %464 = vmatpush1.msra.mxu0 0.0
    %465 = vmatprep.subr.mxu0 0.0
    %466 = vmatpush1.msra.mxu0 0.0
    %467 = vmatprep.subr.mxu0 0.0
    %468 = vmatpush1.msra.mxu0 0.0
    %469 = vmatprep.subr.mxu0 0.0
    %470 = vmatpush1.msra.mxu0 0.0
    %471 = vmatprep.subr.mxu0 0.0
    %472 = vmatpush1.msra.mxu0 0.0
    %473 = vmatprep.subr.mxu0 0.0
    %474 = vmatpush1.msra.mxu0 0.0
    %475 = vmatprep.subr.mxu0 0.0
    %476 = vmatpush1.msra.mxu0 0.0
    %477 = vmatprep.subr.mxu0 0.0
    %478 = vmatpush1.msra.mxu0 0.0
    %479 = vmatprep.subr.mxu0 0.0
    %480 = vmatpush1.msra.mxu0 0.0
    %481 = vmatprep.subr.mxu0 0.0
    %482 = vmatpush1.msra.mxu0 0.0
    %483 = vmatprep.subr.mxu0 0.0
    %484 = vmatpush1.msra.mxu0 0.0
    %485 = vmatprep.subr.mxu0 0.0
    %486 = vmatpush1.msra.mxu0 0.0
    %487 = vmatprep.subr.mxu0 0.0
    %488 = vmatpush1.msra.mxu0 0.0
    %489 = vmatprep.subr.mxu0 0.0
    %490 = vmatpush1.msra.mxu0 0.0
    %491 = vmatprep.subr.mxu0 0.0
    %492 = vmatpush1.msra.mxu0 0.0
    %493 = vmatprep.subr.mxu0 0.0
    %494 = vmatpush1.msra.mxu0 0.0
    %495 = vmatprep.subr.mxu0 0.0
    %496 = vmatpush1.msra.mxu0 0.0
    %497 = vmatprep.subr.mxu0 0.0
    %498 = vmatpush1.msra.mxu0 0.0
    %499 = vmatprep.subr.mxu0 0.0
    %500 = vmatpush1.msra.mxu0 0.0
    %501 = vmatprep.subr.mxu0 0.0
    %502 = vmatpush1.msra.mxu0 0.0
    %503 = vmatprep.subr.mxu0 0.0
    %504 = vmatpush1.msra.mxu0 0.0
    %505 = vmatprep.subr.mxu0 0.0
    %506 = vmatpush1.msra.mxu0 0.0
    %507 = vmatprep.subr.mxu0 0.0
    %508 = vmatpush1.msra.mxu0 0.0
    %509 = vmatprep.subr.mxu0 0.0
    %510 = vmatpush1.msra.mxu0 0.0
    %511 = vmatprep.subr.mxu0 0.0
    %512 = vmatpush1.msra.mxu0 0.0
    %513 = vmatprep.subr.mxu0 0.0
    %514 = vmatpush1.msra.mxu0 0.0
    %515 = vmatprep.subr.mxu0 0.0
    %516 = vmatpush1.msra.mxu0 0.0
    %517 = vmatprep.subr.mxu0 0.0
    %518 = vmatpush1.msra.mxu0 0.0
    %519 = vmatprep.mubr.f32.mxu0 0.0
    %520 = vmatmul.mubr.f32.gmra.mrb[0].mxu0 %v453
    %v521 = vpop.f32.mrb[0].mxu0
    %v522 = vadd.f32 0.0, %v521
    %v523 = vpop.f32.mrb[0].mxu0
    %524 = vdwg.mxu0
    %v525 = vadd.f32 %v451, %v522
    %v526 = vxor.u32 %v525, 2147483648
    %v527 = vmul.f32 %v526, 1.442695
    %v528 = vpow.pop %v527
    %v529 = vadd.f32 %v528, 1.0
    %v530 = vrcp.pop %v529
    %v531 = vmul.f32 1.0, %v530
    %s532 = scalar_lea.vmem [#allocation2], 2
    %v533 = vld [vmem:[%s532] sm:$0x3]
    %534 = vmatprep.subr.mxu0 0.0
    %535 = vmatpush1.msra.mxu0 %v122
    %536 = vmatprep.subr.mxu0 0.0
    %537 = vmatpush1.msra.mxu0 %v123
    %538 = vmatprep.subr.mxu0 0.0
    %539 = vmatpush1.msra.mxu0 %v124
    %540 = vmatprep.subr.mxu0 0.0
    %541 = vmatpush1.msra.mxu0 %v125
    %542 = vmatprep.subr.mxu0 0.0
    %543 = vmatpush1.msra.mxu0 0.0
    %544 = vmatprep.subr.mxu0 0.0
    %545 = vmatpush1.msra.mxu0 0.0
    %546 = vmatprep.subr.mxu0 0.0
    %547 = vmatpush1.msra.mxu0 0.0
    %548 = vmatprep.subr.mxu0 0.0
    %549 = vmatpush1.msra.mxu0 0.0
    %550 = vmatprep.subr.mxu0 0.0
    %551 = vmatpush1.msra.mxu0 0.0
    %552 = vmatprep.subr.mxu0 0.0
    %553 = vmatpush1.msra.mxu0 0.0
    %554 = vmatprep.subr.mxu0 0.0
    %555 = vmatpush1.msra.mxu0 0.0
    %556 = vmatprep.subr.mxu0 0.0
    %557 = vmatpush1.msra.mxu0 0.0
    %558 = vmatprep.subr.mxu0 0.0
    %559 = vmatpush1.msra.mxu0 0.0
    %560 = vmatprep.subr.mxu0 0.0
    %561 = vmatpush1.msra.mxu0 0.0
    %562 = vmatprep.subr.mxu0 0.0
    %563 = vmatpush1.msra.mxu0 0.0
    %564 = vmatprep.subr.mxu0 0.0
    %565 = vmatpush1.msra.mxu0 0.0
    %566 = vmatprep.subr.mxu0 0.0
    %567 = vmatpush1.msra.mxu0 0.0
    %568 = vmatprep.subr.mxu0 0.0
    %569 = vmatpush1.msra.mxu0 0.0
    %570 = vmatprep.subr.mxu0 0.0
    %571 = vmatpush1.msra.mxu0 0.0
    %572 = vmatprep.subr.mxu0 0.0
    %573 = vmatpush1.msra.mxu0 0.0
    %574 = vmatprep.subr.mxu0 0.0
    %575 = vmatpush1.msra.mxu0 0.0
    %576 = vmatprep.subr.mxu0 0.0
    %577 = vmatpush1.msra.mxu0 0.0
    %578 = vmatprep.subr.mxu0 0.0
    %579 = vmatpush1.msra.mxu0 0.0
    %580 = vmatprep.subr.mxu0 0.0
    %581 = vmatpush1.msra.mxu0 0.0
    %582 = vmatprep.subr.mxu0 0.0
    %583 = vmatpush1.msra.mxu0 0.0
    %584 = vmatprep.subr.mxu0 0.0
    %585 = vmatpush1.msra.mxu0 0.0
    %586 = vmatprep.subr.mxu0 0.0
    %587 = vmatpush1.msra.mxu0 0.0
    %588 = vmatprep.subr.mxu0 0.0
    %589 = vmatpush1.msra.mxu0 0.0
    %590 = vmatprep.subr.mxu0 0.0
    %591 = vmatpush1.msra.mxu0 0.0
    %592 = vmatprep.subr.mxu0 0.0
    %593 = vmatpush1.msra.mxu0 0.0
    %594 = vmatprep.subr.mxu0 0.0
    %595 = vmatpush1.msra.mxu0 0.0
    %596 = vmatprep.subr.mxu0 0.0
    %597 = vmatpush1.msra.mxu0 0.0
    %598 = vmatprep.mubr.f32.mxu0 0.0
    %599 = vmatmul.mubr.f32.gmra.mrb[0].mxu0 %v453
    %v600 = vpop.f32.mrb[0].mxu0
    %v601 = vadd.f32 0.0, %v600
    %v602 = vpop.f32.mrb[0].mxu0
    %603 = vdwg.mxu0
    %v604 = vadd.f32 %v533, %v601
    %v605 = vxor.u32 %v604, 2147483648
    %v606 = vmul.f32 %v605, 1.442695
    %v607 = vpow.pop %v606
    %v608 = vadd.f32 %v607, 1.0
    %v609 = vrcp.pop %v608
    %v610 = vmul.f32 1.0, %v609
    %s611 = scalar_lea.vmem [#allocation5], 2
    %v612 = vld [vmem:[%s611] sm:$0x3]
    %613 = vmatprep.subr.mxu0 0.0
    %614 = vmatpush1.msra.mxu0 %v126
    %615 = vmatprep.subr.mxu0 0.0
    %616 = vmatpush1.msra.mxu0 %v127
    %617 = vmatprep.subr.mxu0 0.0
    %618 = vmatpush1.msra.mxu0 %v128
    %619 = vmatprep.subr.mxu0 0.0
    %620 = vmatpush1.msra.mxu0 %v129
    %621 = vmatprep.subr.mxu0 0.0
    %622 = vmatpush1.msra.mxu0 0.0
    %623 = vmatprep.subr.mxu0 0.0
    %624 = vmatpush1.msra.mxu0 0.0
    %625 = vmatprep.subr.mxu0 0.0
    %626 = vmatpush1.msra.mxu0 0.0
    %627 = vmatprep.subr.mxu0 0.0
    %628 = vmatpush1.msra.mxu0 0.0
    %629 = vmatprep.subr.mxu0 0.0
    %630 = vmatpush1.msra.mxu0 0.0
    %631 = vmatprep.subr.mxu0 0.0
    %632 = vmatpush1.msra.mxu0 0.0
    %633 = vmatprep.subr.mxu0 0.0
    %634 = vmatpush1.msra.mxu0 0.0
    %635 = vmatprep.subr.mxu0 0.0
    %636 = vmatpush1.msra.mxu0 0.0
    %637 = vmatprep.subr.mxu0 0.0
    %638 = vmatpush1.msra.mxu0 0.0
    %639 = vmatprep.subr.mxu0 0.0
    %640 = vmatpush1.msra.mxu0 0.0
    %641 = vmatprep.subr.mxu0 0.0
    %642 = vmatpush1.msra.mxu0 0.0
    %643 = vmatprep.subr.mxu0 0.0
    %644 = vmatpush1.msra.mxu0 0.0
    %645 = vmatprep.subr.mxu0 0.0
    %646 = vmatpush1.msra.mxu0 0.0
    %647 = vmatprep.subr.mxu0 0.0
    %648 = vmatpush1.msra.mxu0 0.0
    %649 = vmatprep.subr.mxu0 0.0
    %650 = vmatpush1.msra.mxu0 0.0
    %651 = vmatprep.subr.mxu0 0.0
    %652 = vmatpush1.msra.mxu0 0.0
    %653 = vmatprep.subr.mxu0 0.0
    %654 = vmatpush1.msra.mxu0 0.0
    %655 = vmatprep.subr.mxu0 0.0
    %656 = vmatpush1.msra.mxu0 0.0
    %657 = vmatprep.subr.mxu0 0.0
    %658 = vmatpush1.msra.mxu0 0.0
    %659 = vmatprep.subr.mxu0 0.0
    %660 = vmatpush1.msra.mxu0 0.0
    %661 = vmatprep.subr.mxu0 0.0
    %662 = vmatpush1.msra.mxu0 0.0
    %663 = vmatprep.subr.mxu0 0.0
    %664 = vmatpush1.msra.mxu0 0.0
    %665 = vmatprep.subr.mxu0 0.0
    %666 = vmatpush1.msra.mxu0 0.0
    %667 = vmatprep.subr.mxu0 0.0
    %668 = vmatpush1.msra.mxu0 0.0
    %669 = vmatprep.subr.mxu0 0.0
    %670 = vmatpush1.msra.mxu0 0.0
    %671 = vmatprep.subr.mxu0 0.0
    %672 = vmatpush1.msra.mxu0 0.0
    %673 = vmatprep.subr.mxu0 0.0
    %674 = vmatpush1.msra.mxu0 0.0
    %675 = vmatprep.subr.mxu0 0.0
    %676 = vmatpush1.msra.mxu0 0.0
    %677 = vmatprep.mubr.f32.mxu0 0.0
    %678 = vmatmul.mubr.f32.gmra.mrb[0].mxu0 %v453
    %v679 = vpop.f32.mrb[0].mxu0
    %v680 = vadd.f32 0.0, %v679
    %v681 = vpop.f32.mrb[0].mxu0
    %682 = vdwg.mxu0
    %v683 = vadd.f32 %v612, %v680
    %v684 = vtanh.pop %v683
    %s685 = scalar_lea.vmem [#allocation7], 2
    %v686 = vld [vmem:[%s685] sm:$0x3]
    %687 = vmatprep.subr.mxu0 0.0
    %688 = vmatpush1.msra.mxu0 %v130
    %689 = vmatprep.subr.mxu0 0.0
    %690 = vmatpush1.msra.mxu0 %v131
    %691 = vmatprep.subr.mxu0 0.0
    %692 = vmatpush1.msra.mxu0 %v132
    %693 = vmatprep.subr.mxu0 0.0
    %694 = vmatpush1.msra.mxu0 %v133
    %695 = vmatprep.subr.mxu0 0.0
    %696 = vmatpush1.msra.mxu0 0.0
    %697 = vmatprep.subr.mxu0 0.0
    %698 = vmatpush1.msra.mxu0 0.0
    %699 = vmatprep.subr.mxu0 0.0
    %700 = vmatpush1.msra.mxu0 0.0
    %701 = vmatprep.subr.mxu0 0.0
    %702 = vmatpush1.msra.mxu0 0.0
    %703 = vmatprep.subr.mxu0 0.0
    %704 = vmatpush1.msra.mxu0 0.0
    %705 = vmatprep.subr.mxu0 0.0
    %706 = vmatpush1.msra.mxu0 0.0
    %707 = vmatprep.subr.mxu0 0.0
    %708 = vmatpush1.msra.mxu0 0.0
    %709 = vmatprep.subr.mxu0 0.0
    %710 = vmatpush1.msra.mxu0 0.0
    %711 = vmatprep.subr.mxu0 0.0
    %712 = vmatpush1.msra.mxu0 0.0
    %713 = vmatprep.subr.mxu0 0.0
    %714 = vmatpush1.msra.mxu0 0.0
    %715 = vmatprep.subr.mxu0 0.0
    %716 = vmatpush1.msra.mxu0 0.0
    %717 = vmatprep.subr.mxu0 0.0
    %718 = vmatpush1.msra.mxu0 0.0
    %719 = vmatprep.subr.mxu0 0.0
    %720 = vmatpush1.msra.mxu0 0.0
    %721 = vmatprep.subr.mxu0 0.0
    %722 = vmatpush1.msra.mxu0 0.0
    %723 = vmatprep.subr.mxu0 0.0
    %724 = vmatpush1.msra.mxu0 0.0
    %725 = vmatprep.subr.mxu0 0.0
    %726 = vmatpush1.msra.mxu0 0.0
    %727 = vmatprep.subr.mxu0 0.0
    %728 = vmatpush1.msra.mxu0 0.0
    %729 = vmatprep.subr.mxu0 0.0
    %730 = vmatpush1.msra.mxu0 0.0
    %731 = vmatprep.subr.mxu0 0.0
    %732 = vmatpush1.msra.mxu0 0.0
    %733 = vmatprep.subr.mxu0 0.0
    %734 = vmatpush1.msra.mxu0 0.0
    %735 = vmatprep.subr.mxu0 0.0
    %736 = vmatpush1.msra.mxu0 0.0
    %737 = vmatprep.subr.mxu0 0.0
    %738 = vmatpush1.msra.mxu0 0.0
    %739 = vmatprep.subr.mxu0 0.0
    %740 = vmatpush1.msra.mxu0 0.0
    %741 = vmatprep.subr.mxu0 0.0
    %742 = vmatpush1.msra.mxu0 0.0
    %743 = vmatprep.subr.mxu0 0.0
    %744 = vmatpush1.msra.mxu0 0.0
    %745 = vmatprep.subr.mxu0 0.0
    %746 = vmatpush1.msra.mxu0 0.0
    %747 = vmatprep.subr.mxu0 0.0
    %748 = vmatpush1.msra.mxu0 0.0
    %749 = vmatprep.subr.mxu0 0.0
    %750 = vmatpush1.msra.mxu0 0.0
    %751 = vmatprep.mubr.f32.mxu0 0.0
    %752 = vmatmul.mubr.f32.gmra.mrb[0].mxu0 %v453
    %v753 = vpop.f32.mrb[0].mxu0
    %v754 = vadd.f32 0.0, %v753
    %v755 = vpop.f32.mrb[0].mxu0
    %756 = vdwg.mxu0
    %v757 = vadd.f32 %v686, %v754
    %v758 = vxor.u32 %v757, 2147483648
    %v759 = vmul.f32 %v758, 1.442695
    %v760 = vpow.pop %v759
    %v761 = vadd.f32 %v760, 1.0
    %v762 = vrcp.pop %v761
    %v763 = vmul.f32 1.0, %v762
    %v764 = vmul.f32 %v610, %v447
    %v765 = vmul.f32 %v531, %v684
    %v766 = vadd.f32 %v764, %v765
    %v767 = vtanh.pop %v766
    %v768 = vmul.f32 %v763, %v767
    %s769 = scalar_lea.vmem %s0, 4
    %v770 = vld [vmem:[%s769] sm:$0x3]
    %v772 = vsel %vm135, %v768, 0
    %774 = vmatprep.subr.mxu0 0.0
    %775 = vmatpush1.msra.mxu0 %v118
    %776 = vmatprep.subr.mxu0 0.0
    %777 = vmatpush1.msra.mxu0 %v119
    %778 = vmatprep.subr.mxu0 0.0
    %779 = vmatpush1.msra.mxu0 %v120
    %780 = vmatprep.subr.mxu0 0.0
    %781 = vmatpush1.msra.mxu0 %v121
    %782 = vmatprep.subr.mxu0 0.0
    %783 = vmatpush1.msra.mxu0 0.0
    %784 = vmatprep.subr.mxu0 0.0
    %785 = vmatpush1.msra.mxu0 0.0
    %786 = vmatprep.subr.mxu0 0.0
    %787 = vmatpush1.msra.mxu0 0.0
    %788 = vmatprep.subr.mxu0 0.0
    %789 = vmatpush1.msra.mxu0 0.0
    %790 = vmatprep.subr.mxu0 0.0
    %791 = vmatpush1.msra.mxu0 0.0
    %792 = vmatprep.subr.mxu0 0.0
    %793 = vmatpush1.msra.mxu0 0.0
    %794 = vmatprep.subr.mxu0 0.0
    %795 = vmatpush1.msra.mxu0 0.0
    %796 = vmatprep.subr.mxu0 0.0
    %797 = vmatpush1.msra.mxu0 0.0
    %798 = vmatprep.subr.mxu0 0.0
    %799 = vmatpush1.msra.mxu0 0.0
    %800 = vmatprep.subr.mxu0 0.0
    %801 = vmatpush1.msra.mxu0 0.0
    %802 = vmatprep.subr.mxu0 0.0
    %803 = vmatpush1.msra.mxu0 0.0
    %804 = vmatprep.subr.mxu0 0.0
    %805 = vmatpush1.msra.mxu0 0.0
    %806 = vmatprep.subr.mxu0 0.0
    %807 = vmatpush1.msra.mxu0 0.0
    %808 = vmatprep.subr.mxu0 0.0
    %809 = vmatpush1.msra.mxu0 0.0
    %810 = vmatprep.subr.mxu0 0.0
    %811 = vmatpush1.msra.mxu0 0.0
    %812 = vmatprep.subr.mxu0 0.0
    %813 = vmatpush1.msra.mxu0 0.0
    %814 = vmatprep.subr.mxu0 0.0
    %815 = vmatpush1.msra.mxu0 0.0
    %816 = vmatprep.subr.mxu0 0.0
    %817 = vmatpush1.msra.mxu0 0.0
    %818 = vmatprep.subr.mxu0 0.0
    %819 = vmatpush1.msra.mxu0 0.0
    %820 = vmatprep.subr.mxu0 0.0
    %821 = vmatpush1.msra.mxu0 0.0
    %822 = vmatprep.subr.mxu0 0.0
    %823 = vmatpush1.msra.mxu0 0.0
    %824 = vmatprep.subr.mxu0 0.0
    %825 = vmatpush1.msra.mxu0 0.0
    %826 = vmatprep.subr.mxu0 0.0
    %827 = vmatpush1.msra.mxu0 0.0
    %828 = vmatprep.subr.mxu0 0.0
    %829 = vmatpush1.msra.mxu0 0.0
    %830 = vmatprep.subr.mxu0 0.0
    %831 = vmatpush1.msra.mxu0 0.0
    %832 = vmatprep.subr.mxu0 0.0
    %833 = vmatpush1.msra.mxu0 0.0
    %834 = vmatprep.subr.mxu0 0.0
    %835 = vmatpush1.msra.mxu0 0.0
    %836 = vmatprep.subr.mxu0 0.0
    %837 = vmatpush1.msra.mxu0 0.0
    %838 = vmatprep.mubr.f32.mxu0 0.0
    %839 = vmatmul.mubr.f32.gmra.mrb[0].mxu0 %v772
    %v840 = vpop.f32.mrb[0].mxu0
    %v841 = vadd.f32 0.0, %v840
    %v842 = vpop.f32.mrb[0].mxu0
    %843 = vdwg.mxu0
    %v844 = vadd.f32 %v770, %v841
    %v845 = vxor.u32 %v844, 2147483648
    %v846 = vmul.f32 %v845, 1.442695
    %v847 = vpow.pop %v846
    %v848 = vadd.f32 %v847, 1.0
    %v849 = vrcp.pop %v848
    %v850 = vmul.f32 1.0, %v849
    %s851 = scalar_lea.vmem [#allocation2], 4
    %v852 = vld [vmem:[%s851] sm:$0x3]
    %853 = vmatprep.subr.mxu0 0.0
    %854 = vmatpush1.msra.mxu0 %v122
    %855 = vmatprep.subr.mxu0 0.0
    %856 = vmatpush1.msra.mxu0 %v123
    %857 = vmatprep.subr.mxu0 0.0
    %858 = vmatpush1.msra.mxu0 %v124
    %859 = vmatprep.subr.mxu0 0.0
    %860 = vmatpush1.msra.mxu0 %v125
    %861 = vmatprep.subr.mxu0 0.0
    %862 = vmatpush1.msra.mxu0 0.0
    %863 = vmatprep.subr.mxu0 0.0
    %864 = vmatpush1.msra.mxu0 0.0
    %865 = vmatprep.subr.mxu0 0.0
    %866 = vmatpush1.msra.mxu0 0.0
    %867 = vmatprep.subr.mxu0 0.0
    %868 = vmatpush1.msra.mxu0 0.0
    %869 = vmatprep.subr.mxu0 0.0
    %870 = vmatpush1.msra.mxu0 0.0
    %871 = vmatprep.subr.mxu0 0.0
    %872 = vmatpush1.msra.mxu0 0.0
    %873 = vmatprep.subr.mxu0 0.0
    %874 = vmatpush1.msra.mxu0 0.0
    %875 = vmatprep.subr.mxu0 0.0
    %876 = vmatpush1.msra.mxu0 0.0
    %877 = vmatprep.subr.mxu0 0.0
    %878 = vmatpush1.msra.mxu0 0.0
    %879 = vmatprep.subr.mxu0 0.0
    %880 = vmatpush1.msra.mxu0 0.0
    %881 = vmatprep.subr.mxu0 0.0
    %882 = vmatpush1.msra.mxu0 0.0
    %883 = vmatprep.subr.mxu0 0.0
    %884 = vmatpush1.msra.mxu0 0.0
    %885 = vmatprep.subr.mxu0 0.0
    %886 = vmatpush1.msra.mxu0 0.0
    %887 = vmatprep.subr.mxu0 0.0
    %888 = vmatpush1.msra.mxu0 0.0
    %889 = vmatprep.subr.mxu0 0.0
    %890 = vmatpush1.msra.mxu0 0.0
    %891 = vmatprep.subr.mxu0 0.0
    %892 = vmatpush1.msra.mxu0 0.0
    %893 = vmatprep.subr.mxu0 0.0
    %894 = vmatpush1.msra.mxu0 0.0
    %895 = vmatprep.subr.mxu0 0.0
    %896 = vmatpush1.msra.mxu0 0.0
    %897 = vmatprep.subr.mxu0 0.0
    %898 = vmatpush1.msra.mxu0 0.0
    %899 = vmatprep.subr.mxu0 0.0
    %900 = vmatpush1.msra.mxu0 0.0
    %901 = vmatprep.subr.mxu0 0.0
    %902 = vmatpush1.msra.mxu0 0.0
    %903 = vmatprep.subr.mxu0 0.0
    %904 = vmatpush1.msra.mxu0 0.0
    %905 = vmatprep.subr.mxu0 0.0
    %906 = vmatpush1.msra.mxu0 0.0
    %907 = vmatprep.subr.mxu0 0.0
    %908 = vmatpush1.msra.mxu0 0.0
    %909 = vmatprep.subr.mxu0 0.0
    %910 = vmatpush1.msra.mxu0 0.0
    %911 = vmatprep.subr.mxu0 0.0
    %912 = vmatpush1.msra.mxu0 0.0
    %913 = vmatprep.subr.mxu0 0.0
    %914 = vmatpush1.msra.mxu0 0.0
    %915 = vmatprep.subr.mxu0 0.0
    %916 = vmatpush1.msra.mxu0 0.0
    %917 = vmatprep.mubr.f32.mxu0 0.0
    %918 = vmatmul.mubr.f32.gmra.mrb[0].mxu0 %v772
    %v919 = vpop.f32.mrb[0].mxu0
    %v920 = vadd.f32 0.0, %v919
    %v921 = vpop.f32.mrb[0].mxu0
    %922 = vdwg.mxu0
    %v923 = vadd.f32 %v852, %v920
    %v924 = vxor.u32 %v923, 2147483648
    %v925 = vmul.f32 %v924, 1.442695
    %v926 = vpow.pop %v925
    %v927 = vadd.f32 %v926, 1.0
    %v928 = vrcp.pop %v927
    %v929 = vmul.f32 1.0, %v928
    %s930 = scalar_lea.vmem [#allocation5], 4
    %v931 = vld [vmem:[%s930] sm:$0x3]
    %932 = vmatprep.subr.mxu0 0.0
    %933 = vmatpush1.msra.mxu0 %v126
    %934 = vmatprep.subr.mxu0 0.0
    %935 = vmatpush1.msra.mxu0 %v127
    %936 = vmatprep.subr.mxu0 0.0
    %937 = vmatpush1.msra.mxu0 %v128
    %938 = vmatprep.subr.mxu0 0.0
    %939 = vmatpush1.msra.mxu0 %v129
    %940 = vmatprep.subr.mxu0 0.0
    %941 = vmatpush1.msra.mxu0 0.0
    %942 = vmatprep.subr.mxu0 0.0
    %943 = vmatpush1.msra.mxu0 0.0
    %944 = vmatprep.subr.mxu0 0.0
    %945 = vmatpush1.msra.mxu0 0.0
    %946 = vmatprep.subr.mxu0 0.0
    %947 = vmatpush1.msra.mxu0 0.0
    %948 = vmatprep.subr.mxu0 0.0
    %949 = vmatpush1.msra.mxu0 0.0
    %950 = vmatprep.subr.mxu0 0.0
    %951 = vmatpush1.msra.mxu0 0.0
    %952 = vmatprep.subr.mxu0 0.0
    %953 = vmatpush1.msra.mxu0 0.0
    %954 = vmatprep.subr.mxu0 0.0
    %955 = vmatpush1.msra.mxu0 0.0
    %956 = vmatprep.subr.mxu0 0.0
    %957 = vmatpush1.msra.mxu0 0.0
    %958 = vmatprep.subr.mxu0 0.0
    %959 = vmatpush1.msra.mxu0 0.0
    %960 = vmatprep.subr.mxu0 0.0
    %961 = vmatpush1.msra.mxu0 0.0
    %962 = vmatprep.subr.mxu0 0.0
    %963 = vmatpush1.msra.mxu0 0.0
    %964 = vmatprep.subr.mxu0 0.0
    %965 = vmatpush1.msra.mxu0 0.0
    %966 = vmatprep.subr.mxu0 0.0
    %967 = vmatpush1.msra.mxu0 0.0
    %968 = vmatprep.subr.mxu0 0.0
    %969 = vmatpush1.msra.mxu0 0.0
    %970 = vmatprep.subr.mxu0 0.0
    %971 = vmatpush1.msra.mxu0 0.0
    %972 = vmatprep.subr.mxu0 0.0
    %973 = vmatpush1.msra.mxu0 0.0
    %974 = vmatprep.subr.mxu0 0.0
    %975 = vmatpush1.msra.mxu0 0.0
    %976 = vmatprep.subr.mxu0 0.0
    %977 = vmatpush1.msra.mxu0 0.0
    %978 = vmatprep.subr.mxu0 0.0
    %979 = vmatpush1.msra.mxu0 0.0
    %980 = vmatprep.subr.mxu0 0.0
    %981 = vmatpush1.msra.mxu0 0.0
    %982 = vmatprep.subr.mxu0 0.0
    %983 = vmatpush1.msra.mxu0 0.0
    %984 = vmatprep.subr.mxu0 0.0
    %985 = vmatpush1.msra.mxu0 0.0
    %986 = vmatprep.subr.mxu0 0.0
    %987 = vmatpush1.msra.mxu0 0.0
    %988 = vmatprep.subr.mxu0 0.0
    %989 = vmatpush1.msra.mxu0 0.0
    %990 = vmatprep.subr.mxu0 0.0
    %991 = vmatpush1.msra.mxu0 0.0
    %992 = vmatprep.subr.mxu0 0.0
    %993 = vmatpush1.msra.mxu0 0.0
    %994 = vmatprep.subr.mxu0 0.0
    %995 = vmatpush1.msra.mxu0 0.0
    %996 = vmatprep.mubr.f32.mxu0 0.0
    %997 = vmatmul.mubr.f32.gmra.mrb[0].mxu0 %v772
    %v998 = vpop.f32.mrb[0].mxu0
    %v999 = vadd.f32 0.0, %v998
    %v1000 = vpop.f32.mrb[0].mxu0
    %1001 = vdwg.mxu0
    %v1002 = vadd.f32 %v931, %v999
    %v1003 = vtanh.pop %v1002
    %s1004 = scalar_lea.vmem [#allocation7], 4
    %v1005 = vld [vmem:[%s1004] sm:$0x3]
    %1006 = vmatprep.subr.mxu0 0.0
    %1007 = vmatpush1.msra.mxu0 %v130
    %1008 = vmatprep.subr.mxu0 0.0
    %1009 = vmatpush1.msra.mxu0 %v131
    %1010 = vmatprep.subr.mxu0 0.0
    %1011 = vmatpush1.msra.mxu0 %v132
    %1012 = vmatprep.subr.mxu0 0.0
    %1013 = vmatpush1.msra.mxu0 %v133
    %1014 = vmatprep.subr.mxu0 0.0
    %1015 = vmatpush1.msra.mxu0 0.0
    %1016 = vmatprep.subr.mxu0 0.0
    %1017 = vmatpush1.msra.mxu0 0.0
    %1018 = vmatprep.subr.mxu0 0.0
    %1019 = vmatpush1.msra.mxu0 0.0
    %1020 = vmatprep.subr.mxu0 0.0
    %1021 = vmatpush1.msra.mxu0 0.0
    %1022 = vmatprep.subr.mxu0 0.0
    %1023 = vmatpush1.msra.mxu0 0.0
    %1024 = vmatprep.subr.mxu0 0.0
    %1025 = vmatpush1.msra.mxu0 0.0
    %1026 = vmatprep.subr.mxu0 0.0
    %1027 = vmatpush1.msra.mxu0 0.0
    %1028 = vmatprep.subr.mxu0 0.0
    %1029 = vmatpush1.msra.mxu0 0.0
    %1030 = vmatprep.subr.mxu0 0.0
    %1031 = vmatpush1.msra.mxu0 0.0
    %1032 = vmatprep.subr.mxu0 0.0
    %1033 = vmatpush1.msra.mxu0 0.0
    %1034 = vmatprep.subr.mxu0 0.0
    %1035 = vmatpush1.msra.mxu0 0.0
    %1036 = vmatprep.subr.mxu0 0.0
    %1037 = vmatpush1.msra.mxu0 0.0
    %1038 = vmatprep.subr.mxu0 0.0
    %1039 = vmatpush1.msra.mxu0 0.0
    %1040 = vmatprep.subr.mxu0 0.0
    %1041 = vmatpush1.msra.mxu0 0.0
    %1042 = vmatprep.subr.mxu0 0.0
    %1043 = vmatpush1.msra.mxu0 0.0
    %1044 = vmatprep.subr.mxu0 0.0
    %1045 = vmatpush1.msra.mxu0 0.0
    %1046 = vmatprep.subr.mxu0 0.0
    %1047 = vmatpush1.msra.mxu0 0.0
    %1048 = vmatprep.subr.mxu0 0.0
    %1049 = vmatpush1.msra.mxu0 0.0
    %1050 = vmatprep.subr.mxu0 0.0
    %1051 = vmatpush1.msra.mxu0 0.0
    %1052 = vmatprep.subr.mxu0 0.0
    %1053 = vmatpush1.msra.mxu0 0.0
    %1054 = vmatprep.subr.mxu0 0.0
    %1055 = vmatpush1.msra.mxu0 0.0
    %1056 = vmatprep.subr.mxu0 0.0
    %1057 = vmatpush1.msra.mxu0 0.0
    %1058 = vmatprep.subr.mxu0 0.0
    %1059 = vmatpush1.msra.mxu0 0.0
    %1060 = vmatprep.subr.mxu0 0.0
    %1061 = vmatpush1.msra.mxu0 0.0
    %1062 = vmatprep.subr.mxu0 0.0
    %1063 = vmatpush1.msra.mxu0 0.0
    %1064 = vmatprep.subr.mxu0 0.0
    %1065 = vmatpush1.msra.mxu0 0.0
    %1066 = vmatprep.subr.mxu0 0.0
    %1067 = vmatpush1.msra.mxu0 0.0
    %1068 = vmatprep.subr.mxu0 0.0
    %1069 = vmatpush1.msra.mxu0 0.0
    %1070 = vmatprep.mubr.f32.mxu0 0.0
    %1071 = vmatmul.mubr.f32.gmra.mrb[0].mxu0 %v772
    %v1072 = vpop.f32.mrb[0].mxu0
    %v1073 = vadd.f32 0.0, %v1072
    %v1074 = vpop.f32.mrb[0].mxu0
    %1075 = vdwg.mxu0
    %v1076 = vadd.f32 %v1005, %v1073
    %v1077 = vxor.u32 %v1076, 2147483648
    %v1078 = vmul.f32 %v1077, 1.442695
    %v1079 = vpow.pop %v1078
    %v1080 = vadd.f32 %v1079, 1.0
    %v1081 = vrcp.pop %v1080
    %v1082 = vmul.f32 1.0, %v1081
    %v1083 = vmul.f32 %v929, %v766
    %v1084 = vmul.f32 %v850, %v1003
    %v1085 = vadd.f32 %v1083, %v1084
    %v1086 = vtanh.pop %v1085
    %v1087 = vmul.f32 %v1082, %v1086
    %s1088 = scalar_lea.vmem %s0, 6
    %v1089 = vld [vmem:[%s1088] sm:$0x3]
    %v1091 = vsel %vm135, %v1087, 0
    %1093 = vmatprep.subr.mxu0 0.0
    %1094 = vmatpush1.msra.mxu0 %v118
    %1095 = vmatprep.subr.mxu0 0.0
    %1096 = vmatpush1.msra.mxu0 %v119
    %1097 = vmatprep.subr.mxu0 0.0
    %1098 = vmatpush1.msra.mxu0 %v120
    %1099 = vmatprep.subr.mxu0 0.0
    %1100 = vmatpush1.msra.mxu0 %v121
    %1101 = vmatprep.subr.mxu0 0.0
    %1102 = vmatpush1.msra.mxu0 0.0
    %1103 = vmatprep.subr.mxu0 0.0
    %1104 = vmatpush1.msra.mxu0 0.0
    %1105 = vmatprep.subr.mxu0 0.0
    %1106 = vmatpush1.msra.mxu0 0.0
    %1107 = vmatprep.subr.mxu0 0.0
    %1108 = vmatpush1.msra.mxu0 0.0
    %1109 = vmatprep.subr.mxu0 0.0
    %1110 = vmatpush1.msra.mxu0 0.0
    %1111 = vmatprep.subr.mxu0 0.0
    %1112 = vmatpush1.msra.mxu0 0.0
    %1113 = vmatprep.subr.mxu0 0.0
    %1114 = vmatpush1.msra.mxu0 0.0
    %1115 = vmatprep.subr.mxu0 0.0
    %1116 = vmatpush1.msra.mxu0 0.0
    %1117 = vmatprep.subr.mxu0 0.0
    %1118 = vmatpush1.msra.mxu0 0.0
    %1119 = vmatprep.subr.mxu0 0.0
    %1120 = vmatpush1.msra.mxu0 0.0
    %1121 = vmatprep.subr.mxu0 0.0
    %1122 = vmatpush1.msra.mxu0 0.0
    %1123 = vmatprep.subr.mxu0 0.0
    %1124 = vmatpush1.msra.mxu0 0.0
    %1125 = vmatprep.subr.mxu0 0.0
    %1126 = vmatpush1.msra.mxu0 0.0
    %1127 = vmatprep.subr.mxu0 0.0
    %1128 = vmatpush1.msra.mxu0 0.0
    %1129 = vmatprep.subr.mxu0 0.0
    %1130 = vmatpush1.msra.mxu0 0.0
    %1131 = vmatprep.subr.mxu0 0.0
    %1132 = vmatpush1.msra.mxu0 0.0
    %1133 = vmatprep.subr.mxu0 0.0
    %1134 = vmatpush1.msra.mxu0 0.0
    %1135 = vmatprep.subr.mxu0 0.0
    %1136 = vmatpush1.msra.mxu0 0.0
    %1137 = vmatprep.subr.mxu0 0.0
    %1138 = vmatpush1.msra.mxu0 0.0
    %1139 = vmatprep.subr.mxu0 0.0
    %1140 = vmatpush1.msra.mxu0 0.0
    %1141 = vmatprep.subr.mxu0 0.0
    %1142 = vmatpush1.msra.mxu0 0.0
    %1143 = vmatprep.subr.mxu0 0.0
    %1144 = vmatpush1.msra.mxu0 0.0
    %1145 = vmatprep.subr.mxu0 0.0
    %1146 = vmatpush1.msra.mxu0 0.0
    %1147 = vmatprep.subr.mxu0 0.0
    %1148 = vmatpush1.msra.mxu0 0.0
    %1149 = vmatprep.subr.mxu0 0.0
    %1150 = vmatpush1.msra.mxu0 0.0
    %1151 = vmatprep.subr.mxu0 0.0
    %1152 = vmatpush1.msra.mxu0 0.0
    %1153 = vmatprep.subr.mxu0 0.0
    %1154 = vmatpush1.msra.mxu0 0.0
    %1155 = vmatprep.subr.mxu0 0.0
    %1156 = vmatpush1.msra.mxu0 0.0
    %1157 = vmatprep.mubr.f32.mxu0 0.0
    %1158 = vmatmul.mubr.f32.gmra.mrb[0].mxu0 %v1091
    %v1159 = vpop.f32.mrb[0].mxu0
    %v1160 = vadd.f32 0.0, %v1159
    %v1161 = vpop.f32.mrb[0].mxu0
    %1162 = vdwg.mxu0
    %v1163 = vadd.f32 %v1089, %v1160
    %v1164 = vxor.u32 %v1163, 2147483648
    %v1165 = vmul.f32 %v1164, 1.442695
    %v1166 = vpow.pop %v1165
    %v1167 = vadd.f32 %v1166, 1.0
    %v1168 = vrcp.pop %v1167
    %v1169 = vmul.f32 1.0, %v1168
    %s1170 = scalar_lea.vmem [#allocation2], 6
    %v1171 = vld [vmem:[%s1170] sm:$0x3]
    %1172 = vmatprep.subr.mxu0 0.0
    %1173 = vmatpush1.msra.mxu0 %v122
    %1174 = vmatprep.subr.mxu0 0.0
    %1175 = vmatpush1.msra.mxu0 %v123
    %1176 = vmatprep.subr.mxu0 0.0
    %1177 = vmatpush1.msra.mxu0 %v124
    %1178 = vmatprep.subr.mxu0 0.0
    %1179 = vmatpush1.msra.mxu0 %v125
    %1180 = vmatprep.subr.mxu0 0.0
    %1181 = vmatpush1.msra.mxu0 0.0
    %1182 = vmatprep.subr.mxu0 0.0
    %1183 = vmatpush1.msra.mxu0 0.0
    %1184 = vmatprep.subr.mxu0 0.0
    %1185 = vmatpush1.msra.mxu0 0.0
    %1186 = vmatprep.subr.mxu0 0.0
    %1187 = vmatpush1.msra.mxu0 0.0
    %1188 = vmatprep.subr.mxu0 0.0
    %1189 = vmatpush1.msra.mxu0 0.0
    %1190 = vmatprep.subr.mxu0 0.0
    %1191 = vmatpush1.msra.mxu0 0.0
    %1192 = vmatprep.subr.mxu0 0.0
    %1193 = vmatpush1.msra.mxu0 0.0
    %1194 = vmatprep.subr.mxu0 0.0
    %1195 = vmatpush1.msra.mxu0 0.0
    %1196 = vmatprep.subr.mxu0 0.0
    %1197 = vmatpush1.msra.mxu0 0.0
    %1198 = vmatprep.subr.mxu0 0.0
    %1199 = vmatpush1.msra.mxu0 0.0
    %1200 = vmatprep.subr.mxu0 0.0
    %1201 = vmatpush1.msra.mxu0 0.0
    %1202 = vmatprep.subr.mxu0 0.0
    %1203 = vmatpush1.msra.mxu0 0.0
    %1204 = vmatprep.subr.mxu0 0.0
    %1205 = vmatpush1.msra.mxu0 0.0
    %1206 = vmatprep.subr.mxu0 0.0
    %1207 = vmatpush1.msra.mxu0 0.0
    %1208 = vmatprep.subr.mxu0 0.0
    %1209 = vmatpush1.msra.mxu0 0.0
    %1210 = vmatprep.subr.mxu0 0.0
    %1211 = vmatpush1.msra.mxu0 0.0
    %1212 = vmatprep.subr.mxu0 0.0
    %1213 = vmatpush1.msra.mxu0 0.0
    %1214 = vmatprep.subr.mxu0 0.0
    %1215 = vmatpush1.msra.mxu0 0.0
    %1216 = vmatprep.subr.mxu0 0.0
    %1217 = vmatpush1.msra.mxu0 0.0
    %1218 = vmatprep.subr.mxu0 0.0
    %1219 = vmatpush1.msra.mxu0 0.0
    %1220 = vmatprep.subr.mxu0 0.0
    %1221 = vmatpush1.msra.mxu0 0.0
    %1222 = vmatprep.subr.mxu0 0.0
    %1223 = vmatpush1.msra.mxu0 0.0
    %1224 = vmatprep.subr.mxu0 0.0
    %1225 = vmatpush1.msra.mxu0 0.0
    %1226 = vmatprep.subr.mxu0 0.0
    %1227 = vmatpush1.msra.mxu0 0.0
    %1228 = vmatprep.subr.mxu0 0.0
    %1229 = vmatpush1.msra.mxu0 0.0
    %1230 = vmatprep.subr.mxu0 0.0
    %1231 = vmatpush1.msra.mxu0 0.0
    %1232 = vmatprep.subr.mxu0 0.0
    %1233 = vmatpush1.msra.mxu0 0.0
    %1234 = vmatprep.subr.mxu0 0.0
    %1235 = vmatpush1.msra.mxu0 0.0
    %1236 = vmatprep.mubr.f32.mxu0 0.0
    %1237 = vmatmul.mubr.f32.gmra.mrb[0].mxu0 %v1091
    %v1238 = vpop.f32.mrb[0].mxu0
    %v1239 = vadd.f32 0.0, %v1238
    %v1240 = vpop.f32.mrb[0].mxu0
    %1241 = vdwg.mxu0
    %v1242 = vadd.f32 %v1171, %v1239
    %v1243 = vxor.u32 %v1242, 2147483648
    %v1244 = vmul.f32 %v1243, 1.442695
    %v1245 = vpow.pop %v1244
    %v1246 = vadd.f32 %v1245, 1.0
    %v1247 = vrcp.pop %v1246
    %v1248 = vmul.f32 1.0, %v1247
    %s1249 = scalar_lea.vmem [#allocation5], 6
    %v1250 = vld [vmem:[%s1249] sm:$0x3]
    %1251 = vmatprep.subr.mxu0 0.0
    %1252 = vmatpush1.msra.mxu0 %v126
    %1253 = vmatprep.subr.mxu0 0.0
    %1254 = vmatpush1.msra.mxu0 %v127
    %1255 = vmatprep.subr.mxu0 0.0
    %1256 = vmatpush1.msra.mxu0 %v128
    %1257 = vmatprep.subr.mxu0 0.0
    %1258 = vmatpush1.msra.mxu0 %v129
    %1259 = vmatprep.subr.mxu0 0.0
    %1260 = vmatpush1.msra.mxu0 0.0
    %1261 = vmatprep.subr.mxu0 0.0
    %1262 = vmatpush1.msra.mxu0 0.0
    %1263 = vmatprep.subr.mxu0 0.0
    %1264 = vmatpush1.msra.mxu0 0.0
    %1265 = vmatprep.subr.mxu0 0.0
    %1266 = vmatpush1.msra.mxu0 0.0
    %1267 = vmatprep.subr.mxu0 0.0
    %1268 = vmatpush1.msra.mxu0 0.0
    %1269 = vmatprep.subr.mxu0 0.0
    %1270 = vmatpush1.msra.mxu0 0.0
    %1271 = vmatprep.subr.mxu0 0.0
    %1272 = vmatpush1.msra.mxu0 0.0
    %1273 = vmatprep.subr.mxu0 0.0
    %1274 = vmatpush1.msra.mxu0 0.0
    %1275 = vmatprep.subr.mxu0 0.0
    %1276 = vmatpush1.msra.mxu0 0.0
    %1277 = vmatprep.subr.mxu0 0.0
    %1278 = vmatpush1.msra.mxu0 0.0
    %1279 = vmatprep.subr.mxu0 0.0
    %1280 = vmatpush1.msra.mxu0 0.0
    %1281 = vmatprep.subr.mxu0 0.0
    %1282 = vmatpush1.msra.mxu0 0.0
    %1283 = vmatprep.subr.mxu0 0.0
    %1284 = vmatpush1.msra.mxu0 0.0
    %1285 = vmatprep.subr.mxu0 0.0
    %1286 = vmatpush1.msra.mxu0 0.0
    %1287 = vmatprep.subr.mxu0 0.0
    %1288 = vmatpush1.msra.mxu0 0.0
    %1289 = vmatprep.subr.mxu0 0.0
    %1290 = vmatpush1.msra.mxu0 0.0
    %1291 = vmatprep.subr.mxu0 0.0
    %1292 = vmatpush1.msra.mxu0 0.0
    %1293 = vmatprep.subr.mxu0 0.0
    %1294 = vmatpush1.msra.mxu0 0.0
    %1295 = vmatprep.subr.mxu0 0.0
    %1296 = vmatpush1.msra.mxu0 0.0
    %1297 = vmatprep.subr.mxu0 0.0
    %1298 = vmatpush1.msra.mxu0 0.0
    %1299 = vmatprep.subr.mxu0 0.0
    %1300 = vmatpush1.msra.mxu0 0.0
    %1301 = vmatprep.subr.mxu0 0.0
    %1302 = vmatpush1.msra.mxu0 0.0
    %1303 = vmatprep.subr.mxu0 0.0
    %1304 = vmatpush1.msra.mxu0 0.0
    %1305 = vmatprep.subr.mxu0 0.0
    %1306 = vmatpush1.msra.mxu0 0.0
    %1307 = vmatprep.subr.mxu0 0.0
    %1308 = vmatpush1.msra.mxu0 0.0
    %1309 = vmatprep.subr.mxu0 0.0
    %1310 = vmatpush1.msra.mxu0 0.0
    %1311 = vmatprep.subr.mxu0 0.0
    %1312 = vmatpush1.msra.mxu0 0.0
    %1313 = vmatprep.subr.mxu0 0.0
    %1314 = vmatpush1.msra.mxu0 0.0
    %1315 = vmatprep.mubr.f32.mxu0 0.0
    %1316 = vmatmul.mubr.f32.gmra.mrb[0].mxu0 %v1091
    %v1317 = vpop.f32.mrb[0].mxu0
    %v1318 = vadd.f32 0.0, %v1317
    %v1319 = vpop.f32.mrb[0].mxu0
    %1320 = vdwg.mxu0
    %v1321 = vadd.f32 %v1250, %v1318
    %v1322 = vtanh.pop %v1321
    %s1323 = scalar_lea.vmem [#allocation7], 6
    %v1324 = vld [vmem:[%s1323] sm:$0x3]
    %1325 = vmatprep.subr.mxu0 0.0
    %1326 = vmatpush1.msra.mxu0 %v130
    %1327 = vmatprep.subr.mxu0 0.0
    %1328 = vmatpush1.msra.mxu0 %v131
    %1329 = vmatprep.subr.mxu0 0.0
    %1330 = vmatpush1.msra.mxu0 %v132
    %1331 = vmatprep.subr.mxu0 0.0
    %1332 = vmatpush1.msra.mxu0 %v133
    %1333 = vmatprep.subr.mxu0 0.0
    %1334 = vmatpush1.msra.mxu0 0.0
    %1335 = vmatprep.subr.mxu0 0.0
    %1336 = vmatpush1.msra.mxu0 0.0
    %1337 = vmatprep.subr.mxu0 0.0
    %1338 = vmatpush1.msra.mxu0 0.0
    %1339 = vmatprep.subr.mxu0 0.0
    %1340 = vmatpush1.msra.mxu0 0.0
    %1341 = vmatprep.subr.mxu0 0.0
    %1342 = vmatpush1.msra.mxu0 0.0
    %1343 = vmatprep.subr.mxu0 0.0
    %1344 = vmatpush1.msra.mxu0 0.0
    %1345 = vmatprep.subr.mxu0 0.0
    %1346 = vmatpush1.msra.mxu0 0.0
    %1347 = vmatprep.subr.mxu0 0.0
    %1348 = vmatpush1.msra.mxu0 0.0
    %1349 = vmatprep.subr.mxu0 0.0
    %1350 = vmatpush1.msra.mxu0 0.0
    %1351 = vmatprep.subr.mxu0 0.0
    %1352 = vmatpush1.msra.mxu0 0.0
    %1353 = vmatprep.subr.mxu0 0.0
    %1354 = vmatpush1.msra.mxu0 0.0
    %1355 = vmatprep.subr.mxu0 0.0
    %1356 = vmatpush1.msra.mxu0 0.0
    %1357 = vmatprep.subr.mxu0 0.0
    %1358 = vmatpush1.msra.mxu0 0.0
    %1359 = vmatprep.subr.mxu0 0.0
    %1360 = vmatpush1.msra.mxu0 0.0
    %1361 = vmatprep.subr.mxu0 0.0
    %1362 = vmatpush1.msra.mxu0 0.0
    %1363 = vmatprep.subr.mxu0 0.0
    %1364 = vmatpush1.msra.mxu0 0.0
    %1365 = vmatprep.subr.mxu0 0.0
    %1366 = vmatpush1.msra.mxu0 0.0
    %1367 = vmatprep.subr.mxu0 0.0
    %1368 = vmatpush1.msra.mxu0 0.0
    %1369 = vmatprep.subr.mxu0 0.0
    %1370 = vmatpush1.msra.mxu0 0.0
    %1371 = vmatprep.subr.mxu0 0.0
    %1372 = vmatpush1.msra.mxu0 0.0
    %1373 = vmatprep.subr.mxu0 0.0
    %1374 = vmatpush1.msra.mxu0 0.0
    %1375 = vmatprep.subr.mxu0 0.0
    %1376 = vmatpush1.msra.mxu0 0.0
    %1377 = vmatprep.subr.mxu0 0.0
    %1378 = vmatpush1.msra.mxu0 0.0
    %1379 = vmatprep.subr.mxu0 0.0
    %1380 = vmatpush1.msra.mxu0 0.0
    %1381 = vmatprep.subr.mxu0 0.0
    %1382 = vmatpush1.msra.mxu0 0.0
    %1383 = vmatprep.subr.mxu0 0.0
    %1384 = vmatpush1.msra.mxu0 0.0
    %1385 = vmatprep.subr.mxu0 0.0
    %1386 = vmatpush1.msra.mxu0 0.0
    %1387 = vmatprep.subr.mxu0 0.0
    %1388 = vmatpush1.msra.mxu0 0.0
    %1389 = vmatprep.mubr.f32.mxu0 0.0
    %1390 = vmatmul.mubr.f32.gmra.mrb[0].mxu0 %v1091
    %v1391 = vpop.f32.mrb[0].mxu0
    %v1392 = vadd.f32 0.0, %v1391
    %v1393 = vpop.f32.mrb[0].mxu0
    %1394 = vdwg.mxu0
    %v1395 = vadd.f32 %v1324, %v1392
    %v1396 = vxor.u32 %v1395, 2147483648
    %v1397 = vmul.f32 %v1396, 1.442695
    %v1398 = vpow.pop %v1397
    %v1399 = vadd.f32 %v1398, 1.0
    %v1400 = vrcp.pop %v1399
    %v1401 = vmul.f32 1.0, %v1400
    %v1402 = vmul.f32 %v1248, %v1085
    %v1403 = vmul.f32 %v1169, %v1322
    %v1404 = vadd.f32 %v1402, %v1403
    %v1405 = vtanh.pop %v1404
    %v1406 = vmul.f32 %v1401, %v1405
    %s1407 = scalar_lea.vmem %s0, 8
    %v1408 = vld [vmem:[%s1407] sm:$0x3]
    %v1410 = vsel %vm135, %v1406, 0
    %1412 = vmatprep.subr.mxu0 0.0
    %1413 = vmatpush1.msra.mxu0 %v118
    %1414 = vmatprep.subr.mxu0 0.0
    %1415 = vmatpush1.msra.mxu0 %v119
    %1416 = vmatprep.subr.mxu0 0.0
    %1417 = vmatpush1.msra.mxu0 %v120
    %1418 = vmatprep.subr.mxu0 0.0
    %1419 = vmatpush1.msra.mxu0 %v121
    %1420 = vmatprep.subr.mxu0 0.0
    %1421 = vmatpush1.msra.mxu0 0.0
    %1422 = vmatprep.subr.mxu0 0.0
    %1423 = vmatpush1.msra.mxu0 0.0
    %1424 = vmatprep.subr.mxu0 0.0
    %1425 = vmatpush1.msra.mxu0 0.0
    %1426 = vmatprep.subr.mxu0 0.0
    %1427 = vmatpush1.msra.mxu0 0.0
    %1428 = vmatprep.subr.mxu0 0.0
    %1429 = vmatpush1.msra.mxu0 0.0
    %1430 = vmatprep.subr.mxu0 0.0
    %1431 = vmatpush1.msra.mxu0 0.0
    %1432 = vmatprep.subr.mxu0 0.0
    %1433 = vmatpush1.msra.mxu0 0.0
    %1434 = vmatprep.subr.mxu0 0.0
    %1435 = vmatpush1.msra.mxu0 0.0
    %1436 = vmatprep.subr.mxu0 0.0
    %1437 = vmatpush1.msra.mxu0 0.0
    %1438 = vmatprep.subr.mxu0 0.0
    %1439 = vmatpush1.msra.mxu0 0.0
    %1440 = vmatprep.subr.mxu0 0.0
    %1441 = vmatpush1.msra.mxu0 0.0
    %1442 = vmatprep.subr.mxu0 0.0
    %1443 = vmatpush1.msra.mxu0 0.0
    %1444 = vmatprep.subr.mxu0 0.0
    %1445 = vmatpush1.msra.mxu0 0.0
    %1446 = vmatprep.subr.mxu0 0.0
    %1447 = vmatpush1.msra.mxu0 0.0
    %1448 = vmatprep.subr.mxu0 0.0
    %1449 = vmatpush1.msra.mxu0 0.0
    %1450 = vmatprep.subr.mxu0 0.0
    %1451 = vmatpush1.msra.mxu0 0.0
    %1452 = vmatprep.subr.mxu0 0.0
    %1453 = vmatpush1.msra.mxu0 0.0
    %1454 = vmatprep.subr.mxu0 0.0
    %1455 = vmatpush1.msra.mxu0 0.0
    %1456 = vmatprep.subr.mxu0 0.0
    %1457 = vmatpush1.msra.mxu0 0.0
    %1458 = vmatprep.subr.mxu0 0.0
    %1459 = vmatpush1.msra.mxu0 0.0
    %1460 = vmatprep.subr.mxu0 0.0
    %1461 = vmatpush1.msra.mxu0 0.0
    %1462 = vmatprep.subr.mxu0 0.0
    %1463 = vmatpush1.msra.mxu0 0.0
    %1464 = vmatprep.subr.mxu0 0.0
    %1465 = vmatpush1.msra.mxu0 0.0
    %1466 = vmatprep.subr.mxu0 0.0
    %1467 = vmatpush1.msra.mxu0 0.0
    %1468 = vmatprep.subr.mxu0 0.0
    %1469 = vmatpush1.msra.mxu0 0.0
    %1470 = vmatprep.subr.mxu0 0.0
    %1471 = vmatpush1.msra.mxu0 0.0
    %1472 = vmatprep.subr.mxu0 0.0
    %1473 = vmatpush1.msra.mxu0 0.0
    %1474 = vmatprep.subr.mxu0 0.0
    %1475 = vmatpush1.msra.mxu0 0.0
    %1476 = vmatprep.mubr.f32.mxu0 0.0
    %1477 = vmatmul.mubr.f32.gmra.mrb[0].mxu0 %v1410
    %v1478 = vpop.f32.mrb[0].mxu0
    %v1479 = vadd.f32 0.0, %v1478
    %v1480 = vpop.f32.mrb[0].mxu0
    %1481 = vdwg.mxu0
    %v1482 = vadd.f32 %v1408, %v1479
    %v1483 = vxor.u32 %v1482, 2147483648
    %v1484 = vmul.f32 %v1483, 1.442695
    %v1485 = vpow.pop %v1484
    %v1486 = vadd.f32 %v1485, 1.0
    %v1487 = vrcp.pop %v1486
    %v1488 = vmul.f32 1.0, %v1487
    %s1489 = scalar_lea.vmem [#allocation2], 8
    %v1490 = vld [vmem:[%s1489] sm:$0x3]
    %1491 = vmatprep.subr.mxu0 0.0
    %1492 = vmatpush1.msra.mxu0 %v122
    %1493 = vmatprep.subr.mxu0 0.0
    %1494 = vmatpush1.msra.mxu0 %v123
    %1495 = vmatprep.subr.mxu0 0.0
    %1496 = vmatpush1.msra.mxu0 %v124
    %1497 = vmatprep.subr.mxu0 0.0
    %1498 = vmatpush1.msra.mxu0 %v125
    %1499 = vmatprep.subr.mxu0 0.0
    %1500 = vmatpush1.msra.mxu0 0.0
    %1501 = vmatprep.subr.mxu0 0.0
    %1502 = vmatpush1.msra.mxu0 0.0
    %1503 = vmatprep.subr.mxu0 0.0
    %1504 = vmatpush1.msra.mxu0 0.0
    %1505 = vmatprep.subr.mxu0 0.0
    %1506 = vmatpush1.msra.mxu0 0.0
    %1507 = vmatprep.subr.mxu0 0.0
    %1508 = vmatpush1.msra.mxu0 0.0
    %1509 = vmatprep.subr.mxu0 0.0
    %1510 = vmatpush1.msra.mxu0 0.0
    %1511 = vmatprep.subr.mxu0 0.0
    %1512 = vmatpush1.msra.mxu0 0.0
    %1513 = vmatprep.subr.mxu0 0.0
    %1514 = vmatpush1.msra.mxu0 0.0
    %1515 = vmatprep.subr.mxu0 0.0
    %1516 = vmatpush1.msra.mxu0 0.0
    %1517 = vmatprep.subr.mxu0 0.0
    %1518 = vmatpush1.msra.mxu0 0.0
    %1519 = vmatprep.subr.mxu0 0.0
    %1520 = vmatpush1.msra.mxu0 0.0
    %1521 = vmatprep.subr.mxu0 0.0
    %1522 = vmatpush1.msra.mxu0 0.0
    %1523 = vmatprep.subr.mxu0 0.0
    %1524 = vmatpush1.msra.mxu0 0.0
    %1525 = vmatprep.subr.mxu0 0.0
    %1526 = vmatpush1.msra.mxu0 0.0
    %1527 = vmatprep.subr.mxu0 0.0
    %1528 = vmatpush1.msra.mxu0 0.0
    %1529 = vmatprep.subr.mxu0 0.0
    %1530 = vmatpush1.msra.mxu0 0.0
    %1531 = vmatprep.subr.mxu0 0.0
    %1532 = vmatpush1.msra.mxu0 0.0
    %1533 = vmatprep.subr.mxu0 0.0
    %1534 = vmatpush1.msra.mxu0 0.0
    %1535 = vmatprep.subr.mxu0 0.0
    %1536 = vmatpush1.msra.mxu0 0.0
    %1537 = vmatprep.subr.mxu0 0.0
    %1538 = vmatpush1.msra.mxu0 0.0
    %1539 = vmatprep.subr.mxu0 0.0
    %1540 = vmatpush1.msra.mxu0 0.0
    %1541 = vmatprep.subr.mxu0 0.0
    %1542 = vmatpush1.msra.mxu0 0.0
    %1543 = vmatprep.subr.mxu0 0.0
    %1544 = vmatpush1.msra.mxu0 0.0
    %1545 = vmatprep.subr.mxu0 0.0
    %1546 = vmatpush1.msra.mxu0 0.0
    %1547 = vmatprep.subr.mxu0 0.0
    %1548 = vmatpush1.msra.mxu0 0.0
    %1549 = vmatprep.subr.mxu0 0.0
    %1550 = vmatpush1.msra.mxu0 0.0
    %1551 = vmatprep.subr.mxu0 0.0
    %1552 = vmatpush1.msra.mxu0 0.0
    %1553 = vmatprep.subr.mxu0 0.0
    %1554 = vmatpush1.msra.mxu0 0.0
    %1555 = vmatprep.mubr.f32.mxu0 0.0
    %1556 = vmatmul.mubr.f32.gmra.mrb[0].mxu0 %v1410
    %v1557 = vpop.f32.mrb[0].mxu0
    %v1558 = vadd.f32 0.0, %v1557
    %v1559 = vpop.f32.mrb[0].mxu0
    %1560 = vdwg.mxu0
    %v1561 = vadd.f32 %v1490, %v1558
    %v1562 = vxor.u32 %v1561, 2147483648
    %v1563 = vmul.f32 %v1562, 1.442695
    %v1564 = vpow.pop %v1563
    %v1565 = vadd.f32 %v1564, 1.0
    %v1566 = vrcp.pop %v1565
    %v1567 = vmul.f32 1.0, %v1566
    %s1568 = scalar_lea.vmem [#allocation5], 8
    %v1569 = vld [vmem:[%s1568] sm:$0x3]
    %1570 = vmatprep.subr.mxu0 0.0
    %1571 = vmatpush1.msra.mxu0 %v126
    %1572 = vmatprep.subr.mxu0 0.0
    %1573 = vmatpush1.msra.mxu0 %v127
    %1574 = vmatprep.subr.mxu0 0.0
    %1575 = vmatpush1.msra.mxu0 %v128
    %1576 = vmatprep.subr.mxu0 0.0
    %1577 = vmatpush1.msra.mxu0 %v129
    %1578 = vmatprep.subr.mxu0 0.0
    %1579 = vmatpush1.msra.mxu0 0.0
    %1580 = vmatprep.subr.mxu0 0.0
    %1581 = vmatpush1.msra.mxu0 0.0
    %1582 = vmatprep.subr.mxu0 0.0
    %1583 = vmatpush1.msra.mxu0 0.0
    %1584 = vmatprep.subr.mxu0 0.0
    %1585 = vmatpush1.msra.mxu0 0.0
    %1586 = vmatprep.subr.mxu0 0.0
    %1587 = vmatpush1.msra.mxu0 0.0
    %1588 = vmatprep.subr.mxu0 0.0
    %1589 = vmatpush1.msra.mxu0 0.0
    %1590 = vmatprep.subr.mxu0 0.0
    %1591 = vmatpush1.msra.mxu0 0.0
    %1592 = vmatprep.subr.mxu0 0.0
    %1593 = vmatpush1.msra.mxu0 0.0
    %1594 = vmatprep.subr.mxu0 0.0
    %1595 = vmatpush1.msra.mxu0 0.0
    %1596 = vmatprep.subr.mxu0 0.0
    %1597 = vmatpush1.msra.mxu0 0.0
    %1598 = vmatprep.subr.mxu0 0.0
    %1599 = vmatpush1.msra.mxu0 0.0
    %1600 = vmatprep.subr.mxu0 0.0
    %1601 = vmatpush1.msra.mxu0 0.0
    %1602 = vmatprep.subr.mxu0 0.0
    %1603 = vmatpush1.msra.mxu0 0.0
    %1604 = vmatprep.subr.mxu0 0.0
    %1605 = vmatpush1.msra.mxu0 0.0
    %1606 = vmatprep.subr.mxu0 0.0
    %1607 = vmatpush1.msra.mxu0 0.0
    %1608 = vmatprep.subr.mxu0 0.0
    %1609 = vmatpush1.msra.mxu0 0.0
    %1610 = vmatprep.subr.mxu0 0.0
    %1611 = vmatpush1.msra.mxu0 0.0
    %1612 = vmatprep.subr.mxu0 0.0
    %1613 = vmatpush1.msra.mxu0 0.0
    %1614 = vmatprep.subr.mxu0 0.0
    %1615 = vmatpush1.msra.mxu0 0.0
    %1616 = vmatprep.subr.mxu0 0.0
    %1617 = vmatpush1.msra.mxu0 0.0
    %1618 = vmatprep.subr.mxu0 0.0
    %1619 = vmatpush1.msra.mxu0 0.0
    %1620 = vmatprep.subr.mxu0 0.0
    %1621 = vmatpush1.msra.mxu0 0.0
    %1622 = vmatprep.subr.mxu0 0.0
    %1623 = vmatpush1.msra.mxu0 0.0
    %1624 = vmatprep.subr.mxu0 0.0
    %1625 = vmatpush1.msra.mxu0 0.0
    %1626 = vmatprep.subr.mxu0 0.0
    %1627 = vmatpush1.msra.mxu0 0.0
    %1628 = vmatprep.subr.mxu0 0.0
    %1629 = vmatpush1.msra.mxu0 0.0
    %1630 = vmatprep.subr.mxu0 0.0
    %1631 = vmatpush1.msra.mxu0 0.0
    %1632 = vmatprep.subr.mxu0 0.0
    %1633 = vmatpush1.msra.mxu0 0.0
    %1634 = vmatprep.mubr.f32.mxu0 0.0
    %1635 = vmatmul.mubr.f32.gmra.mrb[0].mxu0 %v1410
    %v1636 = vpop.f32.mrb[0].mxu0
    %v1637 = vadd.f32 0.0, %v1636
    %v1638 = vpop.f32.mrb[0].mxu0
    %1639 = vdwg.mxu0
    %v1640 = vadd.f32 %v1569, %v1637
    %v1641 = vtanh.pop %v1640
    %s1642 = scalar_lea.vmem [#allocation7], 8
    %v1643 = vld [vmem:[%s1642] sm:$0x3]
    %1644 = vmatprep.subr.mxu0 0.0
    %1645 = vmatpush1.msra.mxu0 %v130
    %1646 = vmatprep.subr.mxu0 0.0
    %1647 = vmatpush1.msra.mxu0 %v131
    %1648 = vmatprep.subr.mxu0 0.0
    %1649 = vmatpush1.msra.mxu0 %v132
    %1650 = vmatprep.subr.mxu0 0.0
    %1651 = vmatpush1.msra.mxu0 %v133
    %1652 = vmatprep.subr.mxu0 0.0
    %1653 = vmatpush1.msra.mxu0 0.0
    %1654 = vmatprep.subr.mxu0 0.0
    %1655 = vmatpush1.msra.mxu0 0.0
    %1656 = vmatprep.subr.mxu0 0.0
    %1657 = vmatpush1.msra.mxu0 0.0
    %1658 = vmatprep.subr.mxu0 0.0
    %1659 = vmatpush1.msra.mxu0 0.0
    %1660 = vmatprep.subr.mxu0 0.0
    %1661 = vmatpush1.msra.mxu0 0.0
    %1662 = vmatprep.subr.mxu0 0.0
    %1663 = vmatpush1.msra.mxu0 0.0
    %1664 = vmatprep.subr.mxu0 0.0
    %1665 = vmatpush1.msra.mxu0 0.0
    %1666 = vmatprep.subr.mxu0 0.0
    %1667 = vmatpush1.msra.mxu0 0.0
    %1668 = vmatprep.subr.mxu0 0.0
    %1669 = vmatpush1.msra.mxu0 0.0
    %1670 = vmatprep.subr.mxu0 0.0
    %1671 = vmatpush1.msra.mxu0 0.0
    %1672 = vmatprep.subr.mxu0 0.0
    %1673 = vmatpush1.msra.mxu0 0.0
    %1674 = vmatprep.subr.mxu0 0.0
    %1675 = vmatpush1.msra.mxu0 0.0
    %1676 = vmatprep.subr.mxu0 0.0
    %1677 = vmatpush1.msra.mxu0 0.0
    %1678 = vmatprep.subr.mxu0 0.0
    %1679 = vmatpush1.msra.mxu0 0.0
    %1680 = vmatprep.subr.mxu0 0.0
    %1681 = vmatpush1.msra.mxu0 0.0
    %1682 = vmatprep.subr.mxu0 0.0
    %1683 = vmatpush1.msra.mxu0 0.0
    %1684 = vmatprep.subr.mxu0 0.0
    %1685 = vmatpush1.msra.mxu0 0.0
    %1686 = vmatprep.subr.mxu0 0.0
    %1687 = vmatpush1.msra.mxu0 0.0
    %1688 = vmatprep.subr.mxu0 0.0
    %1689 = vmatpush1.msra.mxu0 0.0
    %1690 = vmatprep.subr.mxu0 0.0
    %1691 = vmatpush1.msra.mxu0 0.0
    %1692 = vmatprep.subr.mxu0 0.0
    %1693 = vmatpush1.msra.mxu0 0.0
    %1694 = vmatprep.subr.mxu0 0.0
    %1695 = vmatpush1.msra.mxu0 0.0
    %1696 = vmatprep.subr.mxu0 0.0
    %1697 = vmatpush1.msra.mxu0 0.0
    %1698 = vmatprep.subr.mxu0 0.0
    %1699 = vmatpush1.msra.mxu0 0.0
    %1700 = vmatprep.subr.mxu0 0.0
    %1701 = vmatpush1.msra.mxu0 0.0
    %1702 = vmatprep.subr.mxu0 0.0
    %1703 = vmatpush1.msra.mxu0 0.0
    %1704 = vmatprep.subr.mxu0 0.0
    %1705 = vmatpush1.msra.mxu0 0.0
    %1706 = vmatprep.subr.mxu0 0.0
    %1707 = vmatpush1.msra.mxu0 0.0
    %1708 = vmatprep.mubr.f32.mxu0 0.0
    %1709 = vmatmul.mubr.f32.gmra.mrb[0].mxu0 %v1410
    %v1710 = vpop.f32.mrb[0].mxu0
    %v1711 = vadd.f32 0.0, %v1710
    %v1712 = vpop.f32.mrb[0].mxu0
    %1713 = vdwg.mxu0
    %v1714 = vadd.f32 %v1643, %v1711
    %v1715 = vxor.u32 %v1714, 2147483648
    %v1716 = vmul.f32 %v1715, 1.442695
    %v1717 = vpow.pop %v1716
    %v1718 = vadd.f32 %v1717, 1.0
    %v1719 = vrcp.pop %v1718
    %v1720 = vmul.f32 1.0, %v1719
    %v1721 = vmul.f32 %v1567, %v1404
    %v1722 = vmul.f32 %v1488, %v1641
    %v1723 = vadd.f32 %v1721, %v1722
    %v1724 = vtanh.pop %v1723
    %v1725 = vmul.f32 %v1720, %v1724
    %s1726 = scalar_lea.vmem %s0, 10
    %v1727 = vld [vmem:[%s1726] sm:$0x3]
    %v1729 = vsel %vm135, %v1725, 0
    %1731 = vmatprep.subr.mxu0 0.0
    %1732 = vmatpush1.msra.mxu0 %v118
    %1733 = vmatprep.subr.mxu0 0.0
    %1734 = vmatpush1.msra.mxu0 %v119
    %1735 = vmatprep.subr.mxu0 0.0
    %1736 = vmatpush1.msra.mxu0 %v120
    %1737 = vmatprep.subr.mxu0 0.0
    %1738 = vmatpush1.msra.mxu0 %v121
    %1739 = vmatprep.subr.mxu0 0.0
    %1740 = vmatpush1.msra.mxu0 0.0
    %1741 = vmatprep.subr.mxu0 0.0
    %1742 = vmatpush1.msra.mxu0 0.0
    %1743 = vmatprep.subr.mxu0 0.0
    %1744 = vmatpush1.msra.mxu0 0.0
    %1745 = vmatprep.subr.mxu0 0.0
    %1746 = vmatpush1.msra.mxu0 0.0
    %1747 = vmatprep.subr.mxu0 0.0
    %1748 = vmatpush1.msra.mxu0 0.0
    %1749 = vmatprep.subr.mxu0 0.0
    %1750 = vmatpush1.msra.mxu0 0.0
    %1751 = vmatprep.subr.mxu0 0.0
    %1752 = vmatpush1.msra.mxu0 0.0
    %1753 = vmatprep.subr.mxu0 0.0
    %1754 = vmatpush1.msra.mxu0 0.0
    %1755 = vmatprep.subr.mxu0 0.0
    %1756 = vmatpush1.msra.mxu0 0.0
    %1757 = vmatprep.subr.mxu0 0.0
    %1758 = vmatpush1.msra.mxu0 0.0
    %1759 = vmatprep.subr.mxu0 0.0
    %1760 = vmatpush1.msra.mxu0 0.0
    %1761 = vmatprep.subr.mxu0 0.0
    %1762 = vmatpush1.msra.mxu0 0.0
    %1763 = vmatprep.subr.mxu0 0.0
    %1764 = vmatpush1.msra.mxu0 0.0
    %1765 = vmatprep.subr.mxu0 0.0
    %1766 = vmatpush1.msra.mxu0 0.0
    %1767 = vmatprep.subr.mxu0 0.0
    %1768 = vmatpush1.msra.mxu0 0.0
    %1769 = vmatprep.subr.mxu0 0.0
    %1770 = vmatpush1.msra.mxu0 0.0
    %1771 = vmatprep.subr.mxu0 0.0
    %1772 = vmatpush1.msra.mxu0 0.0
    %1773 = vmatprep.subr.mxu0 0.0
    %1774 = vmatpush1.msra.mxu0 0.0
    %1775 = vmatprep.subr.mxu0 0.0
    %1776 = vmatpush1.msra.mxu0 0.0
    %1777 = vmatprep.subr.mxu0 0.0
    %1778 = vmatpush1.msra.mxu0 0.0
    %1779 = vmatprep.subr.mxu0 0.0
    %1780 = vmatpush1.msra.mxu0 0.0
    %1781 = vmatprep.subr.mxu0 0.0
    %1782 = vmatpush1.msra.mxu0 0.0
    %1783 = vmatprep.subr.mxu0 0.0
    %1784 = vmatpush1.msra.mxu0 0.0
    %1785 = vmatprep.subr.mxu0 0.0
    %1786 = vmatpush1.msra.mxu0 0.0
    %1787 = vmatprep.subr.mxu0 0.0
    %1788 = vmatpush1.msra.mxu0 0.0
    %1789 = vmatprep.subr.mxu0 0.0
    %1790 = vmatpush1.msra.mxu0 0.0
    %1791 = vmatprep.subr.mxu0 0.0
    %1792 = vmatpush1.msra.mxu0 0.0
    %1793 = vmatprep.subr.mxu0 0.0
    %1794 = vmatpush1.msra.mxu0 0.0
    %1795 = vmatprep.mubr.f32.mxu0 0.0
    %1796 = vmatmul.mubr.f32.gmra.mrb[0].mxu0 %v1729
    %v1797 = vpop.f32.mrb[0].mxu0
    %v1798 = vadd.f32 0.0, %v1797
    %v1799 = vpop.f32.mrb[0].mxu0
    %1800 = vdwg.mxu0
    %v1801 = vadd.f32 %v1727, %v1798
    %v1802 = vxor.u32 %v1801, 2147483648
    %v1803 = vmul.f32 %v1802, 1.442695
    %v1804 = vpow.pop %v1803
    %v1805 = vadd.f32 %v1804, 1.0
    %v1806 = vrcp.pop %v1805
    %v1807 = vmul.f32 1.0, %v1806
    %s1808 = scalar_lea.vmem [#allocation2], 10
    %v1809 = vld [vmem:[%s1808] sm:$0x3]
    %1810 = vmatprep.subr.mxu0 0.0
    %1811 = vmatpush1.msra.mxu0 %v122
    %1812 = vmatprep.subr.mxu0 0.0
    %1813 = vmatpush1.msra.mxu0 %v123
    %1814 = vmatprep.subr.mxu0 0.0
    %1815 = vmatpush1.msra.mxu0 %v124
    %1816 = vmatprep.subr.mxu0 0.0
    %1817 = vmatpush1.msra.mxu0 %v125
    %1818 = vmatprep.subr.mxu0 0.0
    %1819 = vmatpush1.msra.mxu0 0.0
    %1820 = vmatprep.subr.mxu0 0.0
    %1821 = vmatpush1.msra.mxu0 0.0
    %1822 = vmatprep.subr.mxu0 0.0
    %1823 = vmatpush1.msra.mxu0 0.0
    %1824 = vmatprep.subr.mxu0 0.0
    %1825 = vmatpush1.msra.mxu0 0.0
    %1826 = vmatprep.subr.mxu0 0.0
    %1827 = vmatpush1.msra.mxu0 0.0
    %1828 = vmatprep.subr.mxu0 0.0
    %1829 = vmatpush1.msra.mxu0 0.0
    %1830 = vmatprep.subr.mxu0 0.0
    %1831 = vmatpush1.msra.mxu0 0.0
    %1832 = vmatprep.subr.mxu0 0.0
    %1833 = vmatpush1.msra.mxu0 0.0
    %1834 = vmatprep.subr.mxu0 0.0
    %1835 = vmatpush1.msra.mxu0 0.0
    %1836 = vmatprep.subr.mxu0 0.0
    %1837 = vmatpush1.msra.mxu0 0.0
    %1838 = vmatprep.subr.mxu0 0.0
    %1839 = vmatpush1.msra.mxu0 0.0
    %1840 = vmatprep.subr.mxu0 0.0
    %1841 = vmatpush1.msra.mxu0 0.0
    %1842 = vmatprep.subr.mxu0 0.0
    %1843 = vmatpush1.msra.mxu0 0.0
    %1844 = vmatprep.subr.mxu0 0.0
    %1845 = vmatpush1.msra.mxu0 0.0
    %1846 = vmatprep.subr.mxu0 0.0
    %1847 = vmatpush1.msra.mxu0 0.0
    %1848 = vmatprep.subr.mxu0 0.0
    %1849 = vmatpush1.msra.mxu0 0.0
    %1850 = vmatprep.subr.mxu0 0.0
    %1851 = vmatpush1.msra.mxu0 0.0
    %1852 = vmatprep.subr.mxu0 0.0
    %1853 = vmatpush1.msra.mxu0 0.0
    %1854 = vmatprep.subr.mxu0 0.0
    %1855 = vmatpush1.msra.mxu0 0.0
    %1856 = vmatprep.subr.mxu0 0.0
    %1857 = vmatpush1.msra.mxu0 0.0
    %1858 = vmatprep.subr.mxu0 0.0
    %1859 = vmatpush1.msra.mxu0 0.0
    %1860 = vmatprep.subr.mxu0 0.0
    %1861 = vmatpush1.msra.mxu0 0.0
    %1862 = vmatprep.subr.mxu0 0.0
    %1863 = vmatpush1.msra.mxu0 0.0
    %1864 = vmatprep.subr.mxu0 0.0
    %1865 = vmatpush1.msra.mxu0 0.0
    %1866 = vmatprep.subr.mxu0 0.0
    %1867 = vmatpush1.msra.mxu0 0.0
    %1868 = vmatprep.subr.mxu0 0.0
    %1869 = vmatpush1.msra.mxu0 0.0
    %1870 = vmatprep.subr.mxu0 0.0
    %1871 = vmatpush1.msra.mxu0 0.0
    %1872 = vmatprep.subr.mxu0 0.0
    %1873 = vmatpush1.msra.mxu0 0.0
    %1874 = vmatprep.mubr.f32.mxu0 0.0
    %1875 = vmatmul.mubr.f32.gmra.mrb[0].mxu0 %v1729
    %v1876 = vpop.f32.mrb[0].mxu0
    %v1877 = vadd.f32 0.0, %v1876
    %v1878 = vpop.f32.mrb[0].mxu0
    %1879 = vdwg.mxu0
    %v1880 = vadd.f32 %v1809, %v1877
    %v1881 = vxor.u32 %v1880, 2147483648
    %v1882 = vmul.f32 %v1881, 1.442695
    %v1883 = vpow.pop %v1882
    %v1884 = vadd.f32 %v1883, 1.0
    %v1885 = vrcp.pop %v1884
    %v1886 = vmul.f32 1.0, %v1885
    %s1887 = scalar_lea.vmem [#allocation5], 10
    %v1888 = vld [vmem:[%s1887] sm:$0x3]
    %1889 = vmatprep.subr.mxu0 0.0
    %1890 = vmatpush1.msra.mxu0 %v126
    %1891 = vmatprep.subr.mxu0 0.0
    %1892 = vmatpush1.msra.mxu0 %v127
    %1893 = vmatprep.subr.mxu0 0.0
    %1894 = vmatpush1.msra.mxu0 %v128
    %1895 = vmatprep.subr.mxu0 0.0
    %1896 = vmatpush1.msra.mxu0 %v129
    %1897 = vmatprep.subr.mxu0 0.0
    %1898 = vmatpush1.msra.mxu0 0.0
    %1899 = vmatprep.subr.mxu0 0.0
    %1900 = vmatpush1.msra.mxu0 0.0
    %1901 = vmatprep.subr.mxu0 0.0
    %1902 = vmatpush1.msra.mxu0 0.0
    %1903 = vmatprep.subr.mxu0 0.0
    %1904 = vmatpush1.msra.mxu0 0.0
    %1905 = vmatprep.subr.mxu0 0.0
    %1906 = vmatpush1.msra.mxu0 0.0
    %1907 = vmatprep.subr.mxu0 0.0
    %1908 = vmatpush1.msra.mxu0 0.0
    %1909 = vmatprep.subr.mxu0 0.0
    %1910 = vmatpush1.msra.mxu0 0.0
    %1911 = vmatprep.subr.mxu0 0.0
    %1912 = vmatpush1.msra.mxu0 0.0
    %1913 = vmatprep.subr.mxu0 0.0
    %1914 = vmatpush1.msra.mxu0 0.0
    %1915 = vmatprep.subr.mxu0 0.0
    %1916 = vmatpush1.msra.mxu0 0.0
    %1917 = vmatprep.subr.mxu0 0.0
    %1918 = vmatpush1.msra.mxu0 0.0
    %1919 = vmatprep.subr.mxu0 0.0
    %1920 = vmatpush1.msra.mxu0 0.0
    %1921 = vmatprep.subr.mxu0 0.0
    %1922 = vmatpush1.msra.mxu0 0.0
    %1923 = vmatprep.subr.mxu0 0.0
    %1924 = vmatpush1.msra.mxu0 0.0
    %1925 = vmatprep.subr.mxu0 0.0
    %1926 = vmatpush1.msra.mxu0 0.0
    %1927 = vmatprep.subr.mxu0 0.0
    %1928 = vmatpush1.msra.mxu0 0.0
    %1929 = vmatprep.subr.mxu0 0.0
    %1930 = vmatpush1.msra.mxu0 0.0
    %1931 = vmatprep.subr.mxu0 0.0
    %1932 = vmatpush1.msra.mxu0 0.0
    %1933 = vmatprep.subr.mxu0 0.0
    %1934 = vmatpush1.msra.mxu0 0.0
    %1935 = vmatprep.subr.mxu0 0.0
    %1936 = vmatpush1.msra.mxu0 0.0
    %1937 = vmatprep.subr.mxu0 0.0
    %1938 = vmatpush1.msra.mxu0 0.0
    %1939 = vmatprep.subr.mxu0 0.0
    %1940 = vmatpush1.msra.mxu0 0.0
    %1941 = vmatprep.subr.mxu0 0.0
    %1942 = vmatpush1.msra.mxu0 0.0
    %1943 = vmatprep.subr.mxu0 0.0
    %1944 = vmatpush1.msra.mxu0 0.0
    %1945 = vmatprep.subr.mxu0 0.0
    %1946 = vmatpush1.msra.mxu0 0.0
    %1947 = vmatprep.subr.mxu0 0.0
    %1948 = vmatpush1.msra.mxu0 0.0
    %1949 = vmatprep.subr.mxu0 0.0
    %1950 = vmatpush1.msra.mxu0 0.0
    %1951 = vmatprep.subr.mxu0 0.0
    %1952 = vmatpush1.msra.mxu0 0.0
    %1953 = vmatprep.mubr.f32.mxu0 0.0
    %1954 = vmatmul.mubr.f32.gmra.mrb[0].mxu0 %v1729
    %v1955 = vpop.f32.mrb[0].mxu0
    %v1956 = vadd.f32 0.0, %v1955
    %v1957 = vpop.f32.mrb[0].mxu0
    %1958 = vdwg.mxu0
    %v1959 = vadd.f32 %v1888, %v1956
    %v1960 = vtanh.pop %v1959
    %s1961 = scalar_lea.vmem [#allocation7], 10
    %v1962 = vld [vmem:[%s1961] sm:$0x3]
    %1963 = vmatprep.subr.mxu0 0.0
    %1964 = vmatpush1.msra.mxu0 %v130
    %1965 = vmatprep.subr.mxu0 0.0
    %1966 = vmatpush1.msra.mxu0 %v131
    %1967 = vmatprep.subr.mxu0 0.0
    %1968 = vmatpush1.msra.mxu0 %v132
    %1969 = vmatprep.subr.mxu0 0.0
    %1970 = vmatpush1.msra.mxu0 %v133
    %1971 = vmatprep.subr.mxu0 0.0
    %1972 = vmatpush1.msra.mxu0 0.0
    %1973 = vmatprep.subr.mxu0 0.0
    %1974 = vmatpush1.msra.mxu0 0.0
    %1975 = vmatprep.subr.mxu0 0.0
    %1976 = vmatpush1.msra.mxu0 0.0
    %1977 = vmatprep.subr.mxu0 0.0
    %1978 = vmatpush1.msra.mxu0 0.0
    %1979 = vmatprep.subr.mxu0 0.0
    %1980 = vmatpush1.msra.mxu0 0.0
    %1981 = vmatprep.subr.mxu0 0.0
    %1982 = vmatpush1.msra.mxu0 0.0
    %1983 = vmatprep.subr.mxu0 0.0
    %1984 = vmatpush1.msra.mxu0 0.0
    %1985 = vmatprep.subr.mxu0 0.0
    %1986 = vmatpush1.msra.mxu0 0.0
    %1987 = vmatprep.subr.mxu0 0.0
    %1988 = vmatpush1.msra.mxu0 0.0
    %1989 = vmatprep.subr.mxu0 0.0
    %1990 = vmatpush1.msra.mxu0 0.0
    %1991 = vmatprep.subr.mxu0 0.0
    %1992 = vmatpush1.msra.mxu0 0.0
    %1993 = vmatprep.subr.mxu0 0.0
    %1994 = vmatpush1.msra.mxu0 0.0
    %1995 = vmatprep.subr.mxu0 0.0
    %1996 = vmatpush1.msra.mxu0 0.0
    %1997 = vmatprep.subr.mxu0 0.0
    %1998 = vmatpush1.msra.mxu0 0.0
    %1999 = vmatprep.subr.mxu0 0.0
    %2000 = vmatpush1.msra.mxu0 0.0
    %2001 = vmatprep.subr.mxu0 0.0
    %2002 = vmatpush1.msra.mxu0 0.0
    %2003 = vmatprep.subr.mxu0 0.0
    %2004 = vmatpush1.msra.mxu0 0.0
    %2005 = vmatprep.subr.mxu0 0.0
    %2006 = vmatpush1.msra.mxu0 0.0
    %2007 = vmatprep.subr.mxu0 0.0
    %2008 = vmatpush1.msra.mxu0 0.0
    %2009 = vmatprep.subr.mxu0 0.0
    %2010 = vmatpush1.msra.mxu0 0.0
    %2011 = vmatprep.subr.mxu0 0.0
    %2012 = vmatpush1.msra.mxu0 0.0
    %2013 = vmatprep.subr.mxu0 0.0
    %2014 = vmatpush1.msra.mxu0 0.0
    %2015 = vmatprep.subr.mxu0 0.0
    %2016 = vmatpush1.msra.mxu0 0.0
    %2017 = vmatprep.subr.mxu0 0.0
    %2018 = vmatpush1.msra.mxu0 0.0
    %2019 = vmatprep.subr.mxu0 0.0
    %2020 = vmatpush1.msra.mxu0 0.0
    %2021 = vmatprep.subr.mxu0 0.0
    %2022 = vmatpush1.msra.mxu0 0.0
    %2023 = vmatprep.subr.mxu0 0.0
    %2024 = vmatpush1.msra.mxu0 0.0
    %2025 = vmatprep.subr.mxu0 0.0
    %2026 = vmatpush1.msra.mxu0 0.0
    %2027 = vmatprep.mubr.f32.mxu0 0.0
    %2028 = vmatmul.mubr.f32.gmra.mrb[0].mxu0 %v1729
    %v2029 = vpop.f32.mrb[0].mxu0
    %v2030 = vadd.f32 0.0, %v2029
    %v2031 = vpop.f32.mrb[0].mxu0
    %2032 = vdwg.mxu0
    %v2033 = vadd.f32 %v1962, %v2030
    %v2034 = vxor.u32 %v2033, 2147483648
    %v2035 = vmul.f32 %v2034, 1.442695
    %v2036 = vpow.pop %v2035
    %v2037 = vadd.f32 %v2036, 1.0
    %v2038 = vrcp.pop %v2037
    %v2039 = vmul.f32 1.0, %v2038
    %v2040 = vmul.f32 %v1886, %v1723
    %v2041 = vmul.f32 %v1807, %v1960
    %v2042 = vadd.f32 %v2040, %v2041
    %v2043 = vtanh.pop %v2042
    %v2044 = vmul.f32 %v2039, %v2043
    %s2045 = scalar_lea.vmem %s0, 12
    %v2046 = vld [vmem:[%s2045] sm:$0x3]
    %v2048 = vsel %vm135, %v2044, 0
    %2050 = vmatprep.subr.mxu0 0.0
    %2051 = vmatpush1.msra.mxu0 %v118
    %2052 = vmatprep.subr.mxu0 0.0
    %2053 = vmatpush1.msra.mxu0 %v119
    %2054 = vmatprep.subr.mxu0 0.0
    %2055 = vmatpush1.msra.mxu0 %v120
    %2056 = vmatprep.subr.mxu0 0.0
    %2057 = vmatpush1.msra.mxu0 %v121
    %2058 = vmatprep.subr.mxu0 0.0
    %2059 = vmatpush1.msra.mxu0 0.0
    %2060 = vmatprep.subr.mxu0 0.0
    %2061 = vmatpush1.msra.mxu0 0.0
    %2062 = vmatprep.subr.mxu0 0.0
    %2063 = vmatpush1.msra.mxu0 0.0
    %2064 = vmatprep.subr.mxu0 0.0
    %2065 = vmatpush1.msra.mxu0 0.0
    %2066 = vmatprep.subr.mxu0 0.0
    %2067 = vmatpush1.msra.mxu0 0.0
    %2068 = vmatprep.subr.mxu0 0.0
    %2069 = vmatpush1.msra.mxu0 0.0
    %2070 = vmatprep.subr.mxu0 0.0
    %2071 = vmatpush1.msra.mxu0 0.0
    %2072 = vmatprep.subr.mxu0 0.0
    %2073 = vmatpush1.msra.mxu0 0.0
    %2074 = vmatprep.subr.mxu0 0.0
    %2075 = vmatpush1.msra.mxu0 0.0
    %2076 = vmatprep.subr.mxu0 0.0
    %2077 = vmatpush1.msra.mxu0 0.0
    %2078 = vmatprep.subr.mxu0 0.0
    %2079 = vmatpush1.msra.mxu0 0.0
    %2080 = vmatprep.subr.mxu0 0.0
    %2081 = vmatpush1.msra.mxu0 0.0
    %2082 = vmatprep.subr.mxu0 0.0
    %2083 = vmatpush1.msra.mxu0 0.0
    %2084 = vmatprep.subr.mxu0 0.0
    %2085 = vmatpush1.msra.mxu0 0.0
    %2086 = vmatprep.subr.mxu0 0.0
    %2087 = vmatpush1.msra.mxu0 0.0
    %2088 = vmatprep.subr.mxu0 0.0
    %2089 = vmatpush1.msra.mxu0 0.0
    %2090 = vmatprep.subr.mxu0 0.0
    %2091 = vmatpush1.msra.mxu0 0.0
    %2092 = vmatprep.subr.mxu0 0.0
    %2093 = vmatpush1.msra.mxu0 0.0
    %2094 = vmatprep.subr.mxu0 0.0
    %2095 = vmatpush1.msra.mxu0 0.0
    %2096 = vmatprep.subr.mxu0 0.0
    %2097 = vmatpush1.msra.mxu0 0.0
    %2098 = vmatprep.subr.mxu0 0.0
    %2099 = vmatpush1.msra.mxu0 0.0
    %2100 = vmatprep.subr.mxu0 0.0
    %2101 = vmatpush1.msra.mxu0 0.0
    %2102 = vmatprep.subr.mxu0 0.0
    %2103 = vmatpush1.msra.mxu0 0.0
    %2104 = vmatprep.subr.mxu0 0.0
    %2105 = vmatpush1.msra.mxu0 0.0
    %2106 = vmatprep.subr.mxu0 0.0
    %2107 = vmatpush1.msra.mxu0 0.0
    %2108 = vmatprep.subr.mxu0 0.0
    %2109 = vmatpush1.msra.mxu0 0.0
    %2110 = vmatprep.subr.mxu0 0.0
    %2111 = vmatpush1.msra.mxu0 0.0
    %2112 = vmatprep.subr.mxu0 0.0
    %2113 = vmatpush1.msra.mxu0 0.0
    %2114 = vmatprep.mubr.f32.mxu0 0.0
    %2115 = vmatmul.mubr.f32.gmra.mrb[0].mxu0 %v2048
    %v2116 = vpop.f32.mrb[0].mxu0
    %v2117 = vadd.f32 0.0, %v2116
    %v2118 = vpop.f32.mrb[0].mxu0
    %2119 = vdwg.mxu0
    %v2120 = vadd.f32 %v2046, %v2117
    %v2121 = vxor.u32 %v2120, 2147483648
    %v2122 = vmul.f32 %v2121, 1.442695
    %v2123 = vpow.pop %v2122
    %v2124 = vadd.f32 %v2123, 1.0
    %v2125 = vrcp.pop %v2124
    %v2126 = vmul.f32 1.0, %v2125
    %s2127 = scalar_lea.vmem [#allocation2], 12
    %v2128 = vld [vmem:[%s2127] sm:$0x3]
    %2129 = vmatprep.subr.mxu0 0.0
    %2130 = vmatpush1.msra.mxu0 %v122
    %2131 = vmatprep.subr.mxu0 0.0
    %2132 = vmatpush1.msra.mxu0 %v123
    %2133 = vmatprep.subr.mxu0 0.0
    %2134 = vmatpush1.msra.mxu0 %v124
    %2135 = vmatprep.subr.mxu0 0.0
    %2136 = vmatpush1.msra.mxu0 %v125
    %2137 = vmatprep.subr.mxu0 0.0
    %2138 = vmatpush1.msra.mxu0 0.0
    %2139 = vmatprep.subr.mxu0 0.0
    %2140 = vmatpush1.msra.mxu0 0.0
    %2141 = vmatprep.subr.mxu0 0.0
    %2142 = vmatpush1.msra.mxu0 0.0
    %2143 = vmatprep.subr.mxu0 0.0
    %2144 = vmatpush1.msra.mxu0 0.0
    %2145 = vmatprep.subr.mxu0 0.0
    %2146 = vmatpush1.msra.mxu0 0.0
    %2147 = vmatprep.subr.mxu0 0.0
    %2148 = vmatpush1.msra.mxu0 0.0
    %2149 = vmatprep.subr.mxu0 0.0
    %2150 = vmatpush1.msra.mxu0 0.0
    %2151 = vmatprep.subr.mxu0 0.0
    %2152 = vmatpush1.msra.mxu0 0.0
    %2153 = vmatprep.subr.mxu0 0.0
    %2154 = vmatpush1.msra.mxu0 0.0
    %2155 = vmatprep.subr.mxu0 0.0
    %2156 = vmatpush1.msra.mxu0 0.0
    %2157 = vmatprep.subr.mxu0 0.0
    %2158 = vmatpush1.msra.mxu0 0.0
    %2159 = vmatprep.subr.mxu0 0.0
    %2160 = vmatpush1.msra.mxu0 0.0
    %2161 = vmatprep.subr.mxu0 0.0
    %2162 = vmatpush1.msra.mxu0 0.0
    %2163 = vmatprep.subr.mxu0 0.0
    %2164 = vmatpush1.msra.mxu0 0.0
    %2165 = vmatprep.subr.mxu0 0.0
    %2166 = vmatpush1.msra.mxu0 0.0
    %2167 = vmatprep.subr.mxu0 0.0
    %2168 = vmatpush1.msra.mxu0 0.0
    %2169 = vmatprep.subr.mxu0 0.0
    %2170 = vmatpush1.msra.mxu0 0.0
    %2171 = vmatprep.subr.mxu0 0.0
    %2172 = vmatpush1.msra.mxu0 0.0
    %2173 = vmatprep.subr.mxu0 0.0
    %2174 = vmatpush1.msra.mxu0 0.0
    %2175 = vmatprep.subr.mxu0 0.0
    %2176 = vmatpush1.msra.mxu0 0.0
    %2177 = vmatprep.subr.mxu0 0.0
    %2178 = vmatpush1.msra.mxu0 0.0
    %2179 = vmatprep.subr.mxu0 0.0
    %2180 = vmatpush1.msra.mxu0 0.0
    %2181 = vmatprep.subr.mxu0 0.0
    %2182 = vmatpush1.msra.mxu0 0.0
    %2183 = vmatprep.subr.mxu0 0.0
    %2184 = vmatpush1.msra.mxu0 0.0
    %2185 = vmatprep.subr.mxu0 0.0
    %2186 = vmatpush1.msra.mxu0 0.0
    %2187 = vmatprep.subr.mxu0 0.0
    %2188 = vmatpush1.msra.mxu0 0.0
    %2189 = vmatprep.subr.mxu0 0.0
    %2190 = vmatpush1.msra.mxu0 0.0
    %2191 = vmatprep.subr.mxu0 0.0
    %2192 = vmatpush1.msra.mxu0 0.0
    %2193 = vmatprep.mubr.f32.mxu0 0.0
    %2194 = vmatmul.mubr.f32.gmra.mrb[0].mxu0 %v2048
    %v2195 = vpop.f32.mrb[0].mxu0
    %v2196 = vadd.f32 0.0, %v2195
    %v2197 = vpop.f32.mrb[0].mxu0
    %2198 = vdwg.mxu0
    %v2199 = vadd.f32 %v2128, %v2196
    %v2200 = vxor.u32 %v2199, 2147483648
    %v2201 = vmul.f32 %v2200, 1.442695
    %v2202 = vpow.pop %v2201
    %v2203 = vadd.f32 %v2202, 1.0
    %v2204 = vrcp.pop %v2203
    %v2205 = vmul.f32 1.0, %v2204
    %s2206 = scalar_lea.vmem [#allocation5], 12
    %v2207 = vld [vmem:[%s2206] sm:$0x3]
    %2208 = vmatprep.subr.mxu0 0.0
    %2209 = vmatpush1.msra.mxu0 %v126
    %2210 = vmatprep.subr.mxu0 0.0
    %2211 = vmatpush1.msra.mxu0 %v127
    %2212 = vmatprep.subr.mxu0 0.0
    %2213 = vmatpush1.msra.mxu0 %v128
    %2214 = vmatprep.subr.mxu0 0.0
    %2215 = vmatpush1.msra.mxu0 %v129
    %2216 = vmatprep.subr.mxu0 0.0
    %2217 = vmatpush1.msra.mxu0 0.0
    %2218 = vmatprep.subr.mxu0 0.0
    %2219 = vmatpush1.msra.mxu0 0.0
    %2220 = vmatprep.subr.mxu0 0.0
    %2221 = vmatpush1.msra.mxu0 0.0
    %2222 = vmatprep.subr.mxu0 0.0
    %2223 = vmatpush1.msra.mxu0 0.0
    %2224 = vmatprep.subr.mxu0 0.0
    %2225 = vmatpush1.msra.mxu0 0.0
    %2226 = vmatprep.subr.mxu0 0.0
    %2227 = vmatpush1.msra.mxu0 0.0
    %2228 = vmatprep.subr.mxu0 0.0
    %2229 = vmatpush1.msra.mxu0 0.0
    %2230 = vmatprep.subr.mxu0 0.0
    %2231 = vmatpush1.msra.mxu0 0.0
    %2232 = vmatprep.subr.mxu0 0.0
    %2233 = vmatpush1.msra.mxu0 0.0
    %2234 = vmatprep.subr.mxu0 0.0
    %2235 = vmatpush1.msra.mxu0 0.0
    %2236 = vmatprep.subr.mxu0 0.0
    %2237 = vmatpush1.msra.mxu0 0.0
    %2238 = vmatprep.subr.mxu0 0.0
    %2239 = vmatpush1.msra.mxu0 0.0
    %2240 = vmatprep.subr.mxu0 0.0
    %2241 = vmatpush1.msra.mxu0 0.0
    %2242 = vmatprep.subr.mxu0 0.0
    %2243 = vmatpush1.msra.mxu0 0.0
    %2244 = vmatprep.subr.mxu0 0.0
    %2245 = vmatpush1.msra.mxu0 0.0
    %2246 = vmatprep.subr.mxu0 0.0
    %2247 = vmatpush1.msra.mxu0 0.0
    %2248 = vmatprep.subr.mxu0 0.0
    %2249 = vmatpush1.msra.mxu0 0.0
    %2250 = vmatprep.subr.mxu0 0.0
    %2251 = vmatpush1.msra.mxu0 0.0
    %2252 = vmatprep.subr.mxu0 0.0
    %2253 = vmatpush1.msra.mxu0 0.0
    %2254 = vmatprep.subr.mxu0 0.0
    %2255 = vmatpush1.msra.mxu0 0.0
    %2256 = vmatprep.subr.mxu0 0.0
    %2257 = vmatpush1.msra.mxu0 0.0
    %2258 = vmatprep.subr.mxu0 0.0
    %2259 = vmatpush1.msra.mxu0 0.0
    %2260 = vmatprep.subr.mxu0 0.0
    %2261 = vmatpush1.msra.mxu0 0.0
    %2262 = vmatprep.subr.mxu0 0.0
    %2263 = vmatpush1.msra.mxu0 0.0
    %2264 = vmatprep.subr.mxu0 0.0
    %2265 = vmatpush1.msra.mxu0 0.0
    %2266 = vmatprep.subr.mxu0 0.0
    %2267 = vmatpush1.msra.mxu0 0.0
    %2268 = vmatprep.subr.mxu0 0.0
    %2269 = vmatpush1.msra.mxu0 0.0
    %2270 = vmatprep.subr.mxu0 0.0
    %2271 = vmatpush1.msra.mxu0 0.0
    %2272 = vmatprep.mubr.f32.mxu0 0.0
    %2273 = vmatmul.mubr.f32.gmra.mrb[0].mxu0 %v2048
    %v2274 = vpop.f32.mrb[0].mxu0
    %v2275 = vadd.f32 0.0, %v2274
    %v2276 = vpop.f32.mrb[0].mxu0
    %2277 = vdwg.mxu0
    %v2278 = vadd.f32 %v2207, %v2275
    %v2279 = vtanh.pop %v2278
    %s2280 = scalar_lea.vmem [#allocation7], 12
    %v2281 = vld [vmem:[%s2280] sm:$0x3]
    %2282 = vmatprep.subr.mxu0 0.0
    %2283 = vmatpush1.msra.mxu0 %v130
    %2284 = vmatprep.subr.mxu0 0.0
    %2285 = vmatpush1.msra.mxu0 %v131
    %2286 = vmatprep.subr.mxu0 0.0
    %2287 = vmatpush1.msra.mxu0 %v132
    %2288 = vmatprep.subr.mxu0 0.0
    %2289 = vmatpush1.msra.mxu0 %v133
    %2290 = vmatprep.subr.mxu0 0.0
    %2291 = vmatpush1.msra.mxu0 0.0
    %2292 = vmatprep.subr.mxu0 0.0
    %2293 = vmatpush1.msra.mxu0 0.0
    %2294 = vmatprep.subr.mxu0 0.0
    %2295 = vmatpush1.msra.mxu0 0.0
    %2296 = vmatprep.subr.mxu0 0.0
    %2297 = vmatpush1.msra.mxu0 0.0
    %2298 = vmatprep.subr.mxu0 0.0
    %2299 = vmatpush1.msra.mxu0 0.0
    %2300 = vmatprep.subr.mxu0 0.0
    %2301 = vmatpush1.msra.mxu0 0.0
    %2302 = vmatprep.subr.mxu0 0.0
    %2303 = vmatpush1.msra.mxu0 0.0
    %2304 = vmatprep.subr.mxu0 0.0
    %2305 = vmatpush1.msra.mxu0 0.0
    %2306 = vmatprep.subr.mxu0 0.0
    %2307 = vmatpush1.msra.mxu0 0.0
    %2308 = vmatprep.subr.mxu0 0.0
    %2309 = vmatpush1.msra.mxu0 0.0
    %2310 = vmatprep.subr.mxu0 0.0
    %2311 = vmatpush1.msra.mxu0 0.0
    %2312 = vmatprep.subr.mxu0 0.0
    %2313 = vmatpush1.msra.mxu0 0.0
    %2314 = vmatprep.subr.mxu0 0.0
    %2315 = vmatpush1.msra.mxu0 0.0
    %2316 = vmatprep.subr.mxu0 0.0
    %2317 = vmatpush1.msra.mxu0 0.0
    %2318 = vmatprep.subr.mxu0 0.0
    %2319 = vmatpush1.msra.mxu0 0.0
    %2320 = vmatprep.subr.mxu0 0.0
    %2321 = vmatpush1.msra.mxu0 0.0
    %2322 = vmatprep.subr.mxu0 0.0
    %2323 = vmatpush1.msra.mxu0 0.0
    %2324 = vmatprep.subr.mxu0 0.0
    %2325 = vmatpush1.msra.mxu0 0.0
    %2326 = vmatprep.subr.mxu0 0.0
    %2327 = vmatpush1.msra.mxu0 0.0
    %2328 = vmatprep.subr.mxu0 0.0
    %2329 = vmatpush1.msra.mxu0 0.0
    %2330 = vmatprep.subr.mxu0 0.0
    %2331 = vmatpush1.msra.mxu0 0.0
    %2332 = vmatprep.subr.mxu0 0.0
    %2333 = vmatpush1.msra.mxu0 0.0
    %2334 = vmatprep.subr.mxu0 0.0
    %2335 = vmatpush1.msra.mxu0 0.0
    %2336 = vmatprep.subr.mxu0 0.0
    %2337 = vmatpush1.msra.mxu0 0.0
    %2338 = vmatprep.subr.mxu0 0.0
    %2339 = vmatpush1.msra.mxu0 0.0
    %2340 = vmatprep.subr.mxu0 0.0
    %2341 = vmatpush1.msra.mxu0 0.0
    %2342 = vmatprep.subr.mxu0 0.0
    %2343 = vmatpush1.msra.mxu0 0.0
    %2344 = vmatprep.subr.mxu0 0.0
    %2345 = vmatpush1.msra.mxu0 0.0
    %2346 = vmatprep.mubr.f32.mxu0 0.0
    %2347 = vmatmul.mubr.f32.gmra.mrb[0].mxu0 %v2048
    %v2348 = vpop.f32.mrb[0].mxu0
    %v2349 = vadd.f32 0.0, %v2348
    %v2350 = vpop.f32.mrb[0].mxu0
    %2351 = vdwg.mxu0
    %v2352 = vadd.f32 %v2281, %v2349
    %v2353 = vxor.u32 %v2352, 2147483648
    %v2354 = vmul.f32 %v2353, 1.442695
    %v2355 = vpow.pop %v2354
    %v2356 = vadd.f32 %v2355, 1.0
    %v2357 = vrcp.pop %v2356
    %v2358 = vmul.f32 1.0, %v2357
    %v2359 = vmul.f32 %v2205, %v2042
    %v2360 = vmul.f32 %v2126, %v2279
    %v2361 = vadd.f32 %v2359, %v2360
    %v2362 = vtanh.pop %v2361
    %v2363 = vmul.f32 %v2358, %v2362
    %s2364 = scalar_lea.vmem %s0, 14
    %v2365 = vld [vmem:[%s2364] sm:$0x3]
    %v2367 = vsel %vm135, %v2363, 0
    %2369 = vmatprep.subr.mxu0 0.0
    %2370 = vmatpush1.msra.mxu0 %v118
    %2371 = vmatprep.subr.mxu0 0.0
    %2372 = vmatpush1.msra.mxu0 %v119
    %2373 = vmatprep.subr.mxu0 0.0
    %2374 = vmatpush1.msra.mxu0 %v120
    %2375 = vmatprep.subr.mxu0 0.0
    %2376 = vmatpush1.msra.mxu0 %v121
    %2377 = vmatprep.subr.mxu0 0.0
    %2378 = vmatpush1.msra.mxu0 0.0
    %2379 = vmatprep.subr.mxu0 0.0
    %2380 = vmatpush1.msra.mxu0 0.0
    %2381 = vmatprep.subr.mxu0 0.0
    %2382 = vmatpush1.msra.mxu0 0.0
    %2383 = vmatprep.subr.mxu0 0.0
    %2384 = vmatpush1.msra.mxu0 0.0
    %2385 = vmatprep.subr.mxu0 0.0
    %2386 = vmatpush1.msra.mxu0 0.0
    %2387 = vmatprep.subr.mxu0 0.0
    %2388 = vmatpush1.msra.mxu0 0.0
    %2389 = vmatprep.subr.mxu0 0.0
    %2390 = vmatpush1.msra.mxu0 0.0
    %2391 = vmatprep.subr.mxu0 0.0
    %2392 = vmatpush1.msra.mxu0 0.0
    %2393 = vmatprep.subr.mxu0 0.0
    %2394 = vmatpush1.msra.mxu0 0.0
    %2395 = vmatprep.subr.mxu0 0.0
    %2396 = vmatpush1.msra.mxu0 0.0
    %2397 = vmatprep.subr.mxu0 0.0
    %2398 = vmatpush1.msra.mxu0 0.0
    %2399 = vmatprep.subr.mxu0 0.0
    %2400 = vmatpush1.msra.mxu0 0.0
    %2401 = vmatprep.subr.mxu0 0.0
    %2402 = vmatpush1.msra.mxu0 0.0
    %2403 = vmatprep.subr.mxu0 0.0
    %2404 = vmatpush1.msra.mxu0 0.0
    %2405 = vmatprep.subr.mxu0 0.0
    %2406 = vmatpush1.msra.mxu0 0.0
    %2407 = vmatprep.subr.mxu0 0.0
    %2408 = vmatpush1.msra.mxu0 0.0
    %2409 = vmatprep.subr.mxu0 0.0
    %2410 = vmatpush1.msra.mxu0 0.0
    %2411 = vmatprep.subr.mxu0 0.0
    %2412 = vmatpush1.msra.mxu0 0.0
    %2413 = vmatprep.subr.mxu0 0.0
    %2414 = vmatpush1.msra.mxu0 0.0
    %2415 = vmatprep.subr.mxu0 0.0
    %2416 = vmatpush1.msra.mxu0 0.0
    %2417 = vmatprep.subr.mxu0 0.0
    %2418 = vmatpush1.msra.mxu0 0.0
    %2419 = vmatprep.subr.mxu0 0.0
    %2420 = vmatpush1.msra.mxu0 0.0
    %2421 = vmatprep.subr.mxu0 0.0
    %2422 = vmatpush1.msra.mxu0 0.0
    %2423 = vmatprep.subr.mxu0 0.0
    %2424 = vmatpush1.msra.mxu0 0.0
    %2425 = vmatprep.subr.mxu0 0.0
    %2426 = vmatpush1.msra.mxu0 0.0
    %2427 = vmatprep.subr.mxu0 0.0
    %2428 = vmatpush1.msra.mxu0 0.0
    %2429 = vmatprep.subr.mxu0 0.0
    %2430 = vmatpush1.msra.mxu0 0.0
    %2431 = vmatprep.subr.mxu0 0.0
    %2432 = vmatpush1.msra.mxu0 0.0
    %2433 = vmatprep.mubr.f32.mxu0 0.0
    %2434 = vmatmul.mubr.f32.gmra.mrb[0].mxu0 %v2367
    %v2435 = vpop.f32.mrb[0].mxu0
    %v2436 = vadd.f32 0.0, %v2435
    %v2437 = vpop.f32.mrb[0].mxu0
    %2438 = vdwg.mxu0
    %v2439 = vadd.f32 %v2365, %v2436
    %v2440 = vxor.u32 %v2439, 2147483648
    %v2441 = vmul.f32 %v2440, 1.442695
    %v2442 = vpow.pop %v2441
    %v2443 = vadd.f32 %v2442, 1.0
    %v2444 = vrcp.pop %v2443
    %v2445 = vmul.f32 1.0, %v2444
    %s2446 = scalar_lea.vmem [#allocation2], 14
    %v2447 = vld [vmem:[%s2446] sm:$0x3]
    %2448 = vmatprep.subr.mxu0 0.0
    %2449 = vmatpush1.msra.mxu0 %v122
    %2450 = vmatprep.subr.mxu0 0.0
    %2451 = vmatpush1.msra.mxu0 %v123
    %2452 = vmatprep.subr.mxu0 0.0
    %2453 = vmatpush1.msra.mxu0 %v124
    %2454 = vmatprep.subr.mxu0 0.0
    %2455 = vmatpush1.msra.mxu0 %v125
    %2456 = vmatprep.subr.mxu0 0.0
    %2457 = vmatpush1.msra.mxu0 0.0
    %2458 = vmatprep.subr.mxu0 0.0
    %2459 = vmatpush1.msra.mxu0 0.0
    %2460 = vmatprep.subr.mxu0 0.0
    %2461 = vmatpush1.msra.mxu0 0.0
    %2462 = vmatprep.subr.mxu0 0.0
    %2463 = vmatpush1.msra.mxu0 0.0
    %2464 = vmatprep.subr.mxu0 0.0
    %2465 = vmatpush1.msra.mxu0 0.0
    %2466 = vmatprep.subr.mxu0 0.0
    %2467 = vmatpush1.msra.mxu0 0.0
    %2468 = vmatprep.subr.mxu0 0.0
    %2469 = vmatpush1.msra.mxu0 0.0
    %2470 = vmatprep.subr.mxu0 0.0
    %2471 = vmatpush1.msra.mxu0 0.0
    %2472 = vmatprep.subr.mxu0 0.0
    %2473 = vmatpush1.msra.mxu0 0.0
    %2474 = vmatprep.subr.mxu0 0.0
    %2475 = vmatpush1.msra.mxu0 0.0
    %2476 = vmatprep.subr.mxu0 0.0
    %2477 = vmatpush1.msra.mxu0 0.0
    %2478 = vmatprep.subr.mxu0 0.0
    %2479 = vmatpush1.msra.mxu0 0.0
    %2480 = vmatprep.subr.mxu0 0.0
    %2481 = vmatpush1.msra.mxu0 0.0
    %2482 = vmatprep.subr.mxu0 0.0
    %2483 = vmatpush1.msra.mxu0 0.0
    %2484 = vmatprep.subr.mxu0 0.0
    %2485 = vmatpush1.msra.mxu0 0.0
    %2486 = vmatprep.subr.mxu0 0.0
    %2487 = vmatpush1.msra.mxu0 0.0
    %2488 = vmatprep.subr.mxu0 0.0
    %2489 = vmatpush1.msra.mxu0 0.0
    %2490 = vmatprep.subr.mxu0 0.0
    %2491 = vmatpush1.msra.mxu0 0.0
    %2492 = vmatprep.subr.mxu0 0.0
    %2493 = vmatpush1.msra.mxu0 0.0
    %2494 = vmatprep.subr.mxu0 0.0
    %2495 = vmatpush1.msra.mxu0 0.0
    %2496 = vmatprep.subr.mxu0 0.0
    %2497 = vmatpush1.msra.mxu0 0.0
    %2498 = vmatprep.subr.mxu0 0.0
    %2499 = vmatpush1.msra.mxu0 0.0
    %2500 = vmatprep.subr.mxu0 0.0
    %2501 = vmatpush1.msra.mxu0 0.0
    %2502 = vmatprep.subr.mxu0 0.0
    %2503 = vmatpush1.msra.mxu0 0.0
    %2504 = vmatprep.subr.mxu0 0.0
    %2505 = vmatpush1.msra.mxu0 0.0
    %2506 = vmatprep.subr.mxu0 0.0
    %2507 = vmatpush1.msra.mxu0 0.0
    %2508 = vmatprep.subr.mxu0 0.0
    %2509 = vmatpush1.msra.mxu0 0.0
    %2510 = vmatprep.subr.mxu0 0.0
    %2511 = vmatpush1.msra.mxu0 0.0
    %2512 = vmatprep.mubr.f32.mxu0 0.0
    %2513 = vmatmul.mubr.f32.gmra.mrb[0].mxu0 %v2367
    %v2514 = vpop.f32.mrb[0].mxu0
    %v2515 = vadd.f32 0.0, %v2514
    %v2516 = vpop.f32.mrb[0].mxu0
    %2517 = vdwg.mxu0
    %v2518 = vadd.f32 %v2447, %v2515
    %v2519 = vxor.u32 %v2518, 2147483648
    %v2520 = vmul.f32 %v2519, 1.442695
    %v2521 = vpow.pop %v2520
    %v2522 = vadd.f32 %v2521, 1.0
    %v2523 = vrcp.pop %v2522
    %v2524 = vmul.f32 1.0, %v2523
    %s2525 = scalar_lea.vmem [#allocation5], 14
    %v2526 = vld [vmem:[%s2525] sm:$0x3]
    %2527 = vmatprep.subr.mxu0 0.0
    %2528 = vmatpush1.msra.mxu0 %v126
    %2529 = vmatprep.subr.mxu0 0.0
    %2530 = vmatpush1.msra.mxu0 %v127
    %2531 = vmatprep.subr.mxu0 0.0
    %2532 = vmatpush1.msra.mxu0 %v128
    %2533 = vmatprep.subr.mxu0 0.0
    %2534 = vmatpush1.msra.mxu0 %v129
    %2535 = vmatprep.subr.mxu0 0.0
    %2536 = vmatpush1.msra.mxu0 0.0
    %2537 = vmatprep.subr.mxu0 0.0
    %2538 = vmatpush1.msra.mxu0 0.0
    %2539 = vmatprep.subr.mxu0 0.0
    %2540 = vmatpush1.msra.mxu0 0.0
    %2541 = vmatprep.subr.mxu0 0.0
    %2542 = vmatpush1.msra.mxu0 0.0
    %2543 = vmatprep.subr.mxu0 0.0
    %2544 = vmatpush1.msra.mxu0 0.0
    %2545 = vmatprep.subr.mxu0 0.0
    %2546 = vmatpush1.msra.mxu0 0.0
    %2547 = vmatprep.subr.mxu0 0.0
    %2548 = vmatpush1.msra.mxu0 0.0
    %2549 = vmatprep.subr.mxu0 0.0
    %2550 = vmatpush1.msra.mxu0 0.0
    %2551 = vmatprep.subr.mxu0 0.0
    %2552 = vmatpush1.msra.mxu0 0.0
    %2553 = vmatprep.subr.mxu0 0.0
    %2554 = vmatpush1.msra.mxu0 0.0
    %2555 = vmatprep.subr.mxu0 0.0
    %2556 = vmatpush1.msra.mxu0 0.0
    %2557 = vmatprep.subr.mxu0 0.0
    %2558 = vmatpush1.msra.mxu0 0.0
    %2559 = vmatprep.subr.mxu0 0.0
    %2560 = vmatpush1.msra.mxu0 0.0
    %2561 = vmatprep.subr.mxu0 0.0
    %2562 = vmatpush1.msra.mxu0 0.0
    %2563 = vmatprep.subr.mxu0 0.0
    %2564 = vmatpush1.msra.mxu0 0.0
    %2565 = vmatprep.subr.mxu0 0.0
    %2566 = vmatpush1.msra.mxu0 0.0
    %2567 = vmatprep.subr.mxu0 0.0
    %2568 = vmatpush1.msra.mxu0 0.0
    %2569 = vmatprep.subr.mxu0 0.0
    %2570 = vmatpush1.msra.mxu0 0.0
    %2571 = vmatprep.subr.mxu0 0.0
    %2572 = vmatpush1.msra.mxu0 0.0
    %2573 = vmatprep.subr.mxu0 0.0
    %2574 = vmatpush1.msra.mxu0 0.0
    %2575 = vmatprep.subr.mxu0 0.0
    %2576 = vmatpush1.msra.mxu0 0.0
    %2577 = vmatprep.subr.mxu0 0.0
    %2578 = vmatpush1.msra.mxu0 0.0
    %2579 = vmatprep.subr.mxu0 0.0
    %2580 = vmatpush1.msra.mxu0 0.0
    %2581 = vmatprep.subr.mxu0 0.0
    %2582 = vmatpush1.msra.mxu0 0.0
    %2583 = vmatprep.subr.mxu0 0.0
    %2584 = vmatpush1.msra.mxu0 0.0
    %2585 = vmatprep.subr.mxu0 0.0
    %2586 = vmatpush1.msra.mxu0 0.0
    %2587 = vmatprep.subr.mxu0 0.0
    %2588 = vmatpush1.msra.mxu0 0.0
    %2589 = vmatprep.subr.mxu0 0.0
    %2590 = vmatpush1.msra.mxu0 0.0
    %2591 = vmatprep.mubr.f32.mxu0 0.0
    %2592 = vmatmul.mubr.f32.gmra.mrb[0].mxu0 %v2367
    %v2593 = vpop.f32.mrb[0].mxu0
    %v2594 = vadd.f32 0.0, %v2593
    %v2595 = vpop.f32.mrb[0].mxu0
    %2596 = vdwg.mxu0
    %v2597 = vadd.f32 %v2526, %v2594
    %v2598 = vtanh.pop %v2597
    %s2599 = scalar_lea.vmem [#allocation7], 14
    %v2600 = vld [vmem:[%s2599] sm:$0x3]
    %2601 = vmatprep.subr.mxu0 0.0
    %2602 = vmatpush1.msra.mxu0 %v130
    %2603 = vmatprep.subr.mxu0 0.0
    %2604 = vmatpush1.msra.mxu0 %v131
    %2605 = vmatprep.subr.mxu0 0.0
    %2606 = vmatpush1.msra.mxu0 %v132
    %2607 = vmatprep.subr.mxu0 0.0
    %2608 = vmatpush1.msra.mxu0 %v133
    %2609 = vmatprep.subr.mxu0 0.0
    %2610 = vmatpush1.msra.mxu0 0.0
    %2611 = vmatprep.subr.mxu0 0.0
    %2612 = vmatpush1.msra.mxu0 0.0
    %2613 = vmatprep.subr.mxu0 0.0
    %2614 = vmatpush1.msra.mxu0 0.0
    %2615 = vmatprep.subr.mxu0 0.0
    %2616 = vmatpush1.msra.mxu0 0.0
    %2617 = vmatprep.subr.mxu0 0.0
    %2618 = vmatpush1.msra.mxu0 0.0
    %2619 = vmatprep.subr.mxu0 0.0
    %2620 = vmatpush1.msra.mxu0 0.0
    %2621 = vmatprep.subr.mxu0 0.0
    %2622 = vmatpush1.msra.mxu0 0.0
    %2623 = vmatprep.subr.mxu0 0.0
    %2624 = vmatpush1.msra.mxu0 0.0
    %2625 = vmatprep.subr.mxu0 0.0
    %2626 = vmatpush1.msra.mxu0 0.0
    %2627 = vmatprep.subr.mxu0 0.0
    %2628 = vmatpush1.msra.mxu0 0.0
    %2629 = vmatprep.subr.mxu0 0.0
    %2630 = vmatpush1.msra.mxu0 0.0
    %2631 = vmatprep.subr.mxu0 0.0
    %2632 = vmatpush1.msra.mxu0 0.0
    %2633 = vmatprep.subr.mxu0 0.0
    %2634 = vmatpush1.msra.mxu0 0.0
    %2635 = vmatprep.subr.mxu0 0.0
    %2636 = vmatpush1.msra.mxu0 0.0
    %2637 = vmatprep.subr.mxu0 0.0
    %2638 = vmatpush1.msra.mxu0 0.0
    %2639 = vmatprep.subr.mxu0 0.0
    %2640 = vmatpush1.msra.mxu0 0.0
    %2641 = vmatprep.subr.mxu0 0.0
    %2642 = vmatpush1.msra.mxu0 0.0
    %2643 = vmatprep.subr.mxu0 0.0
    %2644 = vmatpush1.msra.mxu0 0.0
    %2645 = vmatprep.subr.mxu0 0.0
    %2646 = vmatpush1.msra.mxu0 0.0
    %2647 = vmatprep.subr.mxu0 0.0
    %2648 = vmatpush1.msra.mxu0 0.0
    %2649 = vmatprep.subr.mxu0 0.0
    %2650 = vmatpush1.msra.mxu0 0.0
    %2651 = vmatprep.subr.mxu0 0.0
    %2652 = vmatpush1.msra.mxu0 0.0
    %2653 = vmatprep.subr.mxu0 0.0
    %2654 = vmatpush1.msra.mxu0 0.0
    %2655 = vmatprep.subr.mxu0 0.0
    %2656 = vmatpush1.msra.mxu0 0.0
    %2657 = vmatprep.subr.mxu0 0.0
    %2658 = vmatpush1.msra.mxu0 0.0
    %2659 = vmatprep.subr.mxu0 0.0
    %2660 = vmatpush1.msra.mxu0 0.0
    %2661 = vmatprep.subr.mxu0 0.0
    %2662 = vmatpush1.msra.mxu0 0.0
    %2663 = vmatprep.subr.mxu0 0.0
    %2664 = vmatpush1.msra.mxu0 0.0
    %2665 = vmatprep.mubr.f32.mxu0 0.0
    %2666 = vmatmul.mubr.f32.gmra.mrb[0].mxu0 %v2367
    %v2667 = vpop.f32.mrb[0].mxu0
    %v2668 = vadd.f32 0.0, %v2667
    %v2669 = vpop.f32.mrb[0].mxu0
    %2670 = vdwg.mxu0
    %v2671 = vadd.f32 %v2600, %v2668
    %v2672 = vxor.u32 %v2671, 2147483648
    %v2673 = vmul.f32 %v2672, 1.442695
    %v2674 = vpow.pop %v2673
    %v2675 = vadd.f32 %v2674, 1.0
    %v2676 = vrcp.pop %v2675
    %v2677 = vmul.f32 1.0, %v2676
    %v2678 = vmul.f32 %v2524, %v2361
    %v2679 = vmul.f32 %v2445, %v2598
    %v2680 = vadd.f32 %v2678, %v2679
    %v2681 = vtanh.pop %v2680
    %v2682 = vmul.f32 %v2677, %v2681
    %v2683 = vld [vmem:[%s8] sm:$0xff]
    %v2684 = vld [vmem:[%s8 + $0x8] sm:$0xff]
    %v2685 = vld [vmem:[%s8 + $0x10] sm:$0xff]
    %v2686 = vld [vmem:[%s8 + $0x18] sm:$0xff]
    %v2687 = vld [vmem:[%s9] sm:$0x1]
    %v2689 = vlaneseq
    %v2690 = vshrl.u32 %v2689, 7
    %v2691 = vsub.s32 0, %v2690
    %v2692 = vrot.slane %v2687, %v2691
    %v2695 = vsel %vm135, %v2682, 0
    %2697 = vmatprep.subr.mxu0 0.0
    %2698 = vmatpush1.msra.mxu0 %v2683
    %2699 = vmatprep.subr.mxu0 0.0
    %2700 = vmatpush1.msra.mxu0 %v2684
    %2701 = vmatprep.subr.mxu0 0.0
    %2702 = vmatpush1.msra.mxu0 %v2685
    %2703 = vmatprep.subr.mxu0 0.0
    %2704 = vmatpush1.msra.mxu0 %v2686
    %2705 = vmatprep.subr.mxu0 0.0
    %2706 = vmatpush1.msra.mxu0 0.0
    %2707 = vmatprep.subr.mxu0 0.0
    %2708 = vmatpush1.msra.mxu0 0.0
    %2709 = vmatprep.subr.mxu0 0.0
    %2710 = vmatpush1.msra.mxu0 0.0
    %2711 = vmatprep.subr.mxu0 0.0
    %2712 = vmatpush1.msra.mxu0 0.0
    %2713 = vmatprep.subr.mxu0 0.0
    %2714 = vmatpush1.msra.mxu0 0.0
    %2715 = vmatprep.subr.mxu0 0.0
    %2716 = vmatpush1.msra.mxu0 0.0
    %2717 = vmatprep.subr.mxu0 0.0
    %2718 = vmatpush1.msra.mxu0 0.0
    %2719 = vmatprep.subr.mxu0 0.0
    %2720 = vmatpush1.msra.mxu0 0.0
    %2721 = vmatprep.subr.mxu0 0.0
    %2722 = vmatpush1.msra.mxu0 0.0
    %2723 = vmatprep.subr.mxu0 0.0
    %2724 = vmatpush1.msra.mxu0 0.0
    %2725 = vmatprep.subr.mxu0 0.0
    %2726 = vmatpush1.msra.mxu0 0.0
    %2727 = vmatprep.subr.mxu0 0.0
    %2728 = vmatpush1.msra.mxu0 0.0
    %2729 = vmatprep.subr.mxu0 0.0
    %2730 = vmatpush1.msra.mxu0 0.0
    %2731 = vmatprep.subr.mxu0 0.0
    %2732 = vmatpush1.msra.mxu0 0.0
    %2733 = vmatprep.subr.mxu0 0.0
    %2734 = vmatpush1.msra.mxu0 0.0
    %2735 = vmatprep.subr.mxu0 0.0
    %2736 = vmatpush1.msra.mxu0 0.0
    %2737 = vmatprep.subr.mxu0 0.0
    %2738 = vmatpush1.msra.mxu0 0.0
    %2739 = vmatprep.subr.mxu0 0.0
    %2740 = vmatpush1.msra.mxu0 0.0
    %2741 = vmatprep.subr.mxu0 0.0
    %2742 = vmatpush1.msra.mxu0 0.0
    %2743 = vmatprep.subr.mxu0 0.0
    %2744 = vmatpush1.msra.mxu0 0.0
    %2745 = vmatprep.subr.mxu0 0.0
    %2746 = vmatpush1.msra.mxu0 0.0
    %2747 = vmatprep.subr.mxu0 0.0
    %2748 = vmatpush1.msra.mxu0 0.0
    %2749 = vmatprep.subr.mxu0 0.0
    %2750 = vmatpush1.msra.mxu0 0.0
    %2751 = vmatprep.subr.mxu0 0.0
    %2752 = vmatpush1.msra.mxu0 0.0
    %2753 = vmatprep.subr.mxu0 0.0
    %2754 = vmatpush1.msra.mxu0 0.0
    %2755 = vmatprep.subr.mxu0 0.0
    %2756 = vmatpush1.msra.mxu0 0.0
    %2757 = vmatprep.subr.mxu0 0.0
    %2758 = vmatpush1.msra.mxu0 0.0
    %2759 = vmatprep.subr.mxu0 0.0
    %2760 = vmatpush1.msra.mxu0 0.0
    %2761 = vmatprep.mubr.f32.mxu0 0.0
    %2762 = vmatmul.mubr.f32.gmra.mrb[0].mxu0 %v2695
    %v2763 = vpop.f32.mrb[0].mxu0
    %v2764 = vadd.f32 %v2692, %v2763
    %v2765 = vpop.f32.mrb[0].mxu0
    %2766 = vdwg.mxu0
    %vm2767 = vcmask 9216
    %2768 = vst.msk [vmem:[#allocation13] sm:$0x3] %vm2767, %v2764
    // Predicated region
    $region66: #{tpu_custom_call.1} parent=1 // pred_check
      _
    $region67: #{tpu_custom_call.1} parent=1 // pred_check_branch
      %2770 = sbr.rel (0) target = $region69
    $region68: #{tpu_custom_call.1} parent=1 // pred_region
      %s2772 = ssub.s32 32, 32
      %2773 = vsyncadd [#allocation4], %s2772
      %s2775 = sshll.u32 [#allocation13], 4
      %s2776 = int_to_ptr.vmem [resolvable:$true] %s2775
      %2778 = dma.vmem_to_hbm [thread:$0]  %s2776, 32, %s10, [#allocation4]
    $region69: #{tpu_custom_call.1} parent=1 // pred_fallthru
      _
    // Predicated region
    $region70: #{tpu_custom_call.1} parent=1 // pred_check
      _
    $region71: #{tpu_custom_call.1} parent=1 // pred_check_branch
      %2780 = sbr.rel (0) target = $region73
    $region72: #{tpu_custom_call.1} parent=1 // pred_region
      %2781 = dma.done [#allocation4], 32
    $region73: #{tpu_custom_call.1} parent=1 // pred_fallthru
      _
    %2782 = vsyncpa [#allocation3], 1
    %2783 = vsyncpa [#allocation6], 1
    %2784 = vsyncpa [#allocation9], 1
    %2785 = vsyncpa [#allocation12], 1
    %2786 = vsyncpa [#allocation4], 1

</llo_original>
